<compile_context>
chip_gen: v7x
topology: tpu7x:2x2x1
jax: 0.10.0
libtpu: 0.0.40
codegen_flags: <defaults>
</compile_context>

<pallas_src>
import jax
import jax.numpy as jnp
from jax import lax
from jax.experimental import pallas as pl
from jax.experimental.pallas import tpu as pltpu

# ---------------------------------------------------------------------------
# Canonical network instantiation (NCHW at the module boundary).
# ---------------------------------------------------------------------------
N_IN_C, H, W = 4, 16, 16            # input (C, H, W)
C1, K = 8, 3                        # conv1: 4->8, k=3   -> 14x14
C2 = 16                             # conv2: 8->16, k=3  -> 5x5 (after pool)
HO1, WO1 = H - K + 1, W - K + 1     # 14, 14
HP, WP = HO1 // 2, WO1 // 2         # 7, 7
HO2, WO2 = HP - K + 1, WP - K + 1   # 5, 5
F_FLAT = C2 * HO2 * WO2             # 400
FC1, FC2 = 32, 8

# Batched, lane-dense workspace geometry (batch is the lane axis, BT=128).
BT = 128          # images per grid step == vreg lane width
R_IN = 272        # input rows per image: 256 real + 16 zero slack rows
L1 = 232          # conv1 rows computed; valid rows p = 16*y1 + x1 <= 221
BAND = 16         # pooled rows live at BAND*Y + 2*X (y-compact, x-dilated)
POOL_R = 120      # pooled-row buffer: 7 bands of 16 rows + 8 zero tail rows
L2 = 80           # conv2 rows computed; valid rows q = 16*y2 + 2*x2 <= 72
# Invalid ("garbage") rows of h1 / pool / h2 are finite for finite inputs and
# are only ever multiplied by zero rows of the packed fc1 weight.
# TODO(synk): if NaN/Inf inputs must be supported, mask the garbage rows.


# ---------------------------------------------------------------------------
# Fused forward kernel: one grid step == BT images, everything in VMEM/SMEM.
# ---------------------------------------------------------------------------
def _net_kernel(x_ref, w1_ref, b1_ref, w2_ref, b2_ref, w3_ref, b3_ref,
                w4_ref, b4_ref, o_ref, h1_ref, pool_ref, h2_ref):
    f32 = jnp.float32

    # ---- conv1 (4->8, k=3) + ReLU: scalar-weight x (L1, BT) slab MACs.
    @pl.loop(0, C1)
    def _conv1(co):
        def mac(ci, acc):
            for dy in range(K):
                for dx in range(K):
                    w = w1_ref[co, ci * (K * K) + dy * K + dx]      # SMEM scalar
                    acc = acc + w * x_ref[ci, pl.ds(dy * W + dx, L1), :]
            return acc
        acc = lax.fori_loop(0, N_IN_C, mac, jnp.zeros((L1, BT), f32))
        h1_ref[co] = jnp.maximum(acc + b1_ref[co], 0.0)             # (L1, BT)

    # ---- 2x2 / stride-2 max pool.  Pooled (Y, X) is stored at row
    # BAND*Y + 2*X (y-compact, x-dilated); odd/extra rows are finite garbage
    # that is never consumed by valid conv2/fc1 rows.
    for y in range(HP):
        b0 = 2 * W * y
        band = jnp.maximum(
            jnp.maximum(h1_ref[:, pl.ds(b0, BAND), :],
                        h1_ref[:, pl.ds(b0 + 1, BAND), :]),
            jnp.maximum(h1_ref[:, pl.ds(b0 + W, BAND), :],
                        h1_ref[:, pl.ds(b0 + W + 1, BAND), :]))
        pool_ref[:, pl.ds(BAND * y, BAND), :] = band
    # Zero the tail rows that conv2's garbage rows may read (keeps them finite).
    pool_ref[:, pl.ds(BAND * HP, POOL_R - BAND * HP), :] = jnp.zeros(
        (C1, POOL_R - BAND * HP, BT), f32)

    # ---- conv2 (8->16, k=3) + ReLU on the pooled map (same MAC scheme).
    @pl.loop(0, C2)
    def _conv2(co):
        def mac(ci, acc):
            for dy in range(K):
                for dx in range(K):
                    w = w2_ref[co, ci * (K * K) + dy * K + dx]      # SMEM scalar
                    acc = acc + w * pool_ref[ci, pl.ds(dy * BAND + 2 * dx, L2), :]
            return acc
        acc = lax.fori_loop(0, C1, mac, jnp.zeros((L2, BT), f32))
        row0 = pl.multiple_of(co * L2, 8)
        h2_ref[pl.ds(row0, L2), :] = jnp.maximum(acc + b2_ref[co], 0.0)

    # ---- fc1 (400->32) + ReLU as ONE lane-dense MXU contraction.  The NCHW
    # flatten permutation and the dilated conv2 row layout are baked into w3
    # (zero rows elsewhere), so no transpose / gather is needed.
    h3 = jnp.maximum(
        jnp.dot(w3_ref[...], h2_ref[...], preferred_element_type=jnp.float32)
        + b3_ref[...], 0.0)                                         # (32, BT)

    # ---- fc2 (32->8) + sigmoid (torch.sigmoid at the end of Net.forward).
    logits = jnp.dot(w4_ref[...], h3,
                     preferred_element_type=jnp.float32) + b4_ref[...]
    o_ref[...] = 1.0 / (1.0 + jnp.exp(-logits))                     # (8, BT)


# ---------------------------------------------------------------------------
# Host wrapper: one fused pallas_call per forward, BT images per grid step.
# ---------------------------------------------------------------------------
def _net_forward_impl(prep, x):
    n = x.shape[0]
    ng = (n + BT - 1) // BT
    n_pad = ng * BT
    xp = jnp.pad(x.astype(jnp.float32),
                 ((0, n_pad - n), (0, 0), (0, 0), (0, 0)))
    # Boundary layout change: batch into lanes, row-major pixel rows, slack.
    xr = jnp.transpose(xp.reshape(ng, BT, N_IN_C, H * W), (0, 2, 3, 1))
    xr = jnp.pad(xr, ((0, 0), (0, 0), (0, R_IN - H * W), (0, 0)))

    out = pl.pallas_call(
        _net_kernel,
        grid=(ng,),
        out_shape=jax.ShapeDtypeStruct((ng, FC2, BT), jnp.float32),
        in_specs=[
            pl.BlockSpec((None, N_IN_C, R_IN, BT), lambda g: (g, 0, 0, 0)),
            pl.BlockSpec(memory_space=pltpu.MemorySpace.SMEM),      # w1 (8,36)
            pl.BlockSpec(memory_space=pltpu.MemorySpace.SMEM),      # b1 (8,)
            pl.BlockSpec(memory_space=pltpu.MemorySpace.SMEM),      # w2 (16,72)
            pl.BlockSpec(memory_space=pltpu.MemorySpace.SMEM),      # b2 (16,)
            pl.BlockSpec((FC1, C2 * L2), lambda g: (0, 0)),         # w3 (32,1280)
            pl.BlockSpec((FC1, 1), lambda g: (0, 0)),               # b3 (32,1)
            pl.BlockSpec((FC2, FC1), lambda g: (0, 0)),             # w4 (8,32)
            pl.BlockSpec((FC2, 1), lambda g: (0, 0)),               # b4 (8,1)
        ],
        out_specs=pl.BlockSpec((None, FC2, BT), lambda g: (g, 0, 0)),
        scratch_shapes=[
            pltpu.VMEM((C1, L1, BT), jnp.float32),        # conv1+relu maps
            pltpu.VMEM((C1, POOL_R, BT), jnp.float32),    # pooled maps
            pltpu.VMEM((C2 * L2, BT), jnp.float32),       # conv2+relu maps
        ],
        compiler_params=pltpu.CompilerParams(
            dimension_semantics=("parallel",)),
    )(xr, prep["w1"], prep["b1"], prep["w2"], prep["b2"],
      prep["w3"], prep["b3"], prep["w4"], prep["b4"])

    # Lane-dense (FC2, BT) blocks -> (n, FC2) at the module boundary.
    return jnp.transpose(out, (0, 2, 1)).reshape(n_pad, FC2)[:n]


net_forward = jax.jit(_net_forward_impl)


# ---------------------------------------------------------------------------
# One-time parameter preparation: fold every layout transform into weights.
# ---------------------------------------------------------------------------
def prepare_params(p):
    # conv weights as [co, ci*9 + dy*3 + dx] scalar tables (kept in SMEM).
    w1 = p["w1"].reshape(C1, N_IN_C * K * K).astype(jnp.float32)
    w2 = p["w2"].reshape(C2, C1 * K * K).astype(jnp.float32)
    # fc1 weight (32, 400): torch flatten feature f = co*25 + y2*5 + x2 is
    # scattered onto h2 row co*L2 + BAND*y2 + 2*x2; all other rows stay zero.
    q = (BAND * jnp.arange(HO2)[:, None]
         + 2 * jnp.arange(WO2)[None, :]).reshape(-1)
    w3r = p["w3"].reshape(FC1, C2, HO2 * WO2).astype(jnp.float32)
    w3p = jnp.zeros((FC1, C2, L2), jnp.float32).at[:, :, q].set(w3r)
    return {
        "w1": w1, "b1": p["b1"].astype(jnp.float32),
        "w2": w2, "b2": p["b2"].astype(jnp.float32),
        "w3": w3p.reshape(FC1, C2 * L2),
        "b3": p["b3"].reshape(FC1, 1).astype(jnp.float32),
        "w4": p["w4"].astype(jnp.float32),
        "b4": p["b4"].reshape(FC2, 1).astype(jnp.float32),
    }


# ---------------------------------------------------------------------------
# Deterministic PyTorch-default-style init.
# ---------------------------------------------------------------------------
def init_params(key):
    def uniform(k, shape, fan_in):
        bound = 1.0 / jnp.sqrt(jnp.float32(fan_in))
        return jax.random.uniform(k, shape, jnp.float32, -bound, bound)
    ks = jax.random.split(key, 8)
    return {
        "w1": uniform(ks[0], (C1, N_IN_C, K, K), N_IN_C * K * K),
        "b1": uniform(ks[1], (C1,), N_IN_C * K * K),
        "w2": uniform(ks[2], (C2, C1, K, K), C1 * K * K),
        "b2": uniform(ks[3], (C2,), C1 * K * K),
        "w3": uniform(ks[4], (FC1, F_FLAT), F_FLAT),
        "b3": uniform(ks[5], (FC1,), F_FLAT),
        "w4": uniform(ks[6], (FC2, FC1), FC1),
        "b4": uniform(ks[7], (FC2,), FC1),
    }


# ---------------------------------------------------------------------------
# Pure-JAX reference (mirrors Net.forward) for correctness checking.
# ---------------------------------------------------------------------------
def net_forward_ref(params, x):
    def conv(x, w, b):
        y = jax.lax.conv_general_dilated(
            x, w, window_strides=(1, 1), padding="VALID",
            dimension_numbers=("NCHW", "OIHW", "NCHW"))
        return y + b.reshape(1, -1, 1, 1)

    x = jax.nn.relu(conv(x, params["w1"], params["b1"]))
    x = jax.lax.reduce_window(x, -jnp.inf, jax.lax.max,
                              (1, 1, 2, 2), (1, 1, 2, 2), "VALID")
    x = jax.nn.relu(conv(x, params["w2"], params["b2"]))
    x = x.reshape(x.shape[0], -1)
    x = jax.nn.relu(x @ params["w3"].T + params["b3"])
    x = x @ params["w4"].T + params["b4"]
    return jax.nn.sigmoid(x)


if __name__ == "__main__":
    k_x, k_p = jax.random.split(jax.random.PRNGKey(0))
    x = jax.random.normal(k_x, (2, N_IN_C, H, W), dtype=jnp.float32)
    params = init_params(k_p)
    prep = prepare_params(params)

    out = jax.block_until_ready(net_forward(prep, x))
    ref = jax.block_until_ready(net_forward_ref(params, x))

    assert out.shape == (2, FC2), out.shape
    max_err = float(jnp.max(jnp.abs(out - ref)))
    assert jnp.allclose(out, ref, atol=1e-3, rtol=1e-3), max_err
    print("KERNEL_OK")
</pallas_src>

<mosaic_0001>
module attributes {stable_mosaic.version = 11 : i64} {
  func.func @_net_kernel(%arg0: i32, %arg1: memref<1x4x272x128xf32, #tpu.memory_space<vmem>>, %arg2: memref<8x36xf32, #tpu.memory_space<smem>>, %arg3: memref<8xf32, #tpu.memory_space<smem>>, %arg4: memref<16x72xf32, #tpu.memory_space<smem>>, %arg5: memref<16xf32, #tpu.memory_space<smem>>, %arg6: memref<32x1280xf32, #tpu.memory_space<vmem>>, %arg7: memref<32x1xf32, #tpu.memory_space<vmem>>, %arg8: memref<8x32xf32, #tpu.memory_space<vmem>>, %arg9: memref<8x1xf32, #tpu.memory_space<vmem>>, %arg10: memref<1x8x128xf32, #tpu.memory_space<vmem>>, %arg11: memref<8x232x128xf32, #tpu.memory_space<vmem>>, %arg12: memref<8x120x128xf32, #tpu.memory_space<vmem>>, %arg13: memref<1280x128xf32, #tpu.memory_space<vmem>>) attributes {dimension_semantics = [#tpu.dimension_semantics<parallel>], iteration_bounds = array<i64: 1>, scalar_prefetch = 0 : i64, scratch_operands = 3 : i64, tpu.core_type = #tpu.core_type<tc>, window_params = [{transform_indices = @transform_0, window_bounds = array<i64: 1, 4, 272, 128>}, {transform_indices = @transform_1, window_bounds = array<i64: 8, 36>}, {transform_indices = @transform_2, window_bounds = array<i64: 8>}, {transform_indices = @transform_3, window_bounds = array<i64: 16, 72>}, {transform_indices = @transform_4, window_bounds = array<i64: 16>}, {pipeline_mode = #tpu.pipeline_mode<synchronous>, transform_indices = @transform_5, window_bounds = array<i64: 32, 1280>}, {pipeline_mode = #tpu.pipeline_mode<synchronous>, transform_indices = @transform_6, window_bounds = array<i64: 32, 1>}, {pipeline_mode = #tpu.pipeline_mode<synchronous>, transform_indices = @transform_7, window_bounds = array<i64: 8, 32>}, {pipeline_mode = #tpu.pipeline_mode<synchronous>, transform_indices = @transform_8, window_bounds = array<i64: 8, 1>}, {transform_indices = @transform_9, window_bounds = array<i64: 1, 8, 128>}]} {
    %c0_i32 = arith.constant 0 : i32
    %c8_i32 = arith.constant 8 : i32
    %0 = arith.addi %c0_i32, %c8_i32 : i32
    %c1_i32 = arith.constant 1 : i32
    scf.for %arg14 = %c0_i32 to %0 step %c1_i32  : i32 {
      %c1_i32_103 = arith.constant 1 : i32
      %83 = arith.muli %arg14, %c1_i32_103 : i32
      %c0_i32_104 = arith.constant 0 : i32
      %84 = arith.addi %c0_i32_104, %83 : i32
      %cst_105 = arith.constant 0.000000e+00 : f32
      %85 = vector.broadcast %cst_105 : f32 to vector<232x128xf32>
      %c0_i32_106 = arith.constant 0 : i32
      %c4_i32 = arith.constant 4 : i32
      %86 = arith.addi %c0_i32_106, %c4_i32 : i32
      %c1_i32_107 = arith.constant 1 : i32
      %87 = scf.for %arg15 = %c0_i32_106 to %86 step %c1_i32_107 iter_args(%arg16 = %85) -> (vector<232x128xf32>)  : i32 {
        %c9_i32 = arith.constant 9 : i32
        %98 = arith.muli %arg15, %c9_i32 : i32
        %c0_i32_112 = arith.constant 0 : i32
        %99 = arith.addi %98, %c0_i32_112 : i32
        %c0_i32_113 = arith.constant 0 : i32
        %100 = arith.addi %99, %c0_i32_113 : i32
        %101 = arith.index_cast %84 : i32 to index
        %102 = arith.index_cast %100 : i32 to index
        %103 = memref.load %arg2[%101, %102] : memref<8x36xf32, #tpu.memory_space<smem>>
        %c0_114 = arith.constant 0 : index
        %104 = arith.index_cast %arg15 : i32 to index
        %c0_115 = arith.constant 0 : index
        %c0_116 = arith.constant 0 : index
        %105 = vector.load %arg1[%c0_114, %104, %c0_115, %c0_116] : memref<1x4x272x128xf32, #tpu.memory_space<vmem>>, vector<1x1x232x128xf32>
        %106 = vector.shape_cast %105 : vector<1x1x232x128xf32> to vector<232x128xf32>
        %107 = vector.broadcast %103 : f32 to vector<232x128xf32>
        %108 = arith.mulf %107, %106 : vector<232x128xf32>
        %109 = arith.addf %arg16, %108 : vector<232x128xf32>
        %c9_i32_117 = arith.constant 9 : i32
        %110 = arith.muli %arg15, %c9_i32_117 : i32
        %c0_i32_118 = arith.constant 0 : i32
        %111 = arith.addi %110, %c0_i32_118 : i32
        %c1_i32_119 = arith.constant 1 : i32
        %112 = arith.addi %111, %c1_i32_119 : i32
        %113 = arith.index_cast %84 : i32 to index
        %114 = arith.index_cast %112 : i32 to index
        %115 = memref.load %arg2[%113, %114] : memref<8x36xf32, #tpu.memory_space<smem>>
        %c0_120 = arith.constant 0 : index
        %116 = arith.index_cast %arg15 : i32 to index
        %c1_121 = arith.constant 1 : index
        %c0_122 = arith.constant 0 : index
        %117 = vector.load %arg1[%c0_120, %116, %c1_121, %c0_122] : memref<1x4x272x128xf32, #tpu.memory_space<vmem>>, vector<1x1x232x128xf32>
        %118 = vector.shape_cast %117 : vector<1x1x232x128xf32> to vector<232x128xf32>
        %119 = vector.broadcast %115 : f32 to vector<232x128xf32>
        %120 = arith.mulf %119, %118 : vector<232x128xf32>
        %121 = arith.addf %109, %120 : vector<232x128xf32>
        %c9_i32_123 = arith.constant 9 : i32
        %122 = arith.muli %arg15, %c9_i32_123 : i32
        %c0_i32_124 = arith.constant 0 : i32
        %123 = arith.addi %122, %c0_i32_124 : i32
        %c2_i32 = arith.constant 2 : i32
        %124 = arith.addi %123, %c2_i32 : i32
        %125 = arith.index_cast %84 : i32 to index
        %126 = arith.index_cast %124 : i32 to index
        %127 = memref.load %arg2[%125, %126] : memref<8x36xf32, #tpu.memory_space<smem>>
        %c0_125 = arith.constant 0 : index
        %128 = arith.index_cast %arg15 : i32 to index
        %c2 = arith.constant 2 : index
        %c0_126 = arith.constant 0 : index
        %129 = vector.load %arg1[%c0_125, %128, %c2, %c0_126] : memref<1x4x272x128xf32, #tpu.memory_space<vmem>>, vector<1x1x232x128xf32>
        %130 = vector.shape_cast %129 : vector<1x1x232x128xf32> to vector<232x128xf32>
        %131 = vector.broadcast %127 : f32 to vector<232x128xf32>
        %132 = arith.mulf %131, %130 : vector<232x128xf32>
        %133 = arith.addf %121, %132 : vector<232x128xf32>
        %c9_i32_127 = arith.constant 9 : i32
        %134 = arith.muli %arg15, %c9_i32_127 : i32
        %c3_i32 = arith.constant 3 : i32
        %135 = arith.addi %134, %c3_i32 : i32
        %c0_i32_128 = arith.constant 0 : i32
        %136 = arith.addi %135, %c0_i32_128 : i32
        %137 = arith.index_cast %84 : i32 to index
        %138 = arith.index_cast %136 : i32 to index
        %139 = memref.load %arg2[%137, %138] : memref<8x36xf32, #tpu.memory_space<smem>>
        %c0_129 = arith.constant 0 : index
        %140 = arith.index_cast %arg15 : i32 to index
        %c16_130 = arith.constant 16 : index
        %c0_131 = arith.constant 0 : index
        %141 = vector.load %arg1[%c0_129, %140, %c16_130, %c0_131] : memref<1x4x272x128xf32, #tpu.memory_space<vmem>>, vector<1x1x232x128xf32>
        %142 = vector.shape_cast %141 : vector<1x1x232x128xf32> to vector<232x128xf32>
        %143 = vector.broadcast %139 : f32 to vector<232x128xf32>
        %144 = arith.mulf %143, %142 : vector<232x128xf32>
        %145 = arith.addf %133, %144 : vector<232x128xf32>
        %c9_i32_132 = arith.constant 9 : i32
        %146 = arith.muli %arg15, %c9_i32_132 : i32
        %c3_i32_133 = arith.constant 3 : i32
        %147 = arith.addi %146, %c3_i32_133 : i32
        %c1_i32_134 = arith.constant 1 : i32
        %148 = arith.addi %147, %c1_i32_134 : i32
        %149 = arith.index_cast %84 : i32 to index
        %150 = arith.index_cast %148 : i32 to index
        %151 = memref.load %arg2[%149, %150] : memref<8x36xf32, #tpu.memory_space<smem>>
        %c0_135 = arith.constant 0 : index
        %152 = arith.index_cast %arg15 : i32 to index
        %c17_136 = arith.constant 17 : index
        %c0_137 = arith.constant 0 : index
        %153 = vector.load %arg1[%c0_135, %152, %c17_136, %c0_137] : memref<1x4x272x128xf32, #tpu.memory_space<vmem>>, vector<1x1x232x128xf32>
        %154 = vector.shape_cast %153 : vector<1x1x232x128xf32> to vector<232x128xf32>
        %155 = vector.broadcast %151 : f32 to vector<232x128xf32>
        %156 = arith.mulf %155, %154 : vector<232x128xf32>
        %157 = arith.addf %145, %156 : vector<232x128xf32>
        %c9_i32_138 = arith.constant 9 : i32
        %158 = arith.muli %arg15, %c9_i32_138 : i32
        %c3_i32_139 = arith.constant 3 : i32
        %159 = arith.addi %158, %c3_i32_139 : i32
        %c2_i32_140 = arith.constant 2 : i32
        %160 = arith.addi %159, %c2_i32_140 : i32
        %161 = arith.index_cast %84 : i32 to index
        %162 = arith.index_cast %160 : i32 to index
        %163 = memref.load %arg2[%161, %162] : memref<8x36xf32, #tpu.memory_space<smem>>
        %c0_141 = arith.constant 0 : index
        %164 = arith.index_cast %arg15 : i32 to index
        %c18 = arith.constant 18 : index
        %c0_142 = arith.constant 0 : index
        %165 = vector.load %arg1[%c0_141, %164, %c18, %c0_142] : memref<1x4x272x128xf32, #tpu.memory_space<vmem>>, vector<1x1x232x128xf32>
        %166 = vector.shape_cast %165 : vector<1x1x232x128xf32> to vector<232x128xf32>
        %167 = vector.broadcast %163 : f32 to vector<232x128xf32>
        %168 = arith.mulf %167, %166 : vector<232x128xf32>
        %169 = arith.addf %157, %168 : vector<232x128xf32>
        %c9_i32_143 = arith.constant 9 : i32
        %170 = arith.muli %arg15, %c9_i32_143 : i32
        %c6_i32 = arith.constant 6 : i32
        %171 = arith.addi %170, %c6_i32 : i32
        %c0_i32_144 = arith.constant 0 : i32
        %172 = arith.addi %171, %c0_i32_144 : i32
        %173 = arith.index_cast %84 : i32 to index
        %174 = arith.index_cast %172 : i32 to index
        %175 = memref.load %arg2[%173, %174] : memref<8x36xf32, #tpu.memory_space<smem>>
        %c0_145 = arith.constant 0 : index
        %176 = arith.index_cast %arg15 : i32 to index
        %c32_146 = arith.constant 32 : index
        %c0_147 = arith.constant 0 : index
        %177 = vector.load %arg1[%c0_145, %176, %c32_146, %c0_147] : memref<1x4x272x128xf32, #tpu.memory_space<vmem>>, vector<1x1x232x128xf32>
        %178 = vector.shape_cast %177 : vector<1x1x232x128xf32> to vector<232x128xf32>
        %179 = vector.broadcast %175 : f32 to vector<232x128xf32>
        %180 = arith.mulf %179, %178 : vector<232x128xf32>
        %181 = arith.addf %169, %180 : vector<232x128xf32>
        %c9_i32_148 = arith.constant 9 : i32
        %182 = arith.muli %arg15, %c9_i32_148 : i32
        %c6_i32_149 = arith.constant 6 : i32
        %183 = arith.addi %182, %c6_i32_149 : i32
        %c1_i32_150 = arith.constant 1 : i32
        %184 = arith.addi %183, %c1_i32_150 : i32
        %185 = arith.index_cast %84 : i32 to index
        %186 = arith.index_cast %184 : i32 to index
        %187 = memref.load %arg2[%185, %186] : memref<8x36xf32, #tpu.memory_space<smem>>
        %c0_151 = arith.constant 0 : index
        %188 = arith.index_cast %arg15 : i32 to index
        %c33_152 = arith.constant 33 : index
        %c0_153 = arith.constant 0 : index
        %189 = vector.load %arg1[%c0_151, %188, %c33_152, %c0_153] : memref<1x4x272x128xf32, #tpu.memory_space<vmem>>, vector<1x1x232x128xf32>
        %190 = vector.shape_cast %189 : vector<1x1x232x128xf32> to vector<232x128xf32>
        %191 = vector.broadcast %187 : f32 to vector<232x128xf32>
        %192 = arith.mulf %191, %190 : vector<232x128xf32>
        %193 = arith.addf %181, %192 : vector<232x128xf32>
        %c9_i32_154 = arith.constant 9 : i32
        %194 = arith.muli %arg15, %c9_i32_154 : i32
        %c6_i32_155 = arith.constant 6 : i32
        %195 = arith.addi %194, %c6_i32_155 : i32
        %c2_i32_156 = arith.constant 2 : i32
        %196 = arith.addi %195, %c2_i32_156 : i32
        %197 = arith.index_cast %84 : i32 to index
        %198 = arith.index_cast %196 : i32 to index
        %199 = memref.load %arg2[%197, %198] : memref<8x36xf32, #tpu.memory_space<smem>>
        %c0_157 = arith.constant 0 : index
        %200 = arith.index_cast %arg15 : i32 to index
        %c34 = arith.constant 34 : index
        %c0_158 = arith.constant 0 : index
        %201 = vector.load %arg1[%c0_157, %200, %c34, %c0_158] : memref<1x4x272x128xf32, #tpu.memory_space<vmem>>, vector<1x1x232x128xf32>
        %202 = vector.shape_cast %201 : vector<1x1x232x128xf32> to vector<232x128xf32>
        %203 = vector.broadcast %199 : f32 to vector<232x128xf32>
        %204 = arith.mulf %203, %202 : vector<232x128xf32>
        %205 = arith.addf %193, %204 : vector<232x128xf32>
        scf.yield %205 : vector<232x128xf32>
      }
      %c4_i32_108 = arith.constant 4 : i32
      %88 = arith.index_cast %84 : i32 to index
      %89 = memref.load %arg3[%88] : memref<8xf32, #tpu.memory_space<smem>>
      %90 = vector.broadcast %89 : f32 to vector<232x128xf32>
      %91 = arith.addf %87, %90 : vector<232x128xf32>
      %cst_109 = arith.constant 0.000000e+00 : f32
      %92 = vector.broadcast %cst_109 : f32 to vector<232x128xf32>
      %93 = arith.maximumf %91, %92 : vector<232x128xf32>
      %94 = arith.index_cast %84 : i32 to index
      %c0_110 = arith.constant 0 : index
      %c0_111 = arith.constant 0 : index
      %95 = vector.load %arg11[%94, %c0_110, %c0_111] : memref<8x232x128xf32, #tpu.memory_space<vmem>>, vector<1x232x128xf32>
      %96 = vector.shape_cast %95 : vector<1x232x128xf32> to vector<232x128xf32>
      %97 = vector.shape_cast %93 : vector<232x128xf32> to vector<1x232x128xf32>
      tpu.vector_store %arg11[%94, %c0_110, %c0_111], %97 {strides = array<i32>} : memref<8x232x128xf32, #tpu.memory_space<vmem>>, vector<1x232x128xf32>,
    }
    %c8_i32_0 = arith.constant 8 : i32
    %c0 = arith.constant 0 : index
    %c0_1 = arith.constant 0 : index
    %c0_2 = arith.constant 0 : index
    %1 = vector.load %arg11[%c0, %c0_1, %c0_2] : memref<8x232x128xf32, #tpu.memory_space<vmem>>, vector<8x16x128xf32>
    %c0_3 = arith.constant 0 : index
    %c1 = arith.constant 1 : index
    %c0_4 = arith.constant 0 : index
    %2 = vector.load %arg11[%c0_3, %c1, %c0_4] : memref<8x232x128xf32, #tpu.memory_space<vmem>>, vector<8x16x128xf32>
    %3 = arith.maximumf %1, %2 : vector<8x16x128xf32>
    %c0_5 = arith.constant 0 : index
    %c16 = arith.constant 16 : index
    %c0_6 = arith.constant 0 : index
    %4 = vector.load %arg11[%c0_5, %c16, %c0_6] : memref<8x232x128xf32, #tpu.memory_space<vmem>>, vector<8x16x128xf32>
    %c0_7 = arith.constant 0 : index
    %c17 = arith.constant 17 : index
    %c0_8 = arith.constant 0 : index
    %5 = vector.load %arg11[%c0_7, %c17, %c0_8] : memref<8x232x128xf32, #tpu.memory_space<vmem>>, vector<8x16x128xf32>
    %6 = arith.maximumf %4, %5 : vector<8x16x128xf32>
    %7 = arith.maximumf %3, %6 : vector<8x16x128xf32>
    %c0_9 = arith.constant 0 : index
    %c0_10 = arith.constant 0 : index
    %c0_11 = arith.constant 0 : index
    %8 = vector.load %arg12[%c0_9, %c0_10, %c0_11] : memref<8x120x128xf32, #tpu.memory_space<vmem>>, vector<8x16x128xf32>
    tpu.vector_store %arg12[%c0_9, %c0_10, %c0_11], %7 {strides = array<i32>} : memref<8x120x128xf32, #tpu.memory_space<vmem>>, vector<8x16x128xf32>,
    %c0_12 = arith.constant 0 : index
    %c32 = arith.constant 32 : index
    %c0_13 = arith.constant 0 : index
    %9 = vector.load %arg11[%c0_12, %c32, %c0_13] : memref<8x232x128xf32, #tpu.memory_space<vmem>>, vector<8x16x128xf32>
    %c0_14 = arith.constant 0 : index
    %c33 = arith.constant 33 : index
    %c0_15 = arith.constant 0 : index
    %10 = vector.load %arg11[%c0_14, %c33, %c0_15] : memref<8x232x128xf32, #tpu.memory_space<vmem>>, vector<8x16x128xf32>
    %11 = arith.maximumf %9, %10 : vector<8x16x128xf32>
    %c0_16 = arith.constant 0 : index
    %c48 = arith.constant 48 : index
    %c0_17 = arith.constant 0 : index
    %12 = vector.load %arg11[%c0_16, %c48, %c0_17] : memref<8x232x128xf32, #tpu.memory_space<vmem>>, vector<8x16x128xf32>
    %c0_18 = arith.constant 0 : index
    %c49 = arith.constant 49 : index
    %c0_19 = arith.constant 0 : index
    %13 = vector.load %arg11[%c0_18, %c49, %c0_19] : memref<8x232x128xf32, #tpu.memory_space<vmem>>, vector<8x16x128xf32>
    %14 = arith.maximumf %12, %13 : vector<8x16x128xf32>
    %15 = arith.maximumf %11, %14 : vector<8x16x128xf32>
    %c0_20 = arith.constant 0 : index
    %c16_21 = arith.constant 16 : index
    %c0_22 = arith.constant 0 : index
    %16 = vector.load %arg12[%c0_20, %c16_21, %c0_22] : memref<8x120x128xf32, #tpu.memory_space<vmem>>, vector<8x16x128xf32>
    tpu.vector_store %arg12[%c0_20, %c16_21, %c0_22], %15 {strides = array<i32>} : memref<8x120x128xf32, #tpu.memory_space<vmem>>, vector<8x16x128xf32>,
    %c0_23 = arith.constant 0 : index
    %c64 = arith.constant 64 : index
    %c0_24 = arith.constant 0 : index
    %17 = vector.load %arg11[%c0_23, %c64, %c0_24] : memref<8x232x128xf32, #tpu.memory_space<vmem>>, vector<8x16x128xf32>
    %c0_25 = arith.constant 0 : index
    %c65 = arith.constant 65 : index
    %c0_26 = arith.constant 0 : index
    %18 = vector.load %arg11[%c0_25, %c65, %c0_26] : memref<8x232x128xf32, #tpu.memory_space<vmem>>, vector<8x16x128xf32>
    %19 = arith.maximumf %17, %18 : vector<8x16x128xf32>
    %c0_27 = arith.constant 0 : index
    %c80 = arith.constant 80 : index
    %c0_28 = arith.constant 0 : index
    %20 = vector.load %arg11[%c0_27, %c80, %c0_28] : memref<8x232x128xf32, #tpu.memory_space<vmem>>, vector<8x16x128xf32>
    %c0_29 = arith.constant 0 : index
    %c81 = arith.constant 81 : index
    %c0_30 = arith.constant 0 : index
    %21 = vector.load %arg11[%c0_29, %c81, %c0_30] : memref<8x232x128xf32, #tpu.memory_space<vmem>>, vector<8x16x128xf32>
    %22 = arith.maximumf %20, %21 : vector<8x16x128xf32>
    %23 = arith.maximumf %19, %22 : vector<8x16x128xf32>
    %c0_31 = arith.constant 0 : index
    %c32_32 = arith.constant 32 : index
    %c0_33 = arith.constant 0 : index
    %24 = vector.load %arg12[%c0_31, %c32_32, %c0_33] : memref<8x120x128xf32, #tpu.memory_space<vmem>>, vector<8x16x128xf32>
    tpu.vector_store %arg12[%c0_31, %c32_32, %c0_33], %23 {strides = array<i32>} : memref<8x120x128xf32, #tpu.memory_space<vmem>>, vector<8x16x128xf32>,
    %c0_34 = arith.constant 0 : index
    %c96 = arith.constant 96 : index
    %c0_35 = arith.constant 0 : index
    %25 = vector.load %arg11[%c0_34, %c96, %c0_35] : memref<8x232x128xf32, #tpu.memory_space<vmem>>, vector<8x16x128xf32>
    %c0_36 = arith.constant 0 : index
    %c97 = arith.constant 97 : index
    %c0_37 = arith.constant 0 : index
    %26 = vector.load %arg11[%c0_36, %c97, %c0_37] : memref<8x232x128xf32, #tpu.memory_space<vmem>>, vector<8x16x128xf32>
    %27 = arith.maximumf %25, %26 : vector<8x16x128xf32>
    %c0_38 = arith.constant 0 : index
    %c112 = arith.constant 112 : index
    %c0_39 = arith.constant 0 : index
    %28 = vector.load %arg11[%c0_38, %c112, %c0_39] : memref<8x232x128xf32, #tpu.memory_space<vmem>>, vector<8x16x128xf32>
    %c0_40 = arith.constant 0 : index
    %c113 = arith.constant 113 : index
    %c0_41 = arith.constant 0 : index
    %29 = vector.load %arg11[%c0_40, %c113, %c0_41] : memref<8x232x128xf32, #tpu.memory_space<vmem>>, vector<8x16x128xf32>
    %30 = arith.maximumf %28, %29 : vector<8x16x128xf32>
    %31 = arith.maximumf %27, %30 : vector<8x16x128xf32>
    %c0_42 = arith.constant 0 : index
    %c48_43 = arith.constant 48 : index
    %c0_44 = arith.constant 0 : index
    %32 = vector.load %arg12[%c0_42, %c48_43, %c0_44] : memref<8x120x128xf32, #tpu.memory_space<vmem>>, vector<8x16x128xf32>
    tpu.vector_store %arg12[%c0_42, %c48_43, %c0_44], %31 {strides = array<i32>} : memref<8x120x128xf32, #tpu.memory_space<vmem>>, vector<8x16x128xf32>,
    %c0_45 = arith.constant 0 : index
    %c128 = arith.constant 128 : index
    %c0_46 = arith.constant 0 : index
    %33 = vector.load %arg11[%c0_45, %c128, %c0_46] : memref<8x232x128xf32, #tpu.memory_space<vmem>>, vector<8x16x128xf32>
    %c0_47 = arith.constant 0 : index
    %c129 = arith.constant 129 : index
    %c0_48 = arith.constant 0 : index
    %34 = vector.load %arg11[%c0_47, %c129, %c0_48] : memref<8x232x128xf32, #tpu.memory_space<vmem>>, vector<8x16x128xf32>
    %35 = arith.maximumf %33, %34 : vector<8x16x128xf32>
    %c0_49 = arith.constant 0 : index
    %c144 = arith.constant 144 : index
    %c0_50 = arith.constant 0 : index
    %36 = vector.load %arg11[%c0_49, %c144, %c0_50] : memref<8x232x128xf32, #tpu.memory_space<vmem>>, vector<8x16x128xf32>
    %c0_51 = arith.constant 0 : index
    %c145 = arith.constant 145 : index
    %c0_52 = arith.constant 0 : index
    %37 = vector.load %arg11[%c0_51, %c145, %c0_52] : memref<8x232x128xf32, #tpu.memory_space<vmem>>, vector<8x16x128xf32>
    %38 = arith.maximumf %36, %37 : vector<8x16x128xf32>
    %39 = arith.maximumf %35, %38 : vector<8x16x128xf32>
    %c0_53 = arith.constant 0 : index
    %c64_54 = arith.constant 64 : index
    %c0_55 = arith.constant 0 : index
    %40 = vector.load %arg12[%c0_53, %c64_54, %c0_55] : memref<8x120x128xf32, #tpu.memory_space<vmem>>, vector<8x16x128xf32>
    tpu.vector_store %arg12[%c0_53, %c64_54, %c0_55], %39 {strides = array<i32>} : memref<8x120x128xf32, #tpu.memory_space<vmem>>, vector<8x16x128xf32>,
    %c0_56 = arith.constant 0 : index
    %c160 = arith.constant 160 : index
    %c0_57 = arith.constant 0 : index
    %41 = vector.load %arg11[%c0_56, %c160, %c0_57] : memref<8x232x128xf32, #tpu.memory_space<vmem>>, vector<8x16x128xf32>
    %c0_58 = arith.constant 0 : index
    %c161 = arith.constant 161 : index
    %c0_59 = arith.constant 0 : index
    %42 = vector.load %arg11[%c0_58, %c161, %c0_59] : memref<8x232x128xf32, #tpu.memory_space<vmem>>, vector<8x16x128xf32>
    %43 = arith.maximumf %41, %42 : vector<8x16x128xf32>
    %c0_60 = arith.constant 0 : index
    %c176 = arith.constant 176 : index
    %c0_61 = arith.constant 0 : index
    %44 = vector.load %arg11[%c0_60, %c176, %c0_61] : memref<8x232x128xf32, #tpu.memory_space<vmem>>, vector<8x16x128xf32>
    %c0_62 = arith.constant 0 : index
    %c177 = arith.constant 177 : index
    %c0_63 = arith.constant 0 : index
    %45 = vector.load %arg11[%c0_62, %c177, %c0_63] : memref<8x232x128xf32, #tpu.memory_space<vmem>>, vector<8x16x128xf32>
    %46 = arith.maximumf %44, %45 : vector<8x16x128xf32>
    %47 = arith.maximumf %43, %46 : vector<8x16x128xf32>
    %c0_64 = arith.constant 0 : index
    %c80_65 = arith.constant 80 : index
    %c0_66 = arith.constant 0 : index
    %48 = vector.load %arg12[%c0_64, %c80_65, %c0_66] : memref<8x120x128xf32, #tpu.memory_space<vmem>>, vector<8x16x128xf32>
    tpu.vector_store %arg12[%c0_64, %c80_65, %c0_66], %47 {strides = array<i32>} : memref<8x120x128xf32, #tpu.memory_space<vmem>>, vector<8x16x128xf32>,
    %c0_67 = arith.constant 0 : index
    %c192 = arith.constant 192 : index
    %c0_68 = arith.constant 0 : index
    %49 = vector.load %arg11[%c0_67, %c192, %c0_68] : memref<8x232x128xf32, #tpu.memory_space<vmem>>, vector<8x16x128xf32>
    %c0_69 = arith.constant 0 : index
    %c193 = arith.constant 193 : index
    %c0_70 = arith.constant 0 : index
    %50 = vector.load %arg11[%c0_69, %c193, %c0_70] : memref<8x232x128xf32, #tpu.memory_space<vmem>>, vector<8x16x128xf32>
    %51 = arith.maximumf %49, %50 : vector<8x16x128xf32>
    %c0_71 = arith.constant 0 : index
    %c208 = arith.constant 208 : index
    %c0_72 = arith.constant 0 : index
    %52 = vector.load %arg11[%c0_71, %c208, %c0_72] : memref<8x232x128xf32, #tpu.memory_space<vmem>>, vector<8x16x128xf32>
    %c0_73 = arith.constant 0 : index
    %c209 = arith.constant 209 : index
    %c0_74 = arith.constant 0 : index
    %53 = vector.load %arg11[%c0_73, %c209, %c0_74] : memref<8x232x128xf32, #tpu.memory_space<vmem>>, vector<8x16x128xf32>
    %54 = arith.maximumf %52, %53 : vector<8x16x128xf32>
    %55 = arith.maximumf %51, %54 : vector<8x16x128xf32>
    %c0_75 = arith.constant 0 : index
    %c96_76 = arith.constant 96 : index
    %c0_77 = arith.constant 0 : index
    %56 = vector.load %arg12[%c0_75, %c96_76, %c0_77] : memref<8x120x128xf32, #tpu.memory_space<vmem>>, vector<8x16x128xf32>
    tpu.vector_store %arg12[%c0_75, %c96_76, %c0_77], %55 {strides = array<i32>} : memref<8x120x128xf32, #tpu.memory_space<vmem>>, vector<8x16x128xf32>,
    %cst = arith.constant 0.000000e+00 : f32
    %57 = vector.broadcast %cst : f32 to vector<8x8x128xf32>
    %c0_78 = arith.constant 0 : index
    %c112_79 = arith.constant 112 : index
    %c0_80 = arith.constant 0 : index
    %58 = vector.load %arg12[%c0_78, %c112_79, %c0_80] : memref<8x120x128xf32, #tpu.memory_space<vmem>>, vector<8x8x128xf32>
    tpu.vector_store %arg12[%c0_78, %c112_79, %c0_80], %57 {strides = array<i32>} : memref<8x120x128xf32, #tpu.memory_space<vmem>>, vector<8x8x128xf32>,
    %c0_i32_81 = arith.constant 0 : i32
    %c16_i32 = arith.constant 16 : i32
    %59 = arith.addi %c0_i32_81, %c16_i32 : i32
    %c1_i32_82 = arith.constant 1 : i32
    scf.for %arg14 = %c0_i32_81 to %59 step %c1_i32_82  : i32 {
      %c1_i32_103 = arith.constant 1 : i32
      %83 = arith.muli %arg14, %c1_i32_103 : i32
      %c0_i32_104 = arith.constant 0 : i32
      %84 = arith.addi %c0_i32_104, %83 : i32
      %cst_105 = arith.constant 0.000000e+00 : f32
      %85 = vector.broadcast %cst_105 : f32 to vector<80x128xf32>
      %c0_i32_106 = arith.constant 0 : i32
      %c8_i32_107 = arith.constant 8 : i32
      %86 = arith.addi %c0_i32_106, %c8_i32_107 : i32
      %c1_i32_108 = arith.constant 1 : i32
      %87 = scf.for %arg15 = %c0_i32_106 to %86 step %c1_i32_108 iter_args(%arg16 = %85) -> (vector<80x128xf32>)  : i32 {
        %c9_i32 = arith.constant 9 : i32
        %98 = arith.muli %arg15, %c9_i32 : i32
        %c0_i32_112 = arith.constant 0 : i32
        %99 = arith.addi %98, %c0_i32_112 : i32
        %c0_i32_113 = arith.constant 0 : i32
        %100 = arith.addi %99, %c0_i32_113 : i32
        %101 = arith.index_cast %84 : i32 to index
        %102 = arith.index_cast %100 : i32 to index
        %103 = memref.load %arg4[%101, %102] : memref<16x72xf32, #tpu.memory_space<smem>>
        %104 = arith.index_cast %arg15 : i32 to index
        %c0_114 = arith.constant 0 : index
        %c0_115 = arith.constant 0 : index
        %105 = vector.load %arg12[%104, %c0_114, %c0_115] : memref<8x120x128xf32, #tpu.memory_space<vmem>>, vector<1x80x128xf32>
        %106 = vector.shape_cast %105 : vector<1x80x128xf32> to vector<80x128xf32>
        %107 = vector.broadcast %103 : f32 to vector<80x128xf32>
        %108 = arith.mulf %107, %106 : vector<80x128xf32>
        %109 = arith.addf %arg16, %108 : vector<80x128xf32>
        %c9_i32_116 = arith.constant 9 : i32
        %110 = arith.muli %arg15, %c9_i32_116 : i32
        %c0_i32_117 = arith.constant 0 : i32
        %111 = arith.addi %110, %c0_i32_117 : i32
        %c1_i32_118 = arith.constant 1 : i32
        %112 = arith.addi %111, %c1_i32_118 : i32
        %113 = arith.index_cast %84 : i32 to index
        %114 = arith.index_cast %112 : i32 to index
        %115 = memref.load %arg4[%113, %114] : memref<16x72xf32, #tpu.memory_space<smem>>
        %116 = arith.index_cast %arg15 : i32 to index
        %c2 = arith.constant 2 : index
        %c0_119 = arith.constant 0 : index
        %117 = vector.load %arg12[%116, %c2, %c0_119] : memref<8x120x128xf32, #tpu.memory_space<vmem>>, vector<1x80x128xf32>
        %118 = vector.shape_cast %117 : vector<1x80x128xf32> to vector<80x128xf32>
        %119 = vector.broadcast %115 : f32 to vector<80x128xf32>
        %120 = arith.mulf %119, %118 : vector<80x128xf32>
        %121 = arith.addf %109, %120 : vector<80x128xf32>
        %c9_i32_120 = arith.constant 9 : i32
        %122 = arith.muli %arg15, %c9_i32_120 : i32
        %c0_i32_121 = arith.constant 0 : i32
        %123 = arith.addi %122, %c0_i32_121 : i32
        %c2_i32 = arith.constant 2 : i32
        %124 = arith.addi %123, %c2_i32 : i32
        %125 = arith.index_cast %84 : i32 to index
        %126 = arith.index_cast %124 : i32 to index
        %127 = memref.load %arg4[%125, %126] : memref<16x72xf32, #tpu.memory_space<smem>>
        %128 = arith.index_cast %arg15 : i32 to index
        %c4 = arith.constant 4 : index
        %c0_122 = arith.constant 0 : index
        %129 = vector.load %arg12[%128, %c4, %c0_122] : memref<8x120x128xf32, #tpu.memory_space<vmem>>, vector<1x80x128xf32>
        %130 = vector.shape_cast %129 : vector<1x80x128xf32> to vector<80x128xf32>
        %131 = vector.broadcast %127 : f32 to vector<80x128xf32>
        %132 = arith.mulf %131, %130 : vector<80x128xf32>
        %133 = arith.addf %121, %132 : vector<80x128xf32>
        %c9_i32_123 = arith.constant 9 : i32
        %134 = arith.muli %arg15, %c9_i32_123 : i32
        %c3_i32 = arith.constant 3 : i32
        %135 = arith.addi %134, %c3_i32 : i32
        %c0_i32_124 = arith.constant 0 : i32
        %136 = arith.addi %135, %c0_i32_124 : i32
        %137 = arith.index_cast %84 : i32 to index
        %138 = arith.index_cast %136 : i32 to index
        %139 = memref.load %arg4[%137, %138] : memref<16x72xf32, #tpu.memory_space<smem>>
        %140 = arith.index_cast %arg15 : i32 to index
        %c16_125 = arith.constant 16 : index
        %c0_126 = arith.constant 0 : index
        %141 = vector.load %arg12[%140, %c16_125, %c0_126] : memref<8x120x128xf32, #tpu.memory_space<vmem>>, vector<1x80x128xf32>
        %142 = vector.shape_cast %141 : vector<1x80x128xf32> to vector<80x128xf32>
        %143 = vector.broadcast %139 : f32 to vector<80x128xf32>
        %144 = arith.mulf %143, %142 : vector<80x128xf32>
        %145 = arith.addf %133, %144 : vector<80x128xf32>
        %c9_i32_127 = arith.constant 9 : i32
        %146 = arith.muli %arg15, %c9_i32_127 : i32
        %c3_i32_128 = arith.constant 3 : i32
        %147 = arith.addi %146, %c3_i32_128 : i32
        %c1_i32_129 = arith.constant 1 : i32
        %148 = arith.addi %147, %c1_i32_129 : i32
        %149 = arith.index_cast %84 : i32 to index
        %150 = arith.index_cast %148 : i32 to index
        %151 = memref.load %arg4[%149, %150] : memref<16x72xf32, #tpu.memory_space<smem>>
        %152 = arith.index_cast %arg15 : i32 to index
        %c18 = arith.constant 18 : index
        %c0_130 = arith.constant 0 : index
        %153 = vector.load %arg12[%152, %c18, %c0_130] : memref<8x120x128xf32, #tpu.memory_space<vmem>>, vector<1x80x128xf32>
        %154 = vector.shape_cast %153 : vector<1x80x128xf32> to vector<80x128xf32>
        %155 = vector.broadcast %151 : f32 to vector<80x128xf32>
        %156 = arith.mulf %155, %154 : vector<80x128xf32>
        %157 = arith.addf %145, %156 : vector<80x128xf32>
        %c9_i32_131 = arith.constant 9 : i32
        %158 = arith.muli %arg15, %c9_i32_131 : i32
        %c3_i32_132 = arith.constant 3 : i32
        %159 = arith.addi %158, %c3_i32_132 : i32
        %c2_i32_133 = arith.constant 2 : i32
        %160 = arith.addi %159, %c2_i32_133 : i32
        %161 = arith.index_cast %84 : i32 to index
        %162 = arith.index_cast %160 : i32 to index
        %163 = memref.load %arg4[%161, %162] : memref<16x72xf32, #tpu.memory_space<smem>>
        %164 = arith.index_cast %arg15 : i32 to index
        %c20 = arith.constant 20 : index
        %c0_134 = arith.constant 0 : index
        %165 = vector.load %arg12[%164, %c20, %c0_134] : memref<8x120x128xf32, #tpu.memory_space<vmem>>, vector<1x80x128xf32>
        %166 = vector.shape_cast %165 : vector<1x80x128xf32> to vector<80x128xf32>
        %167 = vector.broadcast %163 : f32 to vector<80x128xf32>
        %168 = arith.mulf %167, %166 : vector<80x128xf32>
        %169 = arith.addf %157, %168 : vector<80x128xf32>
        %c9_i32_135 = arith.constant 9 : i32
        %170 = arith.muli %arg15, %c9_i32_135 : i32
        %c6_i32 = arith.constant 6 : i32
        %171 = arith.addi %170, %c6_i32 : i32
        %c0_i32_136 = arith.constant 0 : i32
        %172 = arith.addi %171, %c0_i32_136 : i32
        %173 = arith.index_cast %84 : i32 to index
        %174 = arith.index_cast %172 : i32 to index
        %175 = memref.load %arg4[%173, %174] : memref<16x72xf32, #tpu.memory_space<smem>>
        %176 = arith.index_cast %arg15 : i32 to index
        %c32_137 = arith.constant 32 : index
        %c0_138 = arith.constant 0 : index
        %177 = vector.load %arg12[%176, %c32_137, %c0_138] : memref<8x120x128xf32, #tpu.memory_space<vmem>>, vector<1x80x128xf32>
        %178 = vector.shape_cast %177 : vector<1x80x128xf32> to vector<80x128xf32>
        %179 = vector.broadcast %175 : f32 to vector<80x128xf32>
        %180 = arith.mulf %179, %178 : vector<80x128xf32>
        %181 = arith.addf %169, %180 : vector<80x128xf32>
        %c9_i32_139 = arith.constant 9 : i32
        %182 = arith.muli %arg15, %c9_i32_139 : i32
        %c6_i32_140 = arith.constant 6 : i32
        %183 = arith.addi %182, %c6_i32_140 : i32
        %c1_i32_141 = arith.constant 1 : i32
        %184 = arith.addi %183, %c1_i32_141 : i32
        %185 = arith.index_cast %84 : i32 to index
        %186 = arith.index_cast %184 : i32 to index
        %187 = memref.load %arg4[%185, %186] : memref<16x72xf32, #tpu.memory_space<smem>>
        %188 = arith.index_cast %arg15 : i32 to index
        %c34 = arith.constant 34 : index
        %c0_142 = arith.constant 0 : index
        %189 = vector.load %arg12[%188, %c34, %c0_142] : memref<8x120x128xf32, #tpu.memory_space<vmem>>, vector<1x80x128xf32>
        %190 = vector.shape_cast %189 : vector<1x80x128xf32> to vector<80x128xf32>
        %191 = vector.broadcast %187 : f32 to vector<80x128xf32>
        %192 = arith.mulf %191, %190 : vector<80x128xf32>
        %193 = arith.addf %181, %192 : vector<80x128xf32>
        %c9_i32_143 = arith.constant 9 : i32
        %194 = arith.muli %arg15, %c9_i32_143 : i32
        %c6_i32_144 = arith.constant 6 : i32
        %195 = arith.addi %194, %c6_i32_144 : i32
        %c2_i32_145 = arith.constant 2 : i32
        %196 = arith.addi %195, %c2_i32_145 : i32
        %197 = arith.index_cast %84 : i32 to index
        %198 = arith.index_cast %196 : i32 to index
        %199 = memref.load %arg4[%197, %198] : memref<16x72xf32, #tpu.memory_space<smem>>
        %200 = arith.index_cast %arg15 : i32 to index
        %c36 = arith.constant 36 : index
        %c0_146 = arith.constant 0 : index
        %201 = vector.load %arg12[%200, %c36, %c0_146] : memref<8x120x128xf32, #tpu.memory_space<vmem>>, vector<1x80x128xf32>
        %202 = vector.shape_cast %201 : vector<1x80x128xf32> to vector<80x128xf32>
        %203 = vector.broadcast %199 : f32 to vector<80x128xf32>
        %204 = arith.mulf %203, %202 : vector<80x128xf32>
        %205 = arith.addf %193, %204 : vector<80x128xf32>
        scf.yield %205 : vector<80x128xf32>
      }
      %c8_i32_109 = arith.constant 8 : i32
      %c80_i32 = arith.constant 80 : i32
      %88 = arith.muli %84, %c80_i32 : i32
      %89 = tpu.assume_multiple %88, 8 : i32
      %90 = arith.index_cast %84 : i32 to index
      %91 = memref.load %arg5[%90] : memref<16xf32, #tpu.memory_space<smem>>
      %92 = vector.broadcast %91 : f32 to vector<80x128xf32>
      %93 = arith.addf %87, %92 : vector<80x128xf32>
      %cst_110 = arith.constant 0.000000e+00 : f32
      %94 = vector.broadcast %cst_110 : f32 to vector<80x128xf32>
      %95 = arith.maximumf %93, %94 : vector<80x128xf32>
      %96 = arith.index_cast %89 : i32 to index
      %c0_111 = arith.constant 0 : index
      %97 = vector.load %arg13[%96, %c0_111] : memref<1280x128xf32, #tpu.memory_space<vmem>>, vector<80x128xf32>
      tpu.vector_store %arg13[%96, %c0_111], %95 {strides = array<i32>} : memref<1280x128xf32, #tpu.memory_space<vmem>>, vector<80x128xf32>,
    }
    %c16_i32_83 = arith.constant 16 : i32
    %c0_84 = arith.constant 0 : index
    %c0_85 = arith.constant 0 : index
    %60 = vector.load %arg6[%c0_84, %c0_85] : memref<32x1280xf32, #tpu.memory_space<vmem>>, vector<32x1280xf32>
    %c0_86 = arith.constant 0 : index
    %c0_87 = arith.constant 0 : index
    %61 = vector.load %arg13[%c0_86, %c0_87] : memref<1280x128xf32, #tpu.memory_space<vmem>>, vector<1280x128xf32>
    %cst_88 = arith.constant dense<0.000000e+00> : vector<32x128xf32>
    %62 = tpu.matmul %60, %61, %cst_88 {dimension_numbers = #tpu.dot_dimension_numbers<[1], [0], [0], [1], [0, 0, 1, 1], [], []>} : vector<32x1280xf32>, vector<1280x128xf32>, vector<32x128xf32> -> vector<32x128xf32>
    %c0_89 = arith.constant 0 : index
    %c0_90 = arith.constant 0 : index
    %63 = vector.load %arg7[%c0_89, %c0_90] : memref<32x1xf32, #tpu.memory_space<vmem>>, vector<32x1xf32>
    %64 = vector.broadcast %63 : vector<32x1xf32> to vector<32x128xf32>
    %65 = arith.addf %62, %64 : vector<32x128xf32>
    %cst_91 = arith.constant 0.000000e+00 : f32
    %66 = vector.broadcast %cst_91 : f32 to vector<32x128xf32>
    %67 = arith.maximumf %65, %66 : vector<32x128xf32>
    %c0_92 = arith.constant 0 : index
    %c0_93 = arith.constant 0 : index
    %68 = vector.load %arg8[%c0_92, %c0_93] : memref<8x32xf32, #tpu.memory_space<vmem>>, vector<8x32xf32>
    %cst_94 = arith.constant dense<0.000000e+00> : vector<8x128xf32>
    %69 = tpu.matmul %68, %67, %cst_94 {dimension_numbers = #tpu.dot_dimension_numbers<[1], [0], [0], [1], [0, 0, 1, 1], [], []>} : vector<8x32xf32>, vector<32x128xf32>, vector<8x128xf32> -> vector<8x128xf32>
    %c0_95 = arith.constant 0 : index
    %c0_96 = arith.constant 0 : index
    %70 = vector.load %arg9[%c0_95, %c0_96] : memref<8x1xf32, #tpu.memory_space<vmem>>, vector<8x1xf32>
    %71 = vector.broadcast %70 : vector<8x1xf32> to vector<8x128xf32>
    %72 = arith.addf %69, %71 : vector<8x128xf32>
    %cst_97 = arith.constant 0.000000e+00 : f32
    %73 = vector.broadcast %cst_97 : f32 to vector<8x128xf32>
    %74 = arith.subf %73, %72 : vector<8x128xf32>
    %75 = math.exp %74 : vector<8x128xf32>
    %cst_98 = arith.constant 1.000000e+00 : f32
    %76 = vector.broadcast %cst_98 : f32 to vector<8x128xf32>
    %77 = arith.addf %76, %75 : vector<8x128xf32>
    %cst_99 = arith.constant 1.000000e+00 : f32
    %78 = vector.broadcast %cst_99 : f32 to vector<8x128xf32>
    %79 = arith.divf %78, %77 : vector<8x128xf32>
    %c0_100 = arith.constant 0 : index
    %c0_101 = arith.constant 0 : index
    %c0_102 = arith.constant 0 : index
    %80 = vector.load %arg10[%c0_100, %c0_101, %c0_102] : memref<1x8x128xf32, #tpu.memory_space<vmem>>, vector<1x8x128xf32>
    %81 = vector.shape_cast %80 : vector<1x8x128xf32> to vector<8x128xf32>
    %82 = vector.shape_cast %79 : vector<8x128xf32> to vector<1x8x128xf32>
    tpu.vector_store %arg10[%c0_100, %c0_101, %c0_102], %82 {strides = array<i32>} : memref<1x8x128xf32, #tpu.memory_space<vmem>>, vector<1x8x128xf32>,
    return
  }
  func.func @transform_0(%arg0: i32) -> (i32, i32, i32, i32) {
    %c0_i32 = arith.constant 0 : i32
    %c0_i32_0 = arith.constant 0 : i32
    %c0_i32_1 = arith.constant 0 : i32
    %c0_i32_2 = arith.constant 0 : i32
    return %arg0, %c0_i32, %c0_i32_0, %c0_i32_1 : i32, i32, i32, i32
  }
  func.func @transform_1(%arg0: i32) -> (i32, i32) {
    %c0_i32 = arith.constant 0 : i32
    %c0_i32_0 = arith.constant 0 : i32
    %c0_i32_1 = arith.constant 0 : i32
    return %c0_i32, %c0_i32_0 : i32, i32
  }
  func.func @transform_2(%arg0: i32) -> i32 {
    %c0_i32 = arith.constant 0 : i32
    %c0_i32_0 = arith.constant 0 : i32
    return %c0_i32 : i32
  }
  func.func @transform_3(%arg0: i32) -> (i32, i32) {
    %c0_i32 = arith.constant 0 : i32
    %c0_i32_0 = arith.constant 0 : i32
    %c0_i32_1 = arith.constant 0 : i32
    return %c0_i32, %c0_i32_0 : i32, i32
  }
  func.func @transform_4(%arg0: i32) -> i32 {
    %c0_i32 = arith.constant 0 : i32
    %c0_i32_0 = arith.constant 0 : i32
    return %c0_i32 : i32
  }
  func.func @transform_5(%arg0: i32) -> (i32, i32) {
    %c0_i32 = arith.constant 0 : i32
    %c0_i32_0 = arith.constant 0 : i32
    %c0_i32_1 = arith.constant 0 : i32
    return %c0_i32, %c0_i32_0 : i32, i32
  }
  func.func @transform_6(%arg0: i32) -> (i32, i32) {
    %c0_i32 = arith.constant 0 : i32
    %c0_i32_0 = arith.constant 0 : i32
    %c0_i32_1 = arith.constant 0 : i32
    return %c0_i32, %c0_i32_0 : i32, i32
  }
  func.func @transform_7(%arg0: i32) -> (i32, i32) {
    %c0_i32 = arith.constant 0 : i32
    %c0_i32_0 = arith.constant 0 : i32
    %c0_i32_1 = arith.constant 0 : i32
    return %c0_i32, %c0_i32_0 : i32, i32
  }
  func.func @transform_8(%arg0: i32) -> (i32, i32) {
    %c0_i32 = arith.constant 0 : i32
    %c0_i32_0 = arith.constant 0 : i32
    %c0_i32_1 = arith.constant 0 : i32
    return %c0_i32, %c0_i32_0 : i32, i32
  }
  func.func @transform_9(%arg0: i32) -> (i32, i32, i32) {
    %c0_i32 = arith.constant 0 : i32
    %c0_i32_0 = arith.constant 0 : i32
    %c0_i32_1 = arith.constant 0 : i32
    return %arg0, %c0_i32, %c0_i32_0 : i32, i32, i32
  }
}

</mosaic_0001>

<llo_original>
// kernel: _net_forward_impl.1
$region0: #{_net_forward_impl.1}
  #allocation0 [shape = 'u32[]', space=smem, size = 0x4, offset = 0x4, fixed_abs, tag = 'smem constant byte address 0x4 - core index']
  #allocation1 [shape = 'u32[144,128]{1,0:T(1,128)}', space=vmem, size = 0x12000, scoped, tag = 'internal scratch']
  #allocation2 [shape = 'f32[8,232,128]{2,1,0:T(8,128)}', space=vmem, size = 0xe8000, scoped, tag = 'scratch operand']
  #allocation3 [shape = 'f32[8,120,128]{2,1,0:T(8,128)}', space=vmem, size = 0x78000, scoped, tag = 'scratch operand']
  #allocation4 [shape = 'f32[1280,128]{1,0:T(8,128)}', space=vmem, size = 0xa0000, scoped, tag = 'scratch operand']
  %s0 = inlined_call_operand.vmem [shape: f32[1,4,272,128], index: 0, kind: input, shape index: {}]
  %s1 = inlined_call_operand.vmem [shape: f32[8,36], index: 1, kind: input, shape index: {}]
  %s2 = inlined_call_operand.vmem [shape: f32[8], index: 2, kind: input, shape index: {}]
  %s3 = inlined_call_operand.vmem [shape: f32[16,72], index: 3, kind: input, shape index: {}]
  %s4 = inlined_call_operand.vmem [shape: f32[16], index: 4, kind: input, shape index: {}]
  %s5 = inlined_call_operand.vmem [shape: f32[32,1280], index: 5, kind: input, shape index: {}]
  %s6 = inlined_call_operand.vmem [shape: f32[32,1], index: 6, kind: input, shape index: {}]
  %s7 = inlined_call_operand.vmem [shape: f32[8,32], index: 7, kind: input, shape index: {}]
  %s8 = inlined_call_operand.vmem [shape: f32[8,1], index: 8, kind: input, shape index: {}]
  %s9 = inlined_call_operand.vmem [shape: f32[1,8,128], index: 9, kind: output, shape index: {}]
  %s10 = sld [smem:[#allocation0]]
  $region90: #{_net_forward_impl.1} parent=0
    _
  %s12 = ssub.s32 1, %s10
  %s13 = scalar_select 0, %s12, %s10
  $region1: #{_net_forward_impl.1} parent=0
    #allocation5 [shape = 'u8[4096]{0}', space=smem, size = 0x1000, scoped, tag = 'input window, operand 1, single buffered']
    #allocation6 [shape = 's32[1]{0}', space=sflag, size = 0x4, scoped, tag = 'scoped memory for _net_forward_impl.1']
    #allocation7 [shape = 'u8[512]{0}', space=smem, size = 0x200, scoped, tag = 'input window, operand 2, single buffered']
    #allocation8 [shape = 's32[1]{0}', space=sflag, size = 0x4, scoped, tag = 'scoped memory for _net_forward_impl.1']
    #allocation9 [shape = 'u8[8192]{0}', space=smem, size = 0x2000, scoped, tag = 'input window, operand 3, single buffered']
    #allocation10 [shape = 'u8[512]{0}', space=smem, size = 0x200, scoped, tag = 'input window, operand 4, single buffered']
    #allocation11 [shape = 's32[1]{0}', space=sflag, size = 0x4, scoped, tag = 'scoped memory for _net_forward_impl.1']
    %14 = vsyncpa [#allocation6], 0
    %15 = vsyncpa [#allocation8], 0
    %16 = vsyncpa [#allocation11], 0
    // Predicated region
    $region2: #{_net_forward_impl.1} parent=1 // pred_check
      _
    $region3: #{_net_forward_impl.1} parent=1 // pred_check_branch
      %18 = sbr.rel (0) target = $region5
    $region4: #{_net_forward_impl.1} parent=1 // pred_region
      _
    $region5: #{_net_forward_impl.1} parent=1 // pred_fallthru
      _
    // Predicated region
    $region6: #{_net_forward_impl.1} parent=1 // pred_check
      _
    $region7: #{_net_forward_impl.1} parent=1 // pred_check_branch
      %20 = sbr.rel (0) target = $region9
    $region8: #{_net_forward_impl.1} parent=1 // pred_region
      %s22 = ssub.s32 128, 128
      %23 = vsyncadd [#allocation6], %s22
      %s25 = sshll.u32 %s1, 4
      %s26 = int_to_ptr.vmem [resolvable:$true] %s25
      %28 = dma.vmem_to_smem %s26, 128, [#allocation5], [#allocation6]
    $region9: #{_net_forward_impl.1} parent=1 // pred_fallthru
      _
    // Predicated region
    $region10: #{_net_forward_impl.1} parent=1 // pred_check
      _
    $region11: #{_net_forward_impl.1} parent=1 // pred_check_branch
      %30 = sbr.rel (0) target = $region13
    $region12: #{_net_forward_impl.1} parent=1 // pred_region
      %s32 = ssub.s32 16, 16
      %33 = vsyncadd [#allocation8], %s32
      %s35 = sshll.u32 %s2, 4
      %s36 = int_to_ptr.vmem [resolvable:$true] %s35
      %38 = dma.vmem_to_smem %s36, 16, [#allocation7], [#allocation8]
    $region13: #{_net_forward_impl.1} parent=1 // pred_fallthru
      _
    // Predicated region
    $region14: #{_net_forward_impl.1} parent=1 // pred_check
      _
    $region15: #{_net_forward_impl.1} parent=1 // pred_check_branch
      %40 = sbr.rel (0) target = $region17
    $region16: #{_net_forward_impl.1} parent=1 // pred_region
      %s42 = ssub.s32 256, 256
      %43 = vsyncadd [#allocation8], %s42
      %s44 = sshll.u32 %s3, 4
      %s45 = int_to_ptr.vmem [resolvable:$true] %s44
      %50 = dma.vmem_to_smem %s45, 256, [#allocation9], [#allocation8], 128, 128, 8
    $region17: #{_net_forward_impl.1} parent=1 // pred_fallthru
      _
    // Predicated region
    $region18: #{_net_forward_impl.1} parent=1 // pred_check
      _
    $region19: #{_net_forward_impl.1} parent=1 // pred_check_branch
      %52 = sbr.rel (0) target = $region21
    $region20: #{_net_forward_impl.1} parent=1 // pred_region
      %s54 = ssub.s32 16, 16
      %55 = vsyncadd [#allocation11], %s54
      %s57 = sshll.u32 %s4, 4
      %s58 = int_to_ptr.vmem [resolvable:$true] %s57
      %60 = dma.vmem_to_smem %s58, 16, [#allocation10], [#allocation11]
    $region21: #{_net_forward_impl.1} parent=1 // pred_fallthru
      _
    // Predicated region
    $region22: #{_net_forward_impl.1} parent=1 // pred_check
      _
    $region23: #{_net_forward_impl.1} parent=1 // pred_check_branch
      %62 = sbr.rel (0) target = $region25
    $region24: #{_net_forward_impl.1} parent=1 // pred_region
      _
    $region25: #{_net_forward_impl.1} parent=1 // pred_fallthru
      _
    // Predicated region
    $region26: #{_net_forward_impl.1} parent=1 // pred_check
      _
    $region27: #{_net_forward_impl.1} parent=1 // pred_check_branch
      %64 = sbr.rel (0) target = $region29
    $region28: #{_net_forward_impl.1} parent=1 // pred_region
      _
    $region29: #{_net_forward_impl.1} parent=1 // pred_fallthru
      _
    // Predicated region
    $region30: #{_net_forward_impl.1} parent=1 // pred_check
      _
    $region31: #{_net_forward_impl.1} parent=1 // pred_check_branch
      %66 = sbr.rel (0) target = $region33
    $region32: #{_net_forward_impl.1} parent=1 // pred_region
      _
    $region33: #{_net_forward_impl.1} parent=1 // pred_fallthru
      _
    // Predicated region
    $region34: #{_net_forward_impl.1} parent=1 // pred_check
      _
    $region35: #{_net_forward_impl.1} parent=1 // pred_check_branch
      %68 = sbr.rel (0) target = $region37
    $region36: #{_net_forward_impl.1} parent=1 // pred_region
      _
    $region37: #{_net_forward_impl.1} parent=1 // pred_fallthru
      _
    // Predicated region
    $region38: #{_net_forward_impl.1} parent=1 // pred_check
      _
    $region39: #{_net_forward_impl.1} parent=1 // pred_check_branch
      %70 = sbr.rel (0) target = $region41
    $region40: #{_net_forward_impl.1} parent=1 // pred_region
      %71 = dma.done [#allocation6], 128
    $region41: #{_net_forward_impl.1} parent=1 // pred_fallthru
      _
    // Predicated region
    $region42: #{_net_forward_impl.1} parent=1 // pred_check
      _
    $region43: #{_net_forward_impl.1} parent=1 // pred_check_branch
      %73 = sbr.rel (0) target = $region45
    $region44: #{_net_forward_impl.1} parent=1 // pred_region
      %74 = dma.done [#allocation8], 16
    $region45: #{_net_forward_impl.1} parent=1 // pred_fallthru
      _
    // Predicated region
    $region46: #{_net_forward_impl.1} parent=1 // pred_check
      _
    $region47: #{_net_forward_impl.1} parent=1 // pred_check_branch
      %76 = sbr.rel (0) target = $region49
    $region48: #{_net_forward_impl.1} parent=1 // pred_region
      %77 = dma.done [#allocation8], 256
    $region49: #{_net_forward_impl.1} parent=1 // pred_fallthru
      _
    // Predicated region
    $region50: #{_net_forward_impl.1} parent=1 // pred_check
      _
    $region51: #{_net_forward_impl.1} parent=1 // pred_check_branch
      %79 = sbr.rel (0) target = $region53
    $region52: #{_net_forward_impl.1} parent=1 // pred_region
      %80 = dma.done [#allocation11], 16
    $region53: #{_net_forward_impl.1} parent=1 // pred_fallthru
      _
    %81 = sfence
    loop: start=0, step=1, limit=8
    $region54: #{_net_forward_impl.1} parent=1 // loop_pre_header
      _
    $region55: #{_net_forward_impl.1} parent=1 // loop_header
      %s83 = sphi 0, %s87
      %p84 = scmp.ge.s32.totalorder %s83, 8
    $region56: #{_net_forward_impl.1} parent=1 // loop_header_branch
      %86 = sbr.rel (%p84) target = $region60
    $region57: #{_net_forward_impl.1} parent=1 // loop_body
      loop: start=0, step=1, limit=4
      $region61: #{_net_forward_impl.1} parent=57 // loop_pre_header
        _
      $region62: #{_net_forward_impl.1} parent=57 // loop_header
        %s89 = sphi 0, %s93
        %p90 = scmp.ge.s32.totalorder %s89, 4
        %v94 = vphi 0.0, %v969
        %v95 = vphi 0.0, %v970
        %v96 = vphi 0.0, %v971
        %v97 = vphi 0.0, %v972
        %v98 = vphi 0.0, %v973
        %v99 = vphi 0.0, %v974
        %v100 = vphi 0.0, %v975
        %v101 = vphi 0.0, %v976
        %v102 = vphi 0.0, %v977
        %v103 = vphi 0.0, %v978
        %v104 = vphi 0.0, %v979
        %v105 = vphi 0.0, %v980
        %v106 = vphi 0.0, %v981
        %v107 = vphi 0.0, %v982
        %v108 = vphi 0.0, %v983
        %v109 = vphi 0.0, %v984
        %v110 = vphi 0.0, %v985
        %v111 = vphi 0.0, %v986
        %v112 = vphi 0.0, %v987
        %v113 = vphi 0.0, %v988
        %v114 = vphi 0.0, %v989
        %v115 = vphi 0.0, %v990
        %v116 = vphi 0.0, %v991
        %v117 = vphi 0.0, %v992
        %v118 = vphi 0.0, %v993
        %v119 = vphi 0.0, %v994
        %v120 = vphi 0.0, %v995
        %v121 = vphi 0.0, %v996
        %v122 = vphi 0.0, %v997
      $region63: #{_net_forward_impl.1} parent=57 // loop_header_branch
        %92 = sbr.rel (%p90) target = $region67
      $region64: #{_net_forward_impl.1} parent=57 // loop_body
        %s123 = smul.u32 %s89, 9
        %s124 = sshra.s32 %s123, 7
        %s125 = sand.u32 %s123, 127
        %s126 = sadd.s32 %s124, %s83
        %s127 = smul.u32 %s126, 128
        %s128 = sshra.s32 %s123, 7
        %s129 = sand.u32 %s123, 127
        %s130 = sadd.s32 %s127, %s129
        %s131 = sld [smem:[#allocation5 + %s130]]
        %s132 = smul.u32 %s89, 272
        %s133 = scalar_lea.vmem %s0, %s132
        %v134 = vld [vmem:[%s133] sm:$0xff]
        %v135 = vld [vmem:[%s133 + $0x8] sm:$0xff]
        %v136 = vld [vmem:[%s133 + $0x10] sm:$0xff]
        %v137 = vld [vmem:[%s133 + $0x18] sm:$0xff]
        %v138 = vld [vmem:[%s133 + $0x20] sm:$0xff]
        %v139 = vld [vmem:[%s133 + $0x28] sm:$0xff]
        %v140 = vld [vmem:[%s133 + $0x30] sm:$0xff]
        %v141 = vld [vmem:[%s133 + $0x38] sm:$0xff]
        %v142 = vld [vmem:[%s133 + $0x40] sm:$0xff]
        %v143 = vld [vmem:[%s133 + $0x48] sm:$0xff]
        %v144 = vld [vmem:[%s133 + $0x50] sm:$0xff]
        %v145 = vld [vmem:[%s133 + $0x58] sm:$0xff]
        %v146 = vld [vmem:[%s133 + $0x60] sm:$0xff]
        %v147 = vld [vmem:[%s133 + $0x68] sm:$0xff]
        %v148 = vld [vmem:[%s133 + $0x70] sm:$0xff]
        %v149 = vld [vmem:[%s133 + $0x78] sm:$0xff]
        %v150 = vld [vmem:[%s133 + $0x80] sm:$0xff]
        %v151 = vld [vmem:[%s133 + $0x88] sm:$0xff]
        %v152 = vld [vmem:[%s133 + $0x90] sm:$0xff]
        %v153 = vld [vmem:[%s133 + $0x98] sm:$0xff]
        %v154 = vld [vmem:[%s133 + $0xa0] sm:$0xff]
        %v155 = vld [vmem:[%s133 + $0xa8] sm:$0xff]
        %v156 = vld [vmem:[%s133 + $0xb0] sm:$0xff]
        %v157 = vld [vmem:[%s133 + $0xb8] sm:$0xff]
        %v158 = vld [vmem:[%s133 + $0xc0] sm:$0xff]
        %v159 = vld [vmem:[%s133 + $0xc8] sm:$0xff]
        %v160 = vld [vmem:[%s133 + $0xd0] sm:$0xff]
        %v161 = vld [vmem:[%s133 + $0xd8] sm:$0xff]
        %v162 = vld [vmem:[%s133 + $0xe0] sm:$0xff]
        %v163 = vstv %s131
        %v164 = vmul.f32 %v163, %v134
        %v165 = vmul.f32 %v163, %v135
        %v166 = vmul.f32 %v163, %v136
        %v167 = vmul.f32 %v163, %v137
        %v168 = vmul.f32 %v163, %v138
        %v169 = vmul.f32 %v163, %v139
        %v170 = vmul.f32 %v163, %v140
        %v171 = vmul.f32 %v163, %v141
        %v172 = vmul.f32 %v163, %v142
        %v173 = vmul.f32 %v163, %v143
        %v174 = vmul.f32 %v163, %v144
        %v175 = vmul.f32 %v163, %v145
        %v176 = vmul.f32 %v163, %v146
        %v177 = vmul.f32 %v163, %v147
        %v178 = vmul.f32 %v163, %v148
        %v179 = vmul.f32 %v163, %v149
        %v180 = vmul.f32 %v163, %v150
        %v181 = vmul.f32 %v163, %v151
        %v182 = vmul.f32 %v163, %v152
        %v183 = vmul.f32 %v163, %v153
        %v184 = vmul.f32 %v163, %v154
        %v185 = vmul.f32 %v163, %v155
        %v186 = vmul.f32 %v163, %v156
        %v187 = vmul.f32 %v163, %v157
        %v188 = vmul.f32 %v163, %v158
        %v189 = vmul.f32 %v163, %v159
        %v190 = vmul.f32 %v163, %v160
        %v191 = vmul.f32 %v163, %v161
        %v192 = vmul.f32 %v163, %v162
        %v193 = vadd.f32 %v94, %v164
        %v194 = vadd.f32 %v95, %v165
        %v195 = vadd.f32 %v96, %v166
        %v196 = vadd.f32 %v97, %v167
        %v197 = vadd.f32 %v98, %v168
        %v198 = vadd.f32 %v99, %v169
        %v199 = vadd.f32 %v100, %v170
        %v200 = vadd.f32 %v101, %v171
        %v201 = vadd.f32 %v102, %v172
        %v202 = vadd.f32 %v103, %v173
        %v203 = vadd.f32 %v104, %v174
        %v204 = vadd.f32 %v105, %v175
        %v205 = vadd.f32 %v106, %v176
        %v206 = vadd.f32 %v107, %v177
        %v207 = vadd.f32 %v108, %v178
        %v208 = vadd.f32 %v109, %v179
        %v209 = vadd.f32 %v110, %v180
        %v210 = vadd.f32 %v111, %v181
        %v211 = vadd.f32 %v112, %v182
        %v212 = vadd.f32 %v113, %v183
        %v213 = vadd.f32 %v114, %v184
        %v214 = vadd.f32 %v115, %v185
        %v215 = vadd.f32 %v116, %v186
        %v216 = vadd.f32 %v117, %v187
        %v217 = vadd.f32 %v118, %v188
        %v218 = vadd.f32 %v119, %v189
        %v219 = vadd.f32 %v120, %v190
        %v220 = vadd.f32 %v121, %v191
        %v221 = vadd.f32 %v122, %v192
        %s222 = sadd.s32 %s123, 1
        %s223 = sshra.s32 %s222, 7
        %s224 = sand.u32 %s222, 127
        %s225 = sadd.s32 %s223, %s83
        %s226 = smul.u32 %s225, 128
        %s227 = sshra.s32 %s222, 7
        %s228 = sand.u32 %s222, 127
        %s229 = sadd.s32 %s226, %s228
        %s230 = sld [smem:[#allocation5 + %s229]]
        %v231 = vld [vmem:[%s133 + $0x1] sm:$0xff]
        %v232 = vld [vmem:[%s133 + $0x9] sm:$0xff]
        %v233 = vld [vmem:[%s133 + $0x11] sm:$0xff]
        %v234 = vld [vmem:[%s133 + $0x19] sm:$0xff]
        %v235 = vld [vmem:[%s133 + $0x21] sm:$0xff]
        %v236 = vld [vmem:[%s133 + $0x29] sm:$0xff]
        %v237 = vld [vmem:[%s133 + $0x31] sm:$0xff]
        %v238 = vld [vmem:[%s133 + $0x39] sm:$0xff]
        %v239 = vld [vmem:[%s133 + $0x41] sm:$0xff]
        %v240 = vld [vmem:[%s133 + $0x49] sm:$0xff]
        %v241 = vld [vmem:[%s133 + $0x51] sm:$0xff]
        %v242 = vld [vmem:[%s133 + $0x59] sm:$0xff]
        %v243 = vld [vmem:[%s133 + $0x61] sm:$0xff]
        %v244 = vld [vmem:[%s133 + $0x69] sm:$0xff]
        %v245 = vld [vmem:[%s133 + $0x71] sm:$0xff]
        %v246 = vld [vmem:[%s133 + $0x79] sm:$0xff]
        %v247 = vld [vmem:[%s133 + $0x81] sm:$0xff]
        %v248 = vld [vmem:[%s133 + $0x89] sm:$0xff]
        %v249 = vld [vmem:[%s133 + $0x91] sm:$0xff]
        %v250 = vld [vmem:[%s133 + $0x99] sm:$0xff]
        %v251 = vld [vmem:[%s133 + $0xa1] sm:$0xff]
        %v252 = vld [vmem:[%s133 + $0xa9] sm:$0xff]
        %v253 = vld [vmem:[%s133 + $0xb1] sm:$0xff]
        %v254 = vld [vmem:[%s133 + $0xb9] sm:$0xff]
        %v255 = vld [vmem:[%s133 + $0xc1] sm:$0xff]
        %v256 = vld [vmem:[%s133 + $0xc9] sm:$0xff]
        %v257 = vld [vmem:[%s133 + $0xd1] sm:$0xff]
        %v258 = vld [vmem:[%s133 + $0xd9] sm:$0xff]
        %v259 = vld [vmem:[%s133 + $0xe1] sm:$0xff]
        %v260 = vstv %s230
        %v261 = vmul.f32 %v260, %v231
        %v262 = vmul.f32 %v260, %v232
        %v263 = vmul.f32 %v260, %v233
        %v264 = vmul.f32 %v260, %v234
        %v265 = vmul.f32 %v260, %v235
        %v266 = vmul.f32 %v260, %v236
        %v267 = vmul.f32 %v260, %v237
        %v268 = vmul.f32 %v260, %v238
        %v269 = vmul.f32 %v260, %v239
        %v270 = vmul.f32 %v260, %v240
        %v271 = vmul.f32 %v260, %v241
        %v272 = vmul.f32 %v260, %v242
        %v273 = vmul.f32 %v260, %v243
        %v274 = vmul.f32 %v260, %v244
        %v275 = vmul.f32 %v260, %v245
        %v276 = vmul.f32 %v260, %v246
        %v277 = vmul.f32 %v260, %v247
        %v278 = vmul.f32 %v260, %v248
        %v279 = vmul.f32 %v260, %v249
        %v280 = vmul.f32 %v260, %v250
        %v281 = vmul.f32 %v260, %v251
        %v282 = vmul.f32 %v260, %v252
        %v283 = vmul.f32 %v260, %v253
        %v284 = vmul.f32 %v260, %v254
        %v285 = vmul.f32 %v260, %v255
        %v286 = vmul.f32 %v260, %v256
        %v287 = vmul.f32 %v260, %v257
        %v288 = vmul.f32 %v260, %v258
        %v289 = vmul.f32 %v260, %v259
        %v290 = vadd.f32 %v193, %v261
        %v291 = vadd.f32 %v194, %v262
        %v292 = vadd.f32 %v195, %v263
        %v293 = vadd.f32 %v196, %v264
        %v294 = vadd.f32 %v197, %v265
        %v295 = vadd.f32 %v198, %v266
        %v296 = vadd.f32 %v199, %v267
        %v297 = vadd.f32 %v200, %v268
        %v298 = vadd.f32 %v201, %v269
        %v299 = vadd.f32 %v202, %v270
        %v300 = vadd.f32 %v203, %v271
        %v301 = vadd.f32 %v204, %v272
        %v302 = vadd.f32 %v205, %v273
        %v303 = vadd.f32 %v206, %v274
        %v304 = vadd.f32 %v207, %v275
        %v305 = vadd.f32 %v208, %v276
        %v306 = vadd.f32 %v209, %v277
        %v307 = vadd.f32 %v210, %v278
        %v308 = vadd.f32 %v211, %v279
        %v309 = vadd.f32 %v212, %v280
        %v310 = vadd.f32 %v213, %v281
        %v311 = vadd.f32 %v214, %v282
        %v312 = vadd.f32 %v215, %v283
        %v313 = vadd.f32 %v216, %v284
        %v314 = vadd.f32 %v217, %v285
        %v315 = vadd.f32 %v218, %v286
        %v316 = vadd.f32 %v219, %v287
        %v317 = vadd.f32 %v220, %v288
        %v318 = vadd.f32 %v221, %v289
        %s319 = sadd.s32 %s123, 2
        %s320 = sshra.s32 %s319, 7
        %s321 = sand.u32 %s319, 127
        %s322 = sadd.s32 %s320, %s83
        %s323 = smul.u32 %s322, 128
        %s324 = sshra.s32 %s319, 7
        %s325 = sand.u32 %s319, 127
        %s326 = sadd.s32 %s323, %s325
        %s327 = sld [smem:[#allocation5 + %s326]]
        %v328 = vld [vmem:[%s133 + $0x2] sm:$0xff]
        %v329 = vld [vmem:[%s133 + $0xa] sm:$0xff]
        %v330 = vld [vmem:[%s133 + $0x12] sm:$0xff]
        %v331 = vld [vmem:[%s133 + $0x1a] sm:$0xff]
        %v332 = vld [vmem:[%s133 + $0x22] sm:$0xff]
        %v333 = vld [vmem:[%s133 + $0x2a] sm:$0xff]
        %v334 = vld [vmem:[%s133 + $0x32] sm:$0xff]
        %v335 = vld [vmem:[%s133 + $0x3a] sm:$0xff]
        %v336 = vld [vmem:[%s133 + $0x42] sm:$0xff]
        %v337 = vld [vmem:[%s133 + $0x4a] sm:$0xff]
        %v338 = vld [vmem:[%s133 + $0x52] sm:$0xff]
        %v339 = vld [vmem:[%s133 + $0x5a] sm:$0xff]
        %v340 = vld [vmem:[%s133 + $0x62] sm:$0xff]
        %v341 = vld [vmem:[%s133 + $0x6a] sm:$0xff]
        %v342 = vld [vmem:[%s133 + $0x72] sm:$0xff]
        %v343 = vld [vmem:[%s133 + $0x7a] sm:$0xff]
        %v344 = vld [vmem:[%s133 + $0x82] sm:$0xff]
        %v345 = vld [vmem:[%s133 + $0x8a] sm:$0xff]
        %v346 = vld [vmem:[%s133 + $0x92] sm:$0xff]
        %v347 = vld [vmem:[%s133 + $0x9a] sm:$0xff]
        %v348 = vld [vmem:[%s133 + $0xa2] sm:$0xff]
        %v349 = vld [vmem:[%s133 + $0xaa] sm:$0xff]
        %v350 = vld [vmem:[%s133 + $0xb2] sm:$0xff]
        %v351 = vld [vmem:[%s133 + $0xba] sm:$0xff]
        %v352 = vld [vmem:[%s133 + $0xc2] sm:$0xff]
        %v353 = vld [vmem:[%s133 + $0xca] sm:$0xff]
        %v354 = vld [vmem:[%s133 + $0xd2] sm:$0xff]
        %v355 = vld [vmem:[%s133 + $0xda] sm:$0xff]
        %v356 = vld [vmem:[%s133 + $0xe2] sm:$0xff]
        %v357 = vstv %s327
        %v358 = vmul.f32 %v357, %v328
        %v359 = vmul.f32 %v357, %v329
        %v360 = vmul.f32 %v357, %v330
        %v361 = vmul.f32 %v357, %v331
        %v362 = vmul.f32 %v357, %v332
        %v363 = vmul.f32 %v357, %v333
        %v364 = vmul.f32 %v357, %v334
        %v365 = vmul.f32 %v357, %v335
        %v366 = vmul.f32 %v357, %v336
        %v367 = vmul.f32 %v357, %v337
        %v368 = vmul.f32 %v357, %v338
        %v369 = vmul.f32 %v357, %v339
        %v370 = vmul.f32 %v357, %v340
        %v371 = vmul.f32 %v357, %v341
        %v372 = vmul.f32 %v357, %v342
        %v373 = vmul.f32 %v357, %v343
        %v374 = vmul.f32 %v357, %v344
        %v375 = vmul.f32 %v357, %v345
        %v376 = vmul.f32 %v357, %v346
        %v377 = vmul.f32 %v357, %v347
        %v378 = vmul.f32 %v357, %v348
        %v379 = vmul.f32 %v357, %v349
        %v380 = vmul.f32 %v357, %v350
        %v381 = vmul.f32 %v357, %v351
        %v382 = vmul.f32 %v357, %v352
        %v383 = vmul.f32 %v357, %v353
        %v384 = vmul.f32 %v357, %v354
        %v385 = vmul.f32 %v357, %v355
        %v386 = vmul.f32 %v357, %v356
        %v387 = vadd.f32 %v290, %v358
        %v388 = vadd.f32 %v291, %v359
        %v389 = vadd.f32 %v292, %v360
        %v390 = vadd.f32 %v293, %v361
        %v391 = vadd.f32 %v294, %v362
        %v392 = vadd.f32 %v295, %v363
        %v393 = vadd.f32 %v296, %v364
        %v394 = vadd.f32 %v297, %v365
        %v395 = vadd.f32 %v298, %v366
        %v396 = vadd.f32 %v299, %v367
        %v397 = vadd.f32 %v300, %v368
        %v398 = vadd.f32 %v301, %v369
        %v399 = vadd.f32 %v302, %v370
        %v400 = vadd.f32 %v303, %v371
        %v401 = vadd.f32 %v304, %v372
        %v402 = vadd.f32 %v305, %v373
        %v403 = vadd.f32 %v306, %v374
        %v404 = vadd.f32 %v307, %v375
        %v405 = vadd.f32 %v308, %v376
        %v406 = vadd.f32 %v309, %v377
        %v407 = vadd.f32 %v310, %v378
        %v408 = vadd.f32 %v311, %v379
        %v409 = vadd.f32 %v312, %v380
        %v410 = vadd.f32 %v313, %v381
        %v411 = vadd.f32 %v314, %v382
        %v412 = vadd.f32 %v315, %v383
        %v413 = vadd.f32 %v316, %v384
        %v414 = vadd.f32 %v317, %v385
        %v415 = vadd.f32 %v318, %v386
        %s416 = sadd.s32 %s123, 3
        %s417 = sshra.s32 %s416, 7
        %s418 = sand.u32 %s416, 127
        %s419 = sadd.s32 %s417, %s83
        %s420 = smul.u32 %s419, 128
        %s421 = sshra.s32 %s416, 7
        %s422 = sand.u32 %s416, 127
        %s423 = sadd.s32 %s420, %s422
        %s424 = sld [smem:[#allocation5 + %s423]]
        %v425 = vld [vmem:[%s133 + $0x10] sm:$0xff]
        %v426 = vld [vmem:[%s133 + $0x18] sm:$0xff]
        %v427 = vld [vmem:[%s133 + $0x20] sm:$0xff]
        %v428 = vld [vmem:[%s133 + $0x28] sm:$0xff]
        %v429 = vld [vmem:[%s133 + $0x30] sm:$0xff]
        %v430 = vld [vmem:[%s133 + $0x38] sm:$0xff]
        %v431 = vld [vmem:[%s133 + $0x40] sm:$0xff]
        %v432 = vld [vmem:[%s133 + $0x48] sm:$0xff]
        %v433 = vld [vmem:[%s133 + $0x50] sm:$0xff]
        %v434 = vld [vmem:[%s133 + $0x58] sm:$0xff]
        %v435 = vld [vmem:[%s133 + $0x60] sm:$0xff]
        %v436 = vld [vmem:[%s133 + $0x68] sm:$0xff]
        %v437 = vld [vmem:[%s133 + $0x70] sm:$0xff]
        %v438 = vld [vmem:[%s133 + $0x78] sm:$0xff]
        %v439 = vld [vmem:[%s133 + $0x80] sm:$0xff]
        %v440 = vld [vmem:[%s133 + $0x88] sm:$0xff]
        %v441 = vld [vmem:[%s133 + $0x90] sm:$0xff]
        %v442 = vld [vmem:[%s133 + $0x98] sm:$0xff]
        %v443 = vld [vmem:[%s133 + $0xa0] sm:$0xff]
        %v444 = vld [vmem:[%s133 + $0xa8] sm:$0xff]
        %v445 = vld [vmem:[%s133 + $0xb0] sm:$0xff]
        %v446 = vld [vmem:[%s133 + $0xb8] sm:$0xff]
        %v447 = vld [vmem:[%s133 + $0xc0] sm:$0xff]
        %v448 = vld [vmem:[%s133 + $0xc8] sm:$0xff]
        %v449 = vld [vmem:[%s133 + $0xd0] sm:$0xff]
        %v450 = vld [vmem:[%s133 + $0xd8] sm:$0xff]
        %v451 = vld [vmem:[%s133 + $0xe0] sm:$0xff]
        %v452 = vld [vmem:[%s133 + $0xe8] sm:$0xff]
        %v453 = vld [vmem:[%s133 + $0xf0] sm:$0xff]
        %v454 = vstv %s424
        %v455 = vmul.f32 %v454, %v425
        %v456 = vmul.f32 %v454, %v426
        %v457 = vmul.f32 %v454, %v427
        %v458 = vmul.f32 %v454, %v428
        %v459 = vmul.f32 %v454, %v429
        %v460 = vmul.f32 %v454, %v430
        %v461 = vmul.f32 %v454, %v431
        %v462 = vmul.f32 %v454, %v432
        %v463 = vmul.f32 %v454, %v433
        %v464 = vmul.f32 %v454, %v434
        %v465 = vmul.f32 %v454, %v435
        %v466 = vmul.f32 %v454, %v436
        %v467 = vmul.f32 %v454, %v437
        %v468 = vmul.f32 %v454, %v438
        %v469 = vmul.f32 %v454, %v439
        %v470 = vmul.f32 %v454, %v440
        %v471 = vmul.f32 %v454, %v441
        %v472 = vmul.f32 %v454, %v442
        %v473 = vmul.f32 %v454, %v443
        %v474 = vmul.f32 %v454, %v444
        %v475 = vmul.f32 %v454, %v445
        %v476 = vmul.f32 %v454, %v446
        %v477 = vmul.f32 %v454, %v447
        %v478 = vmul.f32 %v454, %v448
        %v479 = vmul.f32 %v454, %v449
        %v480 = vmul.f32 %v454, %v450
        %v481 = vmul.f32 %v454, %v451
        %v482 = vmul.f32 %v454, %v452
        %v483 = vmul.f32 %v454, %v453
        %v484 = vadd.f32 %v387, %v455
        %v485 = vadd.f32 %v388, %v456
        %v486 = vadd.f32 %v389, %v457
        %v487 = vadd.f32 %v390, %v458
        %v488 = vadd.f32 %v391, %v459
        %v489 = vadd.f32 %v392, %v460
        %v490 = vadd.f32 %v393, %v461
        %v491 = vadd.f32 %v394, %v462
        %v492 = vadd.f32 %v395, %v463
        %v493 = vadd.f32 %v396, %v464
        %v494 = vadd.f32 %v397, %v465
        %v495 = vadd.f32 %v398, %v466
        %v496 = vadd.f32 %v399, %v467
        %v497 = vadd.f32 %v400, %v468
        %v498 = vadd.f32 %v401, %v469
        %v499 = vadd.f32 %v402, %v470
        %v500 = vadd.f32 %v403, %v471
        %v501 = vadd.f32 %v404, %v472
        %v502 = vadd.f32 %v405, %v473
        %v503 = vadd.f32 %v406, %v474
        %v504 = vadd.f32 %v407, %v475
        %v505 = vadd.f32 %v408, %v476
        %v506 = vadd.f32 %v409, %v477
        %v507 = vadd.f32 %v410, %v478
        %v508 = vadd.f32 %v411, %v479
        %v509 = vadd.f32 %v412, %v480
        %v510 = vadd.f32 %v413, %v481
        %v511 = vadd.f32 %v414, %v482
        %v512 = vadd.f32 %v415, %v483
        %s513 = sadd.s32 %s123, 4
        %s514 = sshra.s32 %s513, 7
        %s515 = sand.u32 %s513, 127
        %s516 = sadd.s32 %s514, %s83
        %s517 = smul.u32 %s516, 128
        %s518 = sshra.s32 %s513, 7
        %s519 = sand.u32 %s513, 127
        %s520 = sadd.s32 %s517, %s519
        %s521 = sld [smem:[#allocation5 + %s520]]
        %v522 = vld [vmem:[%s133 + $0x11] sm:$0xff]
        %v523 = vld [vmem:[%s133 + $0x19] sm:$0xff]
        %v524 = vld [vmem:[%s133 + $0x21] sm:$0xff]
        %v525 = vld [vmem:[%s133 + $0x29] sm:$0xff]
        %v526 = vld [vmem:[%s133 + $0x31] sm:$0xff]
        %v527 = vld [vmem:[%s133 + $0x39] sm:$0xff]
        %v528 = vld [vmem:[%s133 + $0x41] sm:$0xff]
        %v529 = vld [vmem:[%s133 + $0x49] sm:$0xff]
        %v530 = vld [vmem:[%s133 + $0x51] sm:$0xff]
        %v531 = vld [vmem:[%s133 + $0x59] sm:$0xff]
        %v532 = vld [vmem:[%s133 + $0x61] sm:$0xff]
        %v533 = vld [vmem:[%s133 + $0x69] sm:$0xff]
        %v534 = vld [vmem:[%s133 + $0x71] sm:$0xff]
        %v535 = vld [vmem:[%s133 + $0x79] sm:$0xff]
        %v536 = vld [vmem:[%s133 + $0x81] sm:$0xff]
        %v537 = vld [vmem:[%s133 + $0x89] sm:$0xff]
        %v538 = vld [vmem:[%s133 + $0x91] sm:$0xff]
        %v539 = vld [vmem:[%s133 + $0x99] sm:$0xff]
        %v540 = vld [vmem:[%s133 + $0xa1] sm:$0xff]
        %v541 = vld [vmem:[%s133 + $0xa9] sm:$0xff]
        %v542 = vld [vmem:[%s133 + $0xb1] sm:$0xff]
        %v543 = vld [vmem:[%s133 + $0xb9] sm:$0xff]
        %v544 = vld [vmem:[%s133 + $0xc1] sm:$0xff]
        %v545 = vld [vmem:[%s133 + $0xc9] sm:$0xff]
        %v546 = vld [vmem:[%s133 + $0xd1] sm:$0xff]
        %v547 = vld [vmem:[%s133 + $0xd9] sm:$0xff]
        %v548 = vld [vmem:[%s133 + $0xe1] sm:$0xff]
        %v549 = vld [vmem:[%s133 + $0xe9] sm:$0xff]
        %v550 = vld [vmem:[%s133 + $0xf1] sm:$0xff]
        %v551 = vstv %s521
        %v552 = vmul.f32 %v551, %v522
        %v553 = vmul.f32 %v551, %v523
        %v554 = vmul.f32 %v551, %v524
        %v555 = vmul.f32 %v551, %v525
        %v556 = vmul.f32 %v551, %v526
        %v557 = vmul.f32 %v551, %v527
        %v558 = vmul.f32 %v551, %v528
        %v559 = vmul.f32 %v551, %v529
        %v560 = vmul.f32 %v551, %v530
        %v561 = vmul.f32 %v551, %v531
        %v562 = vmul.f32 %v551, %v532
        %v563 = vmul.f32 %v551, %v533
        %v564 = vmul.f32 %v551, %v534
        %v565 = vmul.f32 %v551, %v535
        %v566 = vmul.f32 %v551, %v536
        %v567 = vmul.f32 %v551, %v537
        %v568 = vmul.f32 %v551, %v538
        %v569 = vmul.f32 %v551, %v539
        %v570 = vmul.f32 %v551, %v540
        %v571 = vmul.f32 %v551, %v541
        %v572 = vmul.f32 %v551, %v542
        %v573 = vmul.f32 %v551, %v543
        %v574 = vmul.f32 %v551, %v544
        %v575 = vmul.f32 %v551, %v545
        %v576 = vmul.f32 %v551, %v546
        %v577 = vmul.f32 %v551, %v547
        %v578 = vmul.f32 %v551, %v548
        %v579 = vmul.f32 %v551, %v549
        %v580 = vmul.f32 %v551, %v550
        %v581 = vadd.f32 %v484, %v552
        %v582 = vadd.f32 %v485, %v553
        %v583 = vadd.f32 %v486, %v554
        %v584 = vadd.f32 %v487, %v555
        %v585 = vadd.f32 %v488, %v556
        %v586 = vadd.f32 %v489, %v557
        %v587 = vadd.f32 %v490, %v558
        %v588 = vadd.f32 %v491, %v559
        %v589 = vadd.f32 %v492, %v560
        %v590 = vadd.f32 %v493, %v561
        %v591 = vadd.f32 %v494, %v562
        %v592 = vadd.f32 %v495, %v563
        %v593 = vadd.f32 %v496, %v564
        %v594 = vadd.f32 %v497, %v565
        %v595 = vadd.f32 %v498, %v566
        %v596 = vadd.f32 %v499, %v567
        %v597 = vadd.f32 %v500, %v568
        %v598 = vadd.f32 %v501, %v569
        %v599 = vadd.f32 %v502, %v570
        %v600 = vadd.f32 %v503, %v571
        %v601 = vadd.f32 %v504, %v572
        %v602 = vadd.f32 %v505, %v573
        %v603 = vadd.f32 %v506, %v574
        %v604 = vadd.f32 %v507, %v575
        %v605 = vadd.f32 %v508, %v576
        %v606 = vadd.f32 %v509, %v577
        %v607 = vadd.f32 %v510, %v578
        %v608 = vadd.f32 %v511, %v579
        %v609 = vadd.f32 %v512, %v580
        %s610 = sadd.s32 %s123, 5
        %s611 = sshra.s32 %s610, 7
        %s612 = sand.u32 %s610, 127
        %s613 = sadd.s32 %s611, %s83
        %s614 = smul.u32 %s613, 128
        %s615 = sshra.s32 %s610, 7
        %s616 = sand.u32 %s610, 127
        %s617 = sadd.s32 %s614, %s616
        %s618 = sld [smem:[#allocation5 + %s617]]
        %v619 = vld [vmem:[%s133 + $0x12] sm:$0xff]
        %v620 = vld [vmem:[%s133 + $0x1a] sm:$0xff]
        %v621 = vld [vmem:[%s133 + $0x22] sm:$0xff]
        %v622 = vld [vmem:[%s133 + $0x2a] sm:$0xff]
        %v623 = vld [vmem:[%s133 + $0x32] sm:$0xff]
        %v624 = vld [vmem:[%s133 + $0x3a] sm:$0xff]
        %v625 = vld [vmem:[%s133 + $0x42] sm:$0xff]
        %v626 = vld [vmem:[%s133 + $0x4a] sm:$0xff]
        %v627 = vld [vmem:[%s133 + $0x52] sm:$0xff]
        %v628 = vld [vmem:[%s133 + $0x5a] sm:$0xff]
        %v629 = vld [vmem:[%s133 + $0x62] sm:$0xff]
        %v630 = vld [vmem:[%s133 + $0x6a] sm:$0xff]
        %v631 = vld [vmem:[%s133 + $0x72] sm:$0xff]
        %v632 = vld [vmem:[%s133 + $0x7a] sm:$0xff]
        %v633 = vld [vmem:[%s133 + $0x82] sm:$0xff]
        %v634 = vld [vmem:[%s133 + $0x8a] sm:$0xff]
        %v635 = vld [vmem:[%s133 + $0x92] sm:$0xff]
        %v636 = vld [vmem:[%s133 + $0x9a] sm:$0xff]
        %v637 = vld [vmem:[%s133 + $0xa2] sm:$0xff]
        %v638 = vld [vmem:[%s133 + $0xaa] sm:$0xff]
        %v639 = vld [vmem:[%s133 + $0xb2] sm:$0xff]
        %v640 = vld [vmem:[%s133 + $0xba] sm:$0xff]
        %v641 = vld [vmem:[%s133 + $0xc2] sm:$0xff]
        %v642 = vld [vmem:[%s133 + $0xca] sm:$0xff]
        %v643 = vld [vmem:[%s133 + $0xd2] sm:$0xff]
        %v644 = vld [vmem:[%s133 + $0xda] sm:$0xff]
        %v645 = vld [vmem:[%s133 + $0xe2] sm:$0xff]
        %v646 = vld [vmem:[%s133 + $0xea] sm:$0xff]
        %v647 = vld [vmem:[%s133 + $0xf2] sm:$0xff]
        %v648 = vstv %s618
        %v649 = vmul.f32 %v648, %v619
        %v650 = vmul.f32 %v648, %v620
        %v651 = vmul.f32 %v648, %v621
        %v652 = vmul.f32 %v648, %v622
        %v653 = vmul.f32 %v648, %v623
        %v654 = vmul.f32 %v648, %v624
        %v655 = vmul.f32 %v648, %v625
        %v656 = vmul.f32 %v648, %v626
        %v657 = vmul.f32 %v648, %v627
        %v658 = vmul.f32 %v648, %v628
        %v659 = vmul.f32 %v648, %v629
        %v660 = vmul.f32 %v648, %v630
        %v661 = vmul.f32 %v648, %v631
        %v662 = vmul.f32 %v648, %v632
        %v663 = vmul.f32 %v648, %v633
        %v664 = vmul.f32 %v648, %v634
        %v665 = vmul.f32 %v648, %v635
        %v666 = vmul.f32 %v648, %v636
        %v667 = vmul.f32 %v648, %v637
        %v668 = vmul.f32 %v648, %v638
        %v669 = vmul.f32 %v648, %v639
        %v670 = vmul.f32 %v648, %v640
        %v671 = vmul.f32 %v648, %v641
        %v672 = vmul.f32 %v648, %v642
        %v673 = vmul.f32 %v648, %v643
        %v674 = vmul.f32 %v648, %v644
        %v675 = vmul.f32 %v648, %v645
        %v676 = vmul.f32 %v648, %v646
        %v677 = vmul.f32 %v648, %v647
        %v678 = vadd.f32 %v581, %v649
        %v679 = vadd.f32 %v582, %v650
        %v680 = vadd.f32 %v583, %v651
        %v681 = vadd.f32 %v584, %v652
        %v682 = vadd.f32 %v585, %v653
        %v683 = vadd.f32 %v586, %v654
        %v684 = vadd.f32 %v587, %v655
        %v685 = vadd.f32 %v588, %v656
        %v686 = vadd.f32 %v589, %v657
        %v687 = vadd.f32 %v590, %v658
        %v688 = vadd.f32 %v591, %v659
        %v689 = vadd.f32 %v592, %v660
        %v690 = vadd.f32 %v593, %v661
        %v691 = vadd.f32 %v594, %v662
        %v692 = vadd.f32 %v595, %v663
        %v693 = vadd.f32 %v596, %v664
        %v694 = vadd.f32 %v597, %v665
        %v695 = vadd.f32 %v598, %v666
        %v696 = vadd.f32 %v599, %v667
        %v697 = vadd.f32 %v600, %v668
        %v698 = vadd.f32 %v601, %v669
        %v699 = vadd.f32 %v602, %v670
        %v700 = vadd.f32 %v603, %v671
        %v701 = vadd.f32 %v604, %v672
        %v702 = vadd.f32 %v605, %v673
        %v703 = vadd.f32 %v606, %v674
        %v704 = vadd.f32 %v607, %v675
        %v705 = vadd.f32 %v608, %v676
        %v706 = vadd.f32 %v609, %v677
        %s707 = sadd.s32 %s123, 6
        %s708 = sshra.s32 %s707, 7
        %s709 = sand.u32 %s707, 127
        %s710 = sadd.s32 %s708, %s83
        %s711 = smul.u32 %s710, 128
        %s712 = sshra.s32 %s707, 7
        %s713 = sand.u32 %s707, 127
        %s714 = sadd.s32 %s711, %s713
        %s715 = sld [smem:[#allocation5 + %s714]]
        %v716 = vld [vmem:[%s133 + $0x20] sm:$0xff]
        %v717 = vld [vmem:[%s133 + $0x28] sm:$0xff]
        %v718 = vld [vmem:[%s133 + $0x30] sm:$0xff]
        %v719 = vld [vmem:[%s133 + $0x38] sm:$0xff]
        %v720 = vld [vmem:[%s133 + $0x40] sm:$0xff]
        %v721 = vld [vmem:[%s133 + $0x48] sm:$0xff]
        %v722 = vld [vmem:[%s133 + $0x50] sm:$0xff]
        %v723 = vld [vmem:[%s133 + $0x58] sm:$0xff]
        %v724 = vld [vmem:[%s133 + $0x60] sm:$0xff]
        %v725 = vld [vmem:[%s133 + $0x68] sm:$0xff]
        %v726 = vld [vmem:[%s133 + $0x70] sm:$0xff]
        %v727 = vld [vmem:[%s133 + $0x78] sm:$0xff]
        %v728 = vld [vmem:[%s133 + $0x80] sm:$0xff]
        %v729 = vld [vmem:[%s133 + $0x88] sm:$0xff]
        %v730 = vld [vmem:[%s133 + $0x90] sm:$0xff]
        %v731 = vld [vmem:[%s133 + $0x98] sm:$0xff]
        %v732 = vld [vmem:[%s133 + $0xa0] sm:$0xff]
        %v733 = vld [vmem:[%s133 + $0xa8] sm:$0xff]
        %v734 = vld [vmem:[%s133 + $0xb0] sm:$0xff]
        %v735 = vld [vmem:[%s133 + $0xb8] sm:$0xff]
        %v736 = vld [vmem:[%s133 + $0xc0] sm:$0xff]
        %v737 = vld [vmem:[%s133 + $0xc8] sm:$0xff]
        %v738 = vld [vmem:[%s133 + $0xd0] sm:$0xff]
        %v739 = vld [vmem:[%s133 + $0xd8] sm:$0xff]
        %v740 = vld [vmem:[%s133 + $0xe0] sm:$0xff]
        %v741 = vld [vmem:[%s133 + $0xe8] sm:$0xff]
        %v742 = vld [vmem:[%s133 + $0xf0] sm:$0xff]
        %v743 = vld [vmem:[%s133 + $0xf8] sm:$0xff]
        %v744 = vld [vmem:[%s133 + $0x100] sm:$0xff]
        %v745 = vstv %s715
        %v746 = vmul.f32 %v745, %v716
        %v747 = vmul.f32 %v745, %v717
        %v748 = vmul.f32 %v745, %v718
        %v749 = vmul.f32 %v745, %v719
        %v750 = vmul.f32 %v745, %v720
        %v751 = vmul.f32 %v745, %v721
        %v752 = vmul.f32 %v745, %v722
        %v753 = vmul.f32 %v745, %v723
        %v754 = vmul.f32 %v745, %v724
        %v755 = vmul.f32 %v745, %v725
        %v756 = vmul.f32 %v745, %v726
        %v757 = vmul.f32 %v745, %v727
        %v758 = vmul.f32 %v745, %v728
        %v759 = vmul.f32 %v745, %v729
        %v760 = vmul.f32 %v745, %v730
        %v761 = vmul.f32 %v745, %v731
        %v762 = vmul.f32 %v745, %v732
        %v763 = vmul.f32 %v745, %v733
        %v764 = vmul.f32 %v745, %v734
        %v765 = vmul.f32 %v745, %v735
        %v766 = vmul.f32 %v745, %v736
        %v767 = vmul.f32 %v745, %v737
        %v768 = vmul.f32 %v745, %v738
        %v769 = vmul.f32 %v745, %v739
        %v770 = vmul.f32 %v745, %v740
        %v771 = vmul.f32 %v745, %v741
        %v772 = vmul.f32 %v745, %v742
        %v773 = vmul.f32 %v745, %v743
        %v774 = vmul.f32 %v745, %v744
        %v775 = vadd.f32 %v678, %v746
        %v776 = vadd.f32 %v679, %v747
        %v777 = vadd.f32 %v680, %v748
        %v778 = vadd.f32 %v681, %v749
        %v779 = vadd.f32 %v682, %v750
        %v780 = vadd.f32 %v683, %v751
        %v781 = vadd.f32 %v684, %v752
        %v782 = vadd.f32 %v685, %v753
        %v783 = vadd.f32 %v686, %v754
        %v784 = vadd.f32 %v687, %v755
        %v785 = vadd.f32 %v688, %v756
        %v786 = vadd.f32 %v689, %v757
        %v787 = vadd.f32 %v690, %v758
        %v788 = vadd.f32 %v691, %v759
        %v789 = vadd.f32 %v692, %v760
        %v790 = vadd.f32 %v693, %v761
        %v791 = vadd.f32 %v694, %v762
        %v792 = vadd.f32 %v695, %v763
        %v793 = vadd.f32 %v696, %v764
        %v794 = vadd.f32 %v697, %v765
        %v795 = vadd.f32 %v698, %v766
        %v796 = vadd.f32 %v699, %v767
        %v797 = vadd.f32 %v700, %v768
        %v798 = vadd.f32 %v701, %v769
        %v799 = vadd.f32 %v702, %v770
        %v800 = vadd.f32 %v703, %v771
        %v801 = vadd.f32 %v704, %v772
        %v802 = vadd.f32 %v705, %v773
        %v803 = vadd.f32 %v706, %v774
        %s804 = sadd.s32 %s123, 7
        %s805 = sshra.s32 %s804, 7
        %s806 = sand.u32 %s804, 127
        %s807 = sadd.s32 %s805, %s83
        %s808 = smul.u32 %s807, 128
        %s809 = sshra.s32 %s804, 7
        %s810 = sand.u32 %s804, 127
        %s811 = sadd.s32 %s808, %s810
        %s812 = sld [smem:[#allocation5 + %s811]]
        %v813 = vld [vmem:[%s133 + $0x21] sm:$0xff]
        %v814 = vld [vmem:[%s133 + $0x29] sm:$0xff]
        %v815 = vld [vmem:[%s133 + $0x31] sm:$0xff]
        %v816 = vld [vmem:[%s133 + $0x39] sm:$0xff]
        %v817 = vld [vmem:[%s133 + $0x41] sm:$0xff]
        %v818 = vld [vmem:[%s133 + $0x49] sm:$0xff]
        %v819 = vld [vmem:[%s133 + $0x51] sm:$0xff]
        %v820 = vld [vmem:[%s133 + $0x59] sm:$0xff]
        %v821 = vld [vmem:[%s133 + $0x61] sm:$0xff]
        %v822 = vld [vmem:[%s133 + $0x69] sm:$0xff]
        %v823 = vld [vmem:[%s133 + $0x71] sm:$0xff]
        %v824 = vld [vmem:[%s133 + $0x79] sm:$0xff]
        %v825 = vld [vmem:[%s133 + $0x81] sm:$0xff]
        %v826 = vld [vmem:[%s133 + $0x89] sm:$0xff]
        %v827 = vld [vmem:[%s133 + $0x91] sm:$0xff]
        %v828 = vld [vmem:[%s133 + $0x99] sm:$0xff]
        %v829 = vld [vmem:[%s133 + $0xa1] sm:$0xff]
        %v830 = vld [vmem:[%s133 + $0xa9] sm:$0xff]
        %v831 = vld [vmem:[%s133 + $0xb1] sm:$0xff]
        %v832 = vld [vmem:[%s133 + $0xb9] sm:$0xff]
        %v833 = vld [vmem:[%s133 + $0xc1] sm:$0xff]
        %v834 = vld [vmem:[%s133 + $0xc9] sm:$0xff]
        %v835 = vld [vmem:[%s133 + $0xd1] sm:$0xff]
        %v836 = vld [vmem:[%s133 + $0xd9] sm:$0xff]
        %v837 = vld [vmem:[%s133 + $0xe1] sm:$0xff]
        %v838 = vld [vmem:[%s133 + $0xe9] sm:$0xff]
        %v839 = vld [vmem:[%s133 + $0xf1] sm:$0xff]
        %v840 = vld [vmem:[%s133 + $0xf9] sm:$0xff]
        %v841 = vld [vmem:[%s133 + $0x101] sm:$0xff]
        %v842 = vstv %s812
        %v843 = vmul.f32 %v842, %v813
        %v844 = vmul.f32 %v842, %v814
        %v845 = vmul.f32 %v842, %v815
        %v846 = vmul.f32 %v842, %v816
        %v847 = vmul.f32 %v842, %v817
        %v848 = vmul.f32 %v842, %v818
        %v849 = vmul.f32 %v842, %v819
        %v850 = vmul.f32 %v842, %v820
        %v851 = vmul.f32 %v842, %v821
        %v852 = vmul.f32 %v842, %v822
        %v853 = vmul.f32 %v842, %v823
        %v854 = vmul.f32 %v842, %v824
        %v855 = vmul.f32 %v842, %v825
        %v856 = vmul.f32 %v842, %v826
        %v857 = vmul.f32 %v842, %v827
        %v858 = vmul.f32 %v842, %v828
        %v859 = vmul.f32 %v842, %v829
        %v860 = vmul.f32 %v842, %v830
        %v861 = vmul.f32 %v842, %v831
        %v862 = vmul.f32 %v842, %v832
        %v863 = vmul.f32 %v842, %v833
        %v864 = vmul.f32 %v842, %v834
        %v865 = vmul.f32 %v842, %v835
        %v866 = vmul.f32 %v842, %v836
        %v867 = vmul.f32 %v842, %v837
        %v868 = vmul.f32 %v842, %v838
        %v869 = vmul.f32 %v842, %v839
        %v870 = vmul.f32 %v842, %v840
        %v871 = vmul.f32 %v842, %v841
        %v872 = vadd.f32 %v775, %v843
        %v873 = vadd.f32 %v776, %v844
        %v874 = vadd.f32 %v777, %v845
        %v875 = vadd.f32 %v778, %v846
        %v876 = vadd.f32 %v779, %v847
        %v877 = vadd.f32 %v780, %v848
        %v878 = vadd.f32 %v781, %v849
        %v879 = vadd.f32 %v782, %v850
        %v880 = vadd.f32 %v783, %v851
        %v881 = vadd.f32 %v784, %v852
        %v882 = vadd.f32 %v785, %v853
        %v883 = vadd.f32 %v786, %v854
        %v884 = vadd.f32 %v787, %v855
        %v885 = vadd.f32 %v788, %v856
        %v886 = vadd.f32 %v789, %v857
        %v887 = vadd.f32 %v790, %v858
        %v888 = vadd.f32 %v791, %v859
        %v889 = vadd.f32 %v792, %v860
        %v890 = vadd.f32 %v793, %v861
        %v891 = vadd.f32 %v794, %v862
        %v892 = vadd.f32 %v795, %v863
        %v893 = vadd.f32 %v796, %v864
        %v894 = vadd.f32 %v797, %v865
        %v895 = vadd.f32 %v798, %v866
        %v896 = vadd.f32 %v799, %v867
        %v897 = vadd.f32 %v800, %v868
        %v898 = vadd.f32 %v801, %v869
        %v899 = vadd.f32 %v802, %v870
        %v900 = vadd.f32 %v803, %v871
        %s901 = sadd.s32 %s123, 8
        %s902 = sshra.s32 %s901, 7
        %s903 = sand.u32 %s901, 127
        %s904 = sadd.s32 %s902, %s83
        %s905 = smul.u32 %s904, 128
        %s906 = sshra.s32 %s901, 7
        %s907 = sand.u32 %s901, 127
        %s908 = sadd.s32 %s905, %s907
        %s909 = sld [smem:[#allocation5 + %s908]]
        %v910 = vld [vmem:[%s133 + $0x22] sm:$0xff]
        %v911 = vld [vmem:[%s133 + $0x2a] sm:$0xff]
        %v912 = vld [vmem:[%s133 + $0x32] sm:$0xff]
        %v913 = vld [vmem:[%s133 + $0x3a] sm:$0xff]
        %v914 = vld [vmem:[%s133 + $0x42] sm:$0xff]
        %v915 = vld [vmem:[%s133 + $0x4a] sm:$0xff]
        %v916 = vld [vmem:[%s133 + $0x52] sm:$0xff]
        %v917 = vld [vmem:[%s133 + $0x5a] sm:$0xff]
        %v918 = vld [vmem:[%s133 + $0x62] sm:$0xff]
        %v919 = vld [vmem:[%s133 + $0x6a] sm:$0xff]
        %v920 = vld [vmem:[%s133 + $0x72] sm:$0xff]
        %v921 = vld [vmem:[%s133 + $0x7a] sm:$0xff]
        %v922 = vld [vmem:[%s133 + $0x82] sm:$0xff]
        %v923 = vld [vmem:[%s133 + $0x8a] sm:$0xff]
        %v924 = vld [vmem:[%s133 + $0x92] sm:$0xff]
        %v925 = vld [vmem:[%s133 + $0x9a] sm:$0xff]
        %v926 = vld [vmem:[%s133 + $0xa2] sm:$0xff]
        %v927 = vld [vmem:[%s133 + $0xaa] sm:$0xff]
        %v928 = vld [vmem:[%s133 + $0xb2] sm:$0xff]
        %v929 = vld [vmem:[%s133 + $0xba] sm:$0xff]
        %v930 = vld [vmem:[%s133 + $0xc2] sm:$0xff]
        %v931 = vld [vmem:[%s133 + $0xca] sm:$0xff]
        %v932 = vld [vmem:[%s133 + $0xd2] sm:$0xff]
        %v933 = vld [vmem:[%s133 + $0xda] sm:$0xff]
        %v934 = vld [vmem:[%s133 + $0xe2] sm:$0xff]
        %v935 = vld [vmem:[%s133 + $0xea] sm:$0xff]
        %v936 = vld [vmem:[%s133 + $0xf2] sm:$0xff]
        %v937 = vld [vmem:[%s133 + $0xfa] sm:$0xff]
        %v938 = vld [vmem:[%s133 + $0x102] sm:$0xff]
        %v939 = vstv %s909
        %v940 = vmul.f32 %v939, %v910
        %v941 = vmul.f32 %v939, %v911
        %v942 = vmul.f32 %v939, %v912
        %v943 = vmul.f32 %v939, %v913
        %v944 = vmul.f32 %v939, %v914
        %v945 = vmul.f32 %v939, %v915
        %v946 = vmul.f32 %v939, %v916
        %v947 = vmul.f32 %v939, %v917
        %v948 = vmul.f32 %v939, %v918
        %v949 = vmul.f32 %v939, %v919
        %v950 = vmul.f32 %v939, %v920
        %v951 = vmul.f32 %v939, %v921
        %v952 = vmul.f32 %v939, %v922
        %v953 = vmul.f32 %v939, %v923
        %v954 = vmul.f32 %v939, %v924
        %v955 = vmul.f32 %v939, %v925
        %v956 = vmul.f32 %v939, %v926
        %v957 = vmul.f32 %v939, %v927
        %v958 = vmul.f32 %v939, %v928
        %v959 = vmul.f32 %v939, %v929
        %v960 = vmul.f32 %v939, %v930
        %v961 = vmul.f32 %v939, %v931
        %v962 = vmul.f32 %v939, %v932
        %v963 = vmul.f32 %v939, %v933
        %v964 = vmul.f32 %v939, %v934
        %v965 = vmul.f32 %v939, %v935
        %v966 = vmul.f32 %v939, %v936
        %v967 = vmul.f32 %v939, %v937
        %v968 = vmul.f32 %v939, %v938
        %v969 = vadd.f32 %v872, %v940
        %v970 = vadd.f32 %v873, %v941
        %v971 = vadd.f32 %v874, %v942
        %v972 = vadd.f32 %v875, %v943
        %v973 = vadd.f32 %v876, %v944
        %v974 = vadd.f32 %v877, %v945
        %v975 = vadd.f32 %v878, %v946
        %v976 = vadd.f32 %v879, %v947
        %v977 = vadd.f32 %v880, %v948
        %v978 = vadd.f32 %v881, %v949
        %v979 = vadd.f32 %v882, %v950
        %v980 = vadd.f32 %v883, %v951
        %v981 = vadd.f32 %v884, %v952
        %v982 = vadd.f32 %v885, %v953
        %v983 = vadd.f32 %v886, %v954
        %v984 = vadd.f32 %v887, %v955
        %v985 = vadd.f32 %v888, %v956
        %v986 = vadd.f32 %v889, %v957
        %v987 = vadd.f32 %v890, %v958
        %v988 = vadd.f32 %v891, %v959
        %v989 = vadd.f32 %v892, %v960
        %v990 = vadd.f32 %v893, %v961
        %v991 = vadd.f32 %v894, %v962
        %v992 = vadd.f32 %v895, %v963
        %v993 = vadd.f32 %v896, %v964
        %v994 = vadd.f32 %v897, %v965
        %v995 = vadd.f32 %v898, %v966
        %v996 = vadd.f32 %v899, %v967
        %v997 = vadd.f32 %v900, %v968
      $region65: #{_net_forward_impl.1} parent=57 // loop_footer
        %s93 = sadd.s32 1, %s89
      $region66: #{_net_forward_impl.1} parent=57 // loop_footer_branch
        %88 = sbr.rel target = $region62
      $region67: #{_net_forward_impl.1} parent=57 // loop_exit
        _
      %s998 = sld [smem:[#allocation7 + %s83]]
      %v999 = vstv %s998
      %v1000 = vadd.f32 %v94, %v999
      %v1001 = vadd.f32 %v95, %v999
      %v1002 = vadd.f32 %v96, %v999
      %v1003 = vadd.f32 %v97, %v999
      %v1004 = vadd.f32 %v98, %v999
      %v1005 = vadd.f32 %v99, %v999
      %v1006 = vadd.f32 %v100, %v999
      %v1007 = vadd.f32 %v101, %v999
      %v1008 = vadd.f32 %v102, %v999
      %v1009 = vadd.f32 %v103, %v999
      %v1010 = vadd.f32 %v104, %v999
      %v1011 = vadd.f32 %v105, %v999
      %v1012 = vadd.f32 %v106, %v999
      %v1013 = vadd.f32 %v107, %v999
      %v1014 = vadd.f32 %v108, %v999
      %v1015 = vadd.f32 %v109, %v999
      %v1016 = vadd.f32 %v110, %v999
      %v1017 = vadd.f32 %v111, %v999
      %v1018 = vadd.f32 %v112, %v999
      %v1019 = vadd.f32 %v113, %v999
      %v1020 = vadd.f32 %v114, %v999
      %v1021 = vadd.f32 %v115, %v999
      %v1022 = vadd.f32 %v116, %v999
      %v1023 = vadd.f32 %v117, %v999
      %v1024 = vadd.f32 %v118, %v999
      %v1025 = vadd.f32 %v119, %v999
      %v1026 = vadd.f32 %v120, %v999
      %v1027 = vadd.f32 %v121, %v999
      %v1028 = vadd.f32 %v122, %v999
      %v1029 = vmax.f32 %v1000, 0.0
      %v1030 = vmax.f32 %v1001, 0.0
      %v1031 = vmax.f32 %v1002, 0.0
      %v1032 = vmax.f32 %v1003, 0.0
      %v1033 = vmax.f32 %v1004, 0.0
      %v1034 = vmax.f32 %v1005, 0.0
      %v1035 = vmax.f32 %v1006, 0.0
      %v1036 = vmax.f32 %v1007, 0.0
      %v1037 = vmax.f32 %v1008, 0.0
      %v1038 = vmax.f32 %v1009, 0.0
      %v1039 = vmax.f32 %v1010, 0.0
      %v1040 = vmax.f32 %v1011, 0.0
      %v1041 = vmax.f32 %v1012, 0.0
      %v1042 = vmax.f32 %v1013, 0.0
      %v1043 = vmax.f32 %v1014, 0.0
      %v1044 = vmax.f32 %v1015, 0.0
      %v1045 = vmax.f32 %v1016, 0.0
      %v1046 = vmax.f32 %v1017, 0.0
      %v1047 = vmax.f32 %v1018, 0.0
      %v1048 = vmax.f32 %v1019, 0.0
      %v1049 = vmax.f32 %v1020, 0.0
      %v1050 = vmax.f32 %v1021, 0.0
      %v1051 = vmax.f32 %v1022, 0.0
      %v1052 = vmax.f32 %v1023, 0.0
      %v1053 = vmax.f32 %v1024, 0.0
      %v1054 = vmax.f32 %v1025, 0.0
      %v1055 = vmax.f32 %v1026, 0.0
      %v1056 = vmax.f32 %v1027, 0.0
      %v1057 = vmax.f32 %v1028, 0.0
      %s1058 = smul.u32 %s83, 232
      %s1059 = scalar_lea.vmem [#allocation2], %s1058
      %1060 = vst [vmem:[%s1059] sm:$0xff] %v1029
      %1061 = vst [vmem:[%s1059 + $0x8] sm:$0xff] %v1030
      %1062 = vst [vmem:[%s1059 + $0x10] sm:$0xff] %v1031
      %1063 = vst [vmem:[%s1059 + $0x18] sm:$0xff] %v1032
      %1064 = vst [vmem:[%s1059 + $0x20] sm:$0xff] %v1033
      %1065 = vst [vmem:[%s1059 + $0x28] sm:$0xff] %v1034
      %1066 = vst [vmem:[%s1059 + $0x30] sm:$0xff] %v1035
      %1067 = vst [vmem:[%s1059 + $0x38] sm:$0xff] %v1036
      %1068 = vst [vmem:[%s1059 + $0x40] sm:$0xff] %v1037
      %1069 = vst [vmem:[%s1059 + $0x48] sm:$0xff] %v1038
      %1070 = vst [vmem:[%s1059 + $0x50] sm:$0xff] %v1039
      %1071 = vst [vmem:[%s1059 + $0x58] sm:$0xff] %v1040
      %1072 = vst [vmem:[%s1059 + $0x60] sm:$0xff] %v1041
      %1073 = vst [vmem:[%s1059 + $0x68] sm:$0xff] %v1042
      %1074 = vst [vmem:[%s1059 + $0x70] sm:$0xff] %v1043
      %1075 = vst [vmem:[%s1059 + $0x78] sm:$0xff] %v1044
      %1076 = vst [vmem:[%s1059 + $0x80] sm:$0xff] %v1045
      %1077 = vst [vmem:[%s1059 + $0x88] sm:$0xff] %v1046
      %1078 = vst [vmem:[%s1059 + $0x90] sm:$0xff] %v1047
      %1079 = vst [vmem:[%s1059 + $0x98] sm:$0xff] %v1048
      %1080 = vst [vmem:[%s1059 + $0xa0] sm:$0xff] %v1049
      %1081 = vst [vmem:[%s1059 + $0xa8] sm:$0xff] %v1050
      %1082 = vst [vmem:[%s1059 + $0xb0] sm:$0xff] %v1051
      %1083 = vst [vmem:[%s1059 + $0xb8] sm:$0xff] %v1052
      %1084 = vst [vmem:[%s1059 + $0xc0] sm:$0xff] %v1053
      %1085 = vst [vmem:[%s1059 + $0xc8] sm:$0xff] %v1054
      %1086 = vst [vmem:[%s1059 + $0xd0] sm:$0xff] %v1055
      %1087 = vst [vmem:[%s1059 + $0xd8] sm:$0xff] %v1056
      %1088 = vst [vmem:[%s1059 + $0xe0] sm:$0xff] %v1057
    $region58: #{_net_forward_impl.1} parent=1 // loop_footer
      %s87 = sadd.s32 1, %s83
    $region59: #{_net_forward_impl.1} parent=1 // loop_footer_branch
      %82 = sbr.rel target = $region55
    $region60: #{_net_forward_impl.1} parent=1 // loop_exit
      _
    %v1089 = vld [vmem:[#allocation2] sm:$0xff]
    %v1090 = vld [vmem:[#allocation2 + $0x8] sm:$0xff]
    %v1091 = vld [vmem:[#allocation2 + $0xe8] sm:$0xff]
    %v1092 = vld [vmem:[#allocation2 + $0xf0] sm:$0xff]
    %v1093 = vld [vmem:[#allocation2 + $0x1d0] sm:$0xff]
    %v1094 = vld [vmem:[#allocation2 + $0x1d8] sm:$0xff]
    %v1095 = vld [vmem:[#allocation2 + $0x2b8] sm:$0xff]
    %v1096 = vld [vmem:[#allocation2 + $0x2c0] sm:$0xff]
    %v1097 = vld [vmem:[#allocation2 + $0x3a0] sm:$0xff]
    %v1098 = vld [vmem:[#allocation2 + $0x3a8] sm:$0xff]
    %v1099 = vld [vmem:[#allocation2 + $0x488] sm:$0xff]
    %v1100 = vld [vmem:[#allocation2 + $0x490] sm:$0xff]
    %v1101 = vld [vmem:[#allocation2 + $0x570] sm:$0xff]
    %v1102 = vld [vmem:[#allocation2 + $0x578] sm:$0xff]
    %v1103 = vld [vmem:[#allocation2 + $0x658] sm:$0xff]
    %v1104 = vld [vmem:[#allocation2 + $0x660] sm:$0xff]
    %v1105 = vld [vmem:[#allocation2 + $0x1] sm:$0xff]
    %v1106 = vld [vmem:[#allocation2 + $0x9] sm:$0xff]
    %v1107 = vld [vmem:[#allocation2 + $0xe9] sm:$0xff]
    %v1108 = vld [vmem:[#allocation2 + $0xf1] sm:$0xff]
    %v1109 = vld [vmem:[#allocation2 + $0x1d1] sm:$0xff]
    %v1110 = vld [vmem:[#allocation2 + $0x1d9] sm:$0xff]
    %v1111 = vld [vmem:[#allocation2 + $0x2b9] sm:$0xff]
    %v1112 = vld [vmem:[#allocation2 + $0x2c1] sm:$0xff]
    %v1113 = vld [vmem:[#allocation2 + $0x3a1] sm:$0xff]
    %v1114 = vld [vmem:[#allocation2 + $0x3a9] sm:$0xff]
    %v1115 = vld [vmem:[#allocation2 + $0x489] sm:$0xff]
    %v1116 = vld [vmem:[#allocation2 + $0x491] sm:$0xff]
    %v1117 = vld [vmem:[#allocation2 + $0x571] sm:$0xff]
    %v1118 = vld [vmem:[#allocation2 + $0x579] sm:$0xff]
    %v1119 = vld [vmem:[#allocation2 + $0x659] sm:$0xff]
    %v1120 = vld [vmem:[#allocation2 + $0x661] sm:$0xff]
    %v1121 = vmax.f32 %v1089, %v1105
    %v1122 = vmax.f32 %v1090, %v1106
    %v1123 = vmax.f32 %v1091, %v1107
    %v1124 = vmax.f32 %v1092, %v1108
    %v1125 = vmax.f32 %v1093, %v1109
    %v1126 = vmax.f32 %v1094, %v1110
    %v1127 = vmax.f32 %v1095, %v1111
    %v1128 = vmax.f32 %v1096, %v1112
    %v1129 = vmax.f32 %v1097, %v1113
    %v1130 = vmax.f32 %v1098, %v1114
    %v1131 = vmax.f32 %v1099, %v1115
    %v1132 = vmax.f32 %v1100, %v1116
    %v1133 = vmax.f32 %v1101, %v1117
    %v1134 = vmax.f32 %v1102, %v1118
    %v1135 = vmax.f32 %v1103, %v1119
    %v1136 = vmax.f32 %v1104, %v1120
    %v1137 = vld [vmem:[#allocation2 + $0x10] sm:$0xff]
    %v1138 = vld [vmem:[#allocation2 + $0x18] sm:$0xff]
    %v1139 = vld [vmem:[#allocation2 + $0xf8] sm:$0xff]
    %v1140 = vld [vmem:[#allocation2 + $0x100] sm:$0xff]
    %v1141 = vld [vmem:[#allocation2 + $0x1e0] sm:$0xff]
    %v1142 = vld [vmem:[#allocation2 + $0x1e8] sm:$0xff]
    %v1143 = vld [vmem:[#allocation2 + $0x2c8] sm:$0xff]
    %v1144 = vld [vmem:[#allocation2 + $0x2d0] sm:$0xff]
    %v1145 = vld [vmem:[#allocation2 + $0x3b0] sm:$0xff]
    %v1146 = vld [vmem:[#allocation2 + $0x3b8] sm:$0xff]
    %v1147 = vld [vmem:[#allocation2 + $0x498] sm:$0xff]
    %v1148 = vld [vmem:[#allocation2 + $0x4a0] sm:$0xff]
    %v1149 = vld [vmem:[#allocation2 + $0x580] sm:$0xff]
    %v1150 = vld [vmem:[#allocation2 + $0x588] sm:$0xff]
    %v1151 = vld [vmem:[#allocation2 + $0x668] sm:$0xff]
    %v1152 = vld [vmem:[#allocation2 + $0x670] sm:$0xff]
    %v1153 = vld [vmem:[#allocation2 + $0x11] sm:$0xff]
    %v1154 = vld [vmem:[#allocation2 + $0x19] sm:$0xff]
    %v1155 = vld [vmem:[#allocation2 + $0xf9] sm:$0xff]
    %v1156 = vld [vmem:[#allocation2 + $0x101] sm:$0xff]
    %v1157 = vld [vmem:[#allocation2 + $0x1e1] sm:$0xff]
    %v1158 = vld [vmem:[#allocation2 + $0x1e9] sm:$0xff]
    %v1159 = vld [vmem:[#allocation2 + $0x2c9] sm:$0xff]
    %v1160 = vld [vmem:[#allocation2 + $0x2d1] sm:$0xff]
    %v1161 = vld [vmem:[#allocation2 + $0x3b1] sm:$0xff]
    %v1162 = vld [vmem:[#allocation2 + $0x3b9] sm:$0xff]
    %v1163 = vld [vmem:[#allocation2 + $0x499] sm:$0xff]
    %v1164 = vld [vmem:[#allocation2 + $0x4a1] sm:$0xff]
    %v1165 = vld [vmem:[#allocation2 + $0x581] sm:$0xff]
    %v1166 = vld [vmem:[#allocation2 + $0x589] sm:$0xff]
    %v1167 = vld [vmem:[#allocation2 + $0x669] sm:$0xff]
    %v1168 = vld [vmem:[#allocation2 + $0x671] sm:$0xff]
    %v1169 = vmax.f32 %v1137, %v1153
    %v1170 = vmax.f32 %v1138, %v1154
    %v1171 = vmax.f32 %v1139, %v1155
    %v1172 = vmax.f32 %v1140, %v1156
    %v1173 = vmax.f32 %v1141, %v1157
    %v1174 = vmax.f32 %v1142, %v1158
    %v1175 = vmax.f32 %v1143, %v1159
    %v1176 = vmax.f32 %v1144, %v1160
    %v1177 = vmax.f32 %v1145, %v1161
    %v1178 = vmax.f32 %v1146, %v1162
    %v1179 = vmax.f32 %v1147, %v1163
    %v1180 = vmax.f32 %v1148, %v1164
    %v1181 = vmax.f32 %v1149, %v1165
    %v1182 = vmax.f32 %v1150, %v1166
    %v1183 = vmax.f32 %v1151, %v1167
    %v1184 = vmax.f32 %v1152, %v1168
    %v1185 = vmax.f32 %v1121, %v1169
    %v1186 = vmax.f32 %v1122, %v1170
    %v1187 = vmax.f32 %v1123, %v1171
    %v1188 = vmax.f32 %v1124, %v1172
    %v1189 = vmax.f32 %v1125, %v1173
    %v1190 = vmax.f32 %v1126, %v1174
    %v1191 = vmax.f32 %v1127, %v1175
    %v1192 = vmax.f32 %v1128, %v1176
    %v1193 = vmax.f32 %v1129, %v1177
    %v1194 = vmax.f32 %v1130, %v1178
    %v1195 = vmax.f32 %v1131, %v1179
    %v1196 = vmax.f32 %v1132, %v1180
    %v1197 = vmax.f32 %v1133, %v1181
    %v1198 = vmax.f32 %v1134, %v1182
    %v1199 = vmax.f32 %v1135, %v1183
    %v1200 = vmax.f32 %v1136, %v1184
    %1201 = vst [vmem:[#allocation3] sm:$0xff] %v1185
    %1202 = vst [vmem:[#allocation3 + $0x8] sm:$0xff] %v1186
    %1203 = vst [vmem:[#allocation3 + $0x78] sm:$0xff] %v1187
    %1204 = vst [vmem:[#allocation3 + $0x80] sm:$0xff] %v1188
    %1205 = vst [vmem:[#allocation3 + $0xf0] sm:$0xff] %v1189
    %1206 = vst [vmem:[#allocation3 + $0xf8] sm:$0xff] %v1190
    %1207 = vst [vmem:[#allocation3 + $0x168] sm:$0xff] %v1191
    %1208 = vst [vmem:[#allocation3 + $0x170] sm:$0xff] %v1192
    %1209 = vst [vmem:[#allocation3 + $0x1e0] sm:$0xff] %v1193
    %1210 = vst [vmem:[#allocation3 + $0x1e8] sm:$0xff] %v1194
    %1211 = vst [vmem:[#allocation3 + $0x258] sm:$0xff] %v1195
    %1212 = vst [vmem:[#allocation3 + $0x260] sm:$0xff] %v1196
    %1213 = vst [vmem:[#allocation3 + $0x2d0] sm:$0xff] %v1197
    %1214 = vst [vmem:[#allocation3 + $0x2d8] sm:$0xff] %v1198
    %1215 = vst [vmem:[#allocation3 + $0x348] sm:$0xff] %v1199
    %1216 = vst [vmem:[#allocation3 + $0x350] sm:$0xff] %v1200
    %v1217 = vld [vmem:[#allocation2 + $0x20] sm:$0xff]
    %v1218 = vld [vmem:[#allocation2 + $0x28] sm:$0xff]
    %v1219 = vld [vmem:[#allocation2 + $0x108] sm:$0xff]
    %v1220 = vld [vmem:[#allocation2 + $0x110] sm:$0xff]
    %v1221 = vld [vmem:[#allocation2 + $0x1f0] sm:$0xff]
    %v1222 = vld [vmem:[#allocation2 + $0x1f8] sm:$0xff]
    %v1223 = vld [vmem:[#allocation2 + $0x2d8] sm:$0xff]
    %v1224 = vld [vmem:[#allocation2 + $0x2e0] sm:$0xff]
    %v1225 = vld [vmem:[#allocation2 + $0x3c0] sm:$0xff]
    %v1226 = vld [vmem:[#allocation2 + $0x3c8] sm:$0xff]
    %v1227 = vld [vmem:[#allocation2 + $0x4a8] sm:$0xff]
    %v1228 = vld [vmem:[#allocation2 + $0x4b0] sm:$0xff]
    %v1229 = vld [vmem:[#allocation2 + $0x590] sm:$0xff]
    %v1230 = vld [vmem:[#allocation2 + $0x598] sm:$0xff]
    %v1231 = vld [vmem:[#allocation2 + $0x678] sm:$0xff]
    %v1232 = vld [vmem:[#allocation2 + $0x680] sm:$0xff]
    %v1233 = vld [vmem:[#allocation2 + $0x21] sm:$0xff]
    %v1234 = vld [vmem:[#allocation2 + $0x29] sm:$0xff]
    %v1235 = vld [vmem:[#allocation2 + $0x109] sm:$0xff]
    %v1236 = vld [vmem:[#allocation2 + $0x111] sm:$0xff]
    %v1237 = vld [vmem:[#allocation2 + $0x1f1] sm:$0xff]
    %v1238 = vld [vmem:[#allocation2 + $0x1f9] sm:$0xff]
    %v1239 = vld [vmem:[#allocation2 + $0x2d9] sm:$0xff]
    %v1240 = vld [vmem:[#allocation2 + $0x2e1] sm:$0xff]
    %v1241 = vld [vmem:[#allocation2 + $0x3c1] sm:$0xff]
    %v1242 = vld [vmem:[#allocation2 + $0x3c9] sm:$0xff]
    %v1243 = vld [vmem:[#allocation2 + $0x4a9] sm:$0xff]
    %v1244 = vld [vmem:[#allocation2 + $0x4b1] sm:$0xff]
    %v1245 = vld [vmem:[#allocation2 + $0x591] sm:$0xff]
    %v1246 = vld [vmem:[#allocation2 + $0x599] sm:$0xff]
    %v1247 = vld [vmem:[#allocation2 + $0x679] sm:$0xff]
    %v1248 = vld [vmem:[#allocation2 + $0x681] sm:$0xff]
    %v1249 = vmax.f32 %v1217, %v1233
    %v1250 = vmax.f32 %v1218, %v1234
    %v1251 = vmax.f32 %v1219, %v1235
    %v1252 = vmax.f32 %v1220, %v1236
    %v1253 = vmax.f32 %v1221, %v1237
    %v1254 = vmax.f32 %v1222, %v1238
    %v1255 = vmax.f32 %v1223, %v1239
    %v1256 = vmax.f32 %v1224, %v1240
    %v1257 = vmax.f32 %v1225, %v1241
    %v1258 = vmax.f32 %v1226, %v1242
    %v1259 = vmax.f32 %v1227, %v1243
    %v1260 = vmax.f32 %v1228, %v1244
    %v1261 = vmax.f32 %v1229, %v1245
    %v1262 = vmax.f32 %v1230, %v1246
    %v1263 = vmax.f32 %v1231, %v1247
    %v1264 = vmax.f32 %v1232, %v1248
    %v1265 = vld [vmem:[#allocation2 + $0x30] sm:$0xff]
    %v1266 = vld [vmem:[#allocation2 + $0x38] sm:$0xff]
    %v1267 = vld [vmem:[#allocation2 + $0x118] sm:$0xff]
    %v1268 = vld [vmem:[#allocation2 + $0x120] sm:$0xff]
    %v1269 = vld [vmem:[#allocation2 + $0x200] sm:$0xff]
    %v1270 = vld [vmem:[#allocation2 + $0x208] sm:$0xff]
    %v1271 = vld [vmem:[#allocation2 + $0x2e8] sm:$0xff]
    %v1272 = vld [vmem:[#allocation2 + $0x2f0] sm:$0xff]
    %v1273 = vld [vmem:[#allocation2 + $0x3d0] sm:$0xff]
    %v1274 = vld [vmem:[#allocation2 + $0x3d8] sm:$0xff]
    %v1275 = vld [vmem:[#allocation2 + $0x4b8] sm:$0xff]
    %v1276 = vld [vmem:[#allocation2 + $0x4c0] sm:$0xff]
    %v1277 = vld [vmem:[#allocation2 + $0x5a0] sm:$0xff]
    %v1278 = vld [vmem:[#allocation2 + $0x5a8] sm:$0xff]
    %v1279 = vld [vmem:[#allocation2 + $0x688] sm:$0xff]
    %v1280 = vld [vmem:[#allocation2 + $0x690] sm:$0xff]
    %v1281 = vld [vmem:[#allocation2 + $0x31] sm:$0xff]
    %v1282 = vld [vmem:[#allocation2 + $0x39] sm:$0xff]
    %v1283 = vld [vmem:[#allocation2 + $0x119] sm:$0xff]
    %v1284 = vld [vmem:[#allocation2 + $0x121] sm:$0xff]
    %v1285 = vld [vmem:[#allocation2 + $0x201] sm:$0xff]
    %v1286 = vld [vmem:[#allocation2 + $0x209] sm:$0xff]
    %v1287 = vld [vmem:[#allocation2 + $0x2e9] sm:$0xff]
    %v1288 = vld [vmem:[#allocation2 + $0x2f1] sm:$0xff]
    %v1289 = vld [vmem:[#allocation2 + $0x3d1] sm:$0xff]
    %v1290 = vld [vmem:[#allocation2 + $0x3d9] sm:$0xff]
    %v1291 = vld [vmem:[#allocation2 + $0x4b9] sm:$0xff]
    %v1292 = vld [vmem:[#allocation2 + $0x4c1] sm:$0xff]
    %v1293 = vld [vmem:[#allocation2 + $0x5a1] sm:$0xff]
    %v1294 = vld [vmem:[#allocation2 + $0x5a9] sm:$0xff]
    %v1295 = vld [vmem:[#allocation2 + $0x689] sm:$0xff]
    %v1296 = vld [vmem:[#allocation2 + $0x691] sm:$0xff]
    %v1297 = vmax.f32 %v1265, %v1281
    %v1298 = vmax.f32 %v1266, %v1282
    %v1299 = vmax.f32 %v1267, %v1283
    %v1300 = vmax.f32 %v1268, %v1284
    %v1301 = vmax.f32 %v1269, %v1285
    %v1302 = vmax.f32 %v1270, %v1286
    %v1303 = vmax.f32 %v1271, %v1287
    %v1304 = vmax.f32 %v1272, %v1288
    %v1305 = vmax.f32 %v1273, %v1289
    %v1306 = vmax.f32 %v1274, %v1290
    %v1307 = vmax.f32 %v1275, %v1291
    %v1308 = vmax.f32 %v1276, %v1292
    %v1309 = vmax.f32 %v1277, %v1293
    %v1310 = vmax.f32 %v1278, %v1294
    %v1311 = vmax.f32 %v1279, %v1295
    %v1312 = vmax.f32 %v1280, %v1296
    %v1313 = vmax.f32 %v1249, %v1297
    %v1314 = vmax.f32 %v1250, %v1298
    %v1315 = vmax.f32 %v1251, %v1299
    %v1316 = vmax.f32 %v1252, %v1300
    %v1317 = vmax.f32 %v1253, %v1301
    %v1318 = vmax.f32 %v1254, %v1302
    %v1319 = vmax.f32 %v1255, %v1303
    %v1320 = vmax.f32 %v1256, %v1304
    %v1321 = vmax.f32 %v1257, %v1305
    %v1322 = vmax.f32 %v1258, %v1306
    %v1323 = vmax.f32 %v1259, %v1307
    %v1324 = vmax.f32 %v1260, %v1308
    %v1325 = vmax.f32 %v1261, %v1309
    %v1326 = vmax.f32 %v1262, %v1310
    %v1327 = vmax.f32 %v1263, %v1311
    %v1328 = vmax.f32 %v1264, %v1312
    %1329 = vst [vmem:[#allocation3 + $0x10] sm:$0xff] %v1313
    %1330 = vst [vmem:[#allocation3 + $0x18] sm:$0xff] %v1314
    %1331 = vst [vmem:[#allocation3 + $0x88] sm:$0xff] %v1315
    %1332 = vst [vmem:[#allocation3 + $0x90] sm:$0xff] %v1316
    %1333 = vst [vmem:[#allocation3 + $0x100] sm:$0xff] %v1317
    %1334 = vst [vmem:[#allocation3 + $0x108] sm:$0xff] %v1318
    %1335 = vst [vmem:[#allocation3 + $0x178] sm:$0xff] %v1319
    %1336 = vst [vmem:[#allocation3 + $0x180] sm:$0xff] %v1320
    %1337 = vst [vmem:[#allocation3 + $0x1f0] sm:$0xff] %v1321
    %1338 = vst [vmem:[#allocation3 + $0x1f8] sm:$0xff] %v1322
    %1339 = vst [vmem:[#allocation3 + $0x268] sm:$0xff] %v1323
    %1340 = vst [vmem:[#allocation3 + $0x270] sm:$0xff] %v1324
    %1341 = vst [vmem:[#allocation3 + $0x2e0] sm:$0xff] %v1325
    %1342 = vst [vmem:[#allocation3 + $0x2e8] sm:$0xff] %v1326
    %1343 = vst [vmem:[#allocation3 + $0x358] sm:$0xff] %v1327
    %1344 = vst [vmem:[#allocation3 + $0x360] sm:$0xff] %v1328
    %v1345 = vld [vmem:[#allocation2 + $0x40] sm:$0xff]
    %v1346 = vld [vmem:[#allocation2 + $0x48] sm:$0xff]
    %v1347 = vld [vmem:[#allocation2 + $0x128] sm:$0xff]
    %v1348 = vld [vmem:[#allocation2 + $0x130] sm:$0xff]
    %v1349 = vld [vmem:[#allocation2 + $0x210] sm:$0xff]
    %v1350 = vld [vmem:[#allocation2 + $0x218] sm:$0xff]
    %v1351 = vld [vmem:[#allocation2 + $0x2f8] sm:$0xff]
    %v1352 = vld [vmem:[#allocation2 + $0x300] sm:$0xff]
    %v1353 = vld [vmem:[#allocation2 + $0x3e0] sm:$0xff]
    %v1354 = vld [vmem:[#allocation2 + $0x3e8] sm:$0xff]
    %v1355 = vld [vmem:[#allocation2 + $0x4c8] sm:$0xff]
    %v1356 = vld [vmem:[#allocation2 + $0x4d0] sm:$0xff]
    %v1357 = vld [vmem:[#allocation2 + $0x5b0] sm:$0xff]
    %v1358 = vld [vmem:[#allocation2 + $0x5b8] sm:$0xff]
    %v1359 = vld [vmem:[#allocation2 + $0x698] sm:$0xff]
    %v1360 = vld [vmem:[#allocation2 + $0x6a0] sm:$0xff]
    %v1361 = vld [vmem:[#allocation2 + $0x41] sm:$0xff]
    %v1362 = vld [vmem:[#allocation2 + $0x49] sm:$0xff]
    %v1363 = vld [vmem:[#allocation2 + $0x129] sm:$0xff]
    %v1364 = vld [vmem:[#allocation2 + $0x131] sm:$0xff]
    %v1365 = vld [vmem:[#allocation2 + $0x211] sm:$0xff]
    %v1366 = vld [vmem:[#allocation2 + $0x219] sm:$0xff]
    %v1367 = vld [vmem:[#allocation2 + $0x2f9] sm:$0xff]
    %v1368 = vld [vmem:[#allocation2 + $0x301] sm:$0xff]
    %v1369 = vld [vmem:[#allocation2 + $0x3e1] sm:$0xff]
    %v1370 = vld [vmem:[#allocation2 + $0x3e9] sm:$0xff]
    %v1371 = vld [vmem:[#allocation2 + $0x4c9] sm:$0xff]
    %v1372 = vld [vmem:[#allocation2 + $0x4d1] sm:$0xff]
    %v1373 = vld [vmem:[#allocation2 + $0x5b1] sm:$0xff]
    %v1374 = vld [vmem:[#allocation2 + $0x5b9] sm:$0xff]
    %v1375 = vld [vmem:[#allocation2 + $0x699] sm:$0xff]
    %v1376 = vld [vmem:[#allocation2 + $0x6a1] sm:$0xff]
    %v1377 = vmax.f32 %v1345, %v1361
    %v1378 = vmax.f32 %v1346, %v1362
    %v1379 = vmax.f32 %v1347, %v1363
    %v1380 = vmax.f32 %v1348, %v1364
    %v1381 = vmax.f32 %v1349, %v1365
    %v1382 = vmax.f32 %v1350, %v1366
    %v1383 = vmax.f32 %v1351, %v1367
    %v1384 = vmax.f32 %v1352, %v1368
    %v1385 = vmax.f32 %v1353, %v1369
    %v1386 = vmax.f32 %v1354, %v1370
    %v1387 = vmax.f32 %v1355, %v1371
    %v1388 = vmax.f32 %v1356, %v1372
    %v1389 = vmax.f32 %v1357, %v1373
    %v1390 = vmax.f32 %v1358, %v1374
    %v1391 = vmax.f32 %v1359, %v1375
    %v1392 = vmax.f32 %v1360, %v1376
    %v1393 = vld [vmem:[#allocation2 + $0x50] sm:$0xff]
    %v1394 = vld [vmem:[#allocation2 + $0x58] sm:$0xff]
    %v1395 = vld [vmem:[#allocation2 + $0x138] sm:$0xff]
    %v1396 = vld [vmem:[#allocation2 + $0x140] sm:$0xff]
    %v1397 = vld [vmem:[#allocation2 + $0x220] sm:$0xff]
    %v1398 = vld [vmem:[#allocation2 + $0x228] sm:$0xff]
    %v1399 = vld [vmem:[#allocation2 + $0x308] sm:$0xff]
    %v1400 = vld [vmem:[#allocation2 + $0x310] sm:$0xff]
    %v1401 = vld [vmem:[#allocation2 + $0x3f0] sm:$0xff]
    %v1402 = vld [vmem:[#allocation2 + $0x3f8] sm:$0xff]
    %v1403 = vld [vmem:[#allocation2 + $0x4d8] sm:$0xff]
    %v1404 = vld [vmem:[#allocation2 + $0x4e0] sm:$0xff]
    %v1405 = vld [vmem:[#allocation2 + $0x5c0] sm:$0xff]
    %v1406 = vld [vmem:[#allocation2 + $0x5c8] sm:$0xff]
    %v1407 = vld [vmem:[#allocation2 + $0x6a8] sm:$0xff]
    %v1408 = vld [vmem:[#allocation2 + $0x6b0] sm:$0xff]
    %v1409 = vld [vmem:[#allocation2 + $0x51] sm:$0xff]
    %v1410 = vld [vmem:[#allocation2 + $0x59] sm:$0xff]
    %v1411 = vld [vmem:[#allocation2 + $0x139] sm:$0xff]
    %v1412 = vld [vmem:[#allocation2 + $0x141] sm:$0xff]
    %v1413 = vld [vmem:[#allocation2 + $0x221] sm:$0xff]
    %v1414 = vld [vmem:[#allocation2 + $0x229] sm:$0xff]
    %v1415 = vld [vmem:[#allocation2 + $0x309] sm:$0xff]
    %v1416 = vld [vmem:[#allocation2 + $0x311] sm:$0xff]
    %v1417 = vld [vmem:[#allocation2 + $0x3f1] sm:$0xff]
    %v1418 = vld [vmem:[#allocation2 + $0x3f9] sm:$0xff]
    %v1419 = vld [vmem:[#allocation2 + $0x4d9] sm:$0xff]
    %v1420 = vld [vmem:[#allocation2 + $0x4e1] sm:$0xff]
    %v1421 = vld [vmem:[#allocation2 + $0x5c1] sm:$0xff]
    %v1422 = vld [vmem:[#allocation2 + $0x5c9] sm:$0xff]
    %v1423 = vld [vmem:[#allocation2 + $0x6a9] sm:$0xff]
    %v1424 = vld [vmem:[#allocation2 + $0x6b1] sm:$0xff]
    %v1425 = vmax.f32 %v1393, %v1409
    %v1426 = vmax.f32 %v1394, %v1410
    %v1427 = vmax.f32 %v1395, %v1411
    %v1428 = vmax.f32 %v1396, %v1412
    %v1429 = vmax.f32 %v1397, %v1413
    %v1430 = vmax.f32 %v1398, %v1414
    %v1431 = vmax.f32 %v1399, %v1415
    %v1432 = vmax.f32 %v1400, %v1416
    %v1433 = vmax.f32 %v1401, %v1417
    %v1434 = vmax.f32 %v1402, %v1418
    %v1435 = vmax.f32 %v1403, %v1419
    %v1436 = vmax.f32 %v1404, %v1420
    %v1437 = vmax.f32 %v1405, %v1421
    %v1438 = vmax.f32 %v1406, %v1422
    %v1439 = vmax.f32 %v1407, %v1423
    %v1440 = vmax.f32 %v1408, %v1424
    %v1441 = vmax.f32 %v1377, %v1425
    %v1442 = vmax.f32 %v1378, %v1426
    %v1443 = vmax.f32 %v1379, %v1427
    %v1444 = vmax.f32 %v1380, %v1428
    %v1445 = vmax.f32 %v1381, %v1429
    %v1446 = vmax.f32 %v1382, %v1430
    %v1447 = vmax.f32 %v1383, %v1431
    %v1448 = vmax.f32 %v1384, %v1432
    %v1449 = vmax.f32 %v1385, %v1433
    %v1450 = vmax.f32 %v1386, %v1434
    %v1451 = vmax.f32 %v1387, %v1435
    %v1452 = vmax.f32 %v1388, %v1436
    %v1453 = vmax.f32 %v1389, %v1437
    %v1454 = vmax.f32 %v1390, %v1438
    %v1455 = vmax.f32 %v1391, %v1439
    %v1456 = vmax.f32 %v1392, %v1440
    %1457 = vst [vmem:[#allocation3 + $0x20] sm:$0xff] %v1441
    %1458 = vst [vmem:[#allocation3 + $0x28] sm:$0xff] %v1442
    %1459 = vst [vmem:[#allocation3 + $0x98] sm:$0xff] %v1443
    %1460 = vst [vmem:[#allocation3 + $0xa0] sm:$0xff] %v1444
    %1461 = vst [vmem:[#allocation3 + $0x110] sm:$0xff] %v1445
    %1462 = vst [vmem:[#allocation3 + $0x118] sm:$0xff] %v1446
    %1463 = vst [vmem:[#allocation3 + $0x188] sm:$0xff] %v1447
    %1464 = vst [vmem:[#allocation3 + $0x190] sm:$0xff] %v1448
    %1465 = vst [vmem:[#allocation3 + $0x200] sm:$0xff] %v1449
    %1466 = vst [vmem:[#allocation3 + $0x208] sm:$0xff] %v1450
    %1467 = vst [vmem:[#allocation3 + $0x278] sm:$0xff] %v1451
    %1468 = vst [vmem:[#allocation3 + $0x280] sm:$0xff] %v1452
    %1469 = vst [vmem:[#allocation3 + $0x2f0] sm:$0xff] %v1453
    %1470 = vst [vmem:[#allocation3 + $0x2f8] sm:$0xff] %v1454
    %1471 = vst [vmem:[#allocation3 + $0x368] sm:$0xff] %v1455
    %1472 = vst [vmem:[#allocation3 + $0x370] sm:$0xff] %v1456
    %v1473 = vld [vmem:[#allocation2 + $0x60] sm:$0xff]
    %v1474 = vld [vmem:[#allocation2 + $0x68] sm:$0xff]
    %v1475 = vld [vmem:[#allocation2 + $0x148] sm:$0xff]
    %v1476 = vld [vmem:[#allocation2 + $0x150] sm:$0xff]
    %v1477 = vld [vmem:[#allocation2 + $0x230] sm:$0xff]
    %v1478 = vld [vmem:[#allocation2 + $0x238] sm:$0xff]
    %v1479 = vld [vmem:[#allocation2 + $0x318] sm:$0xff]
    %v1480 = vld [vmem:[#allocation2 + $0x320] sm:$0xff]
    %v1481 = vld [vmem:[#allocation2 + $0x400] sm:$0xff]
    %v1482 = vld [vmem:[#allocation2 + $0x408] sm:$0xff]
    %v1483 = vld [vmem:[#allocation2 + $0x4e8] sm:$0xff]
    %v1484 = vld [vmem:[#allocation2 + $0x4f0] sm:$0xff]
    %v1485 = vld [vmem:[#allocation2 + $0x5d0] sm:$0xff]
    %v1486 = vld [vmem:[#allocation2 + $0x5d8] sm:$0xff]
    %v1487 = vld [vmem:[#allocation2 + $0x6b8] sm:$0xff]
    %v1488 = vld [vmem:[#allocation2 + $0x6c0] sm:$0xff]
    %v1489 = vld [vmem:[#allocation2 + $0x61] sm:$0xff]
    %v1490 = vld [vmem:[#allocation2 + $0x69] sm:$0xff]
    %v1491 = vld [vmem:[#allocation2 + $0x149] sm:$0xff]
    %v1492 = vld [vmem:[#allocation2 + $0x151] sm:$0xff]
    %v1493 = vld [vmem:[#allocation2 + $0x231] sm:$0xff]
    %v1494 = vld [vmem:[#allocation2 + $0x239] sm:$0xff]
    %v1495 = vld [vmem:[#allocation2 + $0x319] sm:$0xff]
    %v1496 = vld [vmem:[#allocation2 + $0x321] sm:$0xff]
    %v1497 = vld [vmem:[#allocation2 + $0x401] sm:$0xff]
    %v1498 = vld [vmem:[#allocation2 + $0x409] sm:$0xff]
    %v1499 = vld [vmem:[#allocation2 + $0x4e9] sm:$0xff]
    %v1500 = vld [vmem:[#allocation2 + $0x4f1] sm:$0xff]
    %v1501 = vld [vmem:[#allocation2 + $0x5d1] sm:$0xff]
    %v1502 = vld [vmem:[#allocation2 + $0x5d9] sm:$0xff]
    %v1503 = vld [vmem:[#allocation2 + $0x6b9] sm:$0xff]
    %v1504 = vld [vmem:[#allocation2 + $0x6c1] sm:$0xff]
    %v1505 = vmax.f32 %v1473, %v1489
    %v1506 = vmax.f32 %v1474, %v1490
    %v1507 = vmax.f32 %v1475, %v1491
    %v1508 = vmax.f32 %v1476, %v1492
    %v1509 = vmax.f32 %v1477, %v1493
    %v1510 = vmax.f32 %v1478, %v1494
    %v1511 = vmax.f32 %v1479, %v1495
    %v1512 = vmax.f32 %v1480, %v1496
    %v1513 = vmax.f32 %v1481, %v1497
    %v1514 = vmax.f32 %v1482, %v1498
    %v1515 = vmax.f32 %v1483, %v1499
    %v1516 = vmax.f32 %v1484, %v1500
    %v1517 = vmax.f32 %v1485, %v1501
    %v1518 = vmax.f32 %v1486, %v1502
    %v1519 = vmax.f32 %v1487, %v1503
    %v1520 = vmax.f32 %v1488, %v1504
    %v1521 = vld [vmem:[#allocation2 + $0x70] sm:$0xff]
    %v1522 = vld [vmem:[#allocation2 + $0x78] sm:$0xff]
    %v1523 = vld [vmem:[#allocation2 + $0x158] sm:$0xff]
    %v1524 = vld [vmem:[#allocation2 + $0x160] sm:$0xff]
    %v1525 = vld [vmem:[#allocation2 + $0x240] sm:$0xff]
    %v1526 = vld [vmem:[#allocation2 + $0x248] sm:$0xff]
    %v1527 = vld [vmem:[#allocation2 + $0x328] sm:$0xff]
    %v1528 = vld [vmem:[#allocation2 + $0x330] sm:$0xff]
    %v1529 = vld [vmem:[#allocation2 + $0x410] sm:$0xff]
    %v1530 = vld [vmem:[#allocation2 + $0x418] sm:$0xff]
    %v1531 = vld [vmem:[#allocation2 + $0x4f8] sm:$0xff]
    %v1532 = vld [vmem:[#allocation2 + $0x500] sm:$0xff]
    %v1533 = vld [vmem:[#allocation2 + $0x5e0] sm:$0xff]
    %v1534 = vld [vmem:[#allocation2 + $0x5e8] sm:$0xff]
    %v1535 = vld [vmem:[#allocation2 + $0x6c8] sm:$0xff]
    %v1536 = vld [vmem:[#allocation2 + $0x6d0] sm:$0xff]
    %v1537 = vld [vmem:[#allocation2 + $0x71] sm:$0xff]
    %v1538 = vld [vmem:[#allocation2 + $0x79] sm:$0xff]
    %v1539 = vld [vmem:[#allocation2 + $0x159] sm:$0xff]
    %v1540 = vld [vmem:[#allocation2 + $0x161] sm:$0xff]
    %v1541 = vld [vmem:[#allocation2 + $0x241] sm:$0xff]
    %v1542 = vld [vmem:[#allocation2 + $0x249] sm:$0xff]
    %v1543 = vld [vmem:[#allocation2 + $0x329] sm:$0xff]
    %v1544 = vld [vmem:[#allocation2 + $0x331] sm:$0xff]
    %v1545 = vld [vmem:[#allocation2 + $0x411] sm:$0xff]
    %v1546 = vld [vmem:[#allocation2 + $0x419] sm:$0xff]
    %v1547 = vld [vmem:[#allocation2 + $0x4f9] sm:$0xff]
    %v1548 = vld [vmem:[#allocation2 + $0x501] sm:$0xff]
    %v1549 = vld [vmem:[#allocation2 + $0x5e1] sm:$0xff]
    %v1550 = vld [vmem:[#allocation2 + $0x5e9] sm:$0xff]
    %v1551 = vld [vmem:[#allocation2 + $0x6c9] sm:$0xff]
    %v1552 = vld [vmem:[#allocation2 + $0x6d1] sm:$0xff]
    %v1553 = vmax.f32 %v1521, %v1537
    %v1554 = vmax.f32 %v1522, %v1538
    %v1555 = vmax.f32 %v1523, %v1539
    %v1556 = vmax.f32 %v1524, %v1540
    %v1557 = vmax.f32 %v1525, %v1541
    %v1558 = vmax.f32 %v1526, %v1542
    %v1559 = vmax.f32 %v1527, %v1543
    %v1560 = vmax.f32 %v1528, %v1544
    %v1561 = vmax.f32 %v1529, %v1545
    %v1562 = vmax.f32 %v1530, %v1546
    %v1563 = vmax.f32 %v1531, %v1547
    %v1564 = vmax.f32 %v1532, %v1548
    %v1565 = vmax.f32 %v1533, %v1549
    %v1566 = vmax.f32 %v1534, %v1550
    %v1567 = vmax.f32 %v1535, %v1551
    %v1568 = vmax.f32 %v1536, %v1552
    %v1569 = vmax.f32 %v1505, %v1553
    %v1570 = vmax.f32 %v1506, %v1554
    %v1571 = vmax.f32 %v1507, %v1555
    %v1572 = vmax.f32 %v1508, %v1556
    %v1573 = vmax.f32 %v1509, %v1557
    %v1574 = vmax.f32 %v1510, %v1558
    %v1575 = vmax.f32 %v1511, %v1559
    %v1576 = vmax.f32 %v1512, %v1560
    %v1577 = vmax.f32 %v1513, %v1561
    %v1578 = vmax.f32 %v1514, %v1562
    %v1579 = vmax.f32 %v1515, %v1563
    %v1580 = vmax.f32 %v1516, %v1564
    %v1581 = vmax.f32 %v1517, %v1565
    %v1582 = vmax.f32 %v1518, %v1566
    %v1583 = vmax.f32 %v1519, %v1567
    %v1584 = vmax.f32 %v1520, %v1568
    %1585 = vst [vmem:[#allocation3 + $0x30] sm:$0xff] %v1569
    %1586 = vst [vmem:[#allocation3 + $0x38] sm:$0xff] %v1570
    %1587 = vst [vmem:[#allocation3 + $0xa8] sm:$0xff] %v1571
    %1588 = vst [vmem:[#allocation3 + $0xb0] sm:$0xff] %v1572
    %1589 = vst [vmem:[#allocation3 + $0x120] sm:$0xff] %v1573
    %1590 = vst [vmem:[#allocation3 + $0x128] sm:$0xff] %v1574
    %1591 = vst [vmem:[#allocation3 + $0x198] sm:$0xff] %v1575
    %1592 = vst [vmem:[#allocation3 + $0x1a0] sm:$0xff] %v1576
    %1593 = vst [vmem:[#allocation3 + $0x210] sm:$0xff] %v1577
    %1594 = vst [vmem:[#allocation3 + $0x218] sm:$0xff] %v1578
    %1595 = vst [vmem:[#allocation3 + $0x288] sm:$0xff] %v1579
    %1596 = vst [vmem:[#allocation3 + $0x290] sm:$0xff] %v1580
    %1597 = vst [vmem:[#allocation3 + $0x300] sm:$0xff] %v1581
    %1598 = vst [vmem:[#allocation3 + $0x308] sm:$0xff] %v1582
    %1599 = vst [vmem:[#allocation3 + $0x378] sm:$0xff] %v1583
    %1600 = vst [vmem:[#allocation3 + $0x380] sm:$0xff] %v1584
    %v1601 = vld [vmem:[#allocation2 + $0x80] sm:$0xff]
    %v1602 = vld [vmem:[#allocation2 + $0x88] sm:$0xff]
    %v1603 = vld [vmem:[#allocation2 + $0x168] sm:$0xff]
    %v1604 = vld [vmem:[#allocation2 + $0x170] sm:$0xff]
    %v1605 = vld [vmem:[#allocation2 + $0x250] sm:$0xff]
    %v1606 = vld [vmem:[#allocation2 + $0x258] sm:$0xff]
    %v1607 = vld [vmem:[#allocation2 + $0x338] sm:$0xff]
    %v1608 = vld [vmem:[#allocation2 + $0x340] sm:$0xff]
    %v1609 = vld [vmem:[#allocation2 + $0x420] sm:$0xff]
    %v1610 = vld [vmem:[#allocation2 + $0x428] sm:$0xff]
    %v1611 = vld [vmem:[#allocation2 + $0x508] sm:$0xff]
    %v1612 = vld [vmem:[#allocation2 + $0x510] sm:$0xff]
    %v1613 = vld [vmem:[#allocation2 + $0x5f0] sm:$0xff]
    %v1614 = vld [vmem:[#allocation2 + $0x5f8] sm:$0xff]
    %v1615 = vld [vmem:[#allocation2 + $0x6d8] sm:$0xff]
    %v1616 = vld [vmem:[#allocation2 + $0x6e0] sm:$0xff]
    %v1617 = vld [vmem:[#allocation2 + $0x81] sm:$0xff]
    %v1618 = vld [vmem:[#allocation2 + $0x89] sm:$0xff]
    %v1619 = vld [vmem:[#allocation2 + $0x169] sm:$0xff]
    %v1620 = vld [vmem:[#allocation2 + $0x171] sm:$0xff]
    %v1621 = vld [vmem:[#allocation2 + $0x251] sm:$0xff]
    %v1622 = vld [vmem:[#allocation2 + $0x259] sm:$0xff]
    %v1623 = vld [vmem:[#allocation2 + $0x339] sm:$0xff]
    %v1624 = vld [vmem:[#allocation2 + $0x341] sm:$0xff]
    %v1625 = vld [vmem:[#allocation2 + $0x421] sm:$0xff]
    %v1626 = vld [vmem:[#allocation2 + $0x429] sm:$0xff]
    %v1627 = vld [vmem:[#allocation2 + $0x509] sm:$0xff]
    %v1628 = vld [vmem:[#allocation2 + $0x511] sm:$0xff]
    %v1629 = vld [vmem:[#allocation2 + $0x5f1] sm:$0xff]
    %v1630 = vld [vmem:[#allocation2 + $0x5f9] sm:$0xff]
    %v1631 = vld [vmem:[#allocation2 + $0x6d9] sm:$0xff]
    %v1632 = vld [vmem:[#allocation2 + $0x6e1] sm:$0xff]
    %v1633 = vmax.f32 %v1601, %v1617
    %v1634 = vmax.f32 %v1602, %v1618
    %v1635 = vmax.f32 %v1603, %v1619
    %v1636 = vmax.f32 %v1604, %v1620
    %v1637 = vmax.f32 %v1605, %v1621
    %v1638 = vmax.f32 %v1606, %v1622
    %v1639 = vmax.f32 %v1607, %v1623
    %v1640 = vmax.f32 %v1608, %v1624
    %v1641 = vmax.f32 %v1609, %v1625
    %v1642 = vmax.f32 %v1610, %v1626
    %v1643 = vmax.f32 %v1611, %v1627
    %v1644 = vmax.f32 %v1612, %v1628
    %v1645 = vmax.f32 %v1613, %v1629
    %v1646 = vmax.f32 %v1614, %v1630
    %v1647 = vmax.f32 %v1615, %v1631
    %v1648 = vmax.f32 %v1616, %v1632
    %v1649 = vld [vmem:[#allocation2 + $0x90] sm:$0xff]
    %v1650 = vld [vmem:[#allocation2 + $0x98] sm:$0xff]
    %v1651 = vld [vmem:[#allocation2 + $0x178] sm:$0xff]
    %v1652 = vld [vmem:[#allocation2 + $0x180] sm:$0xff]
    %v1653 = vld [vmem:[#allocation2 + $0x260] sm:$0xff]
    %v1654 = vld [vmem:[#allocation2 + $0x268] sm:$0xff]
    %v1655 = vld [vmem:[#allocation2 + $0x348] sm:$0xff]
    %v1656 = vld [vmem:[#allocation2 + $0x350] sm:$0xff]
    %v1657 = vld [vmem:[#allocation2 + $0x430] sm:$0xff]
    %v1658 = vld [vmem:[#allocation2 + $0x438] sm:$0xff]
    %v1659 = vld [vmem:[#allocation2 + $0x518] sm:$0xff]
    %v1660 = vld [vmem:[#allocation2 + $0x520] sm:$0xff]
    %v1661 = vld [vmem:[#allocation2 + $0x600] sm:$0xff]
    %v1662 = vld [vmem:[#allocation2 + $0x608] sm:$0xff]
    %v1663 = vld [vmem:[#allocation2 + $0x6e8] sm:$0xff]
    %v1664 = vld [vmem:[#allocation2 + $0x6f0] sm:$0xff]
    %v1665 = vld [vmem:[#allocation2 + $0x91] sm:$0xff]
    %v1666 = vld [vmem:[#allocation2 + $0x99] sm:$0xff]
    %v1667 = vld [vmem:[#allocation2 + $0x179] sm:$0xff]
    %v1668 = vld [vmem:[#allocation2 + $0x181] sm:$0xff]
    %v1669 = vld [vmem:[#allocation2 + $0x261] sm:$0xff]
    %v1670 = vld [vmem:[#allocation2 + $0x269] sm:$0xff]
    %v1671 = vld [vmem:[#allocation2 + $0x349] sm:$0xff]
    %v1672 = vld [vmem:[#allocation2 + $0x351] sm:$0xff]
    %v1673 = vld [vmem:[#allocation2 + $0x431] sm:$0xff]
    %v1674 = vld [vmem:[#allocation2 + $0x439] sm:$0xff]
    %v1675 = vld [vmem:[#allocation2 + $0x519] sm:$0xff]
    %v1676 = vld [vmem:[#allocation2 + $0x521] sm:$0xff]
    %v1677 = vld [vmem:[#allocation2 + $0x601] sm:$0xff]
    %v1678 = vld [vmem:[#allocation2 + $0x609] sm:$0xff]
    %v1679 = vld [vmem:[#allocation2 + $0x6e9] sm:$0xff]
    %v1680 = vld [vmem:[#allocation2 + $0x6f1] sm:$0xff]
    %v1681 = vmax.f32 %v1649, %v1665
    %v1682 = vmax.f32 %v1650, %v1666
    %v1683 = vmax.f32 %v1651, %v1667
    %v1684 = vmax.f32 %v1652, %v1668
    %v1685 = vmax.f32 %v1653, %v1669
    %v1686 = vmax.f32 %v1654, %v1670
    %v1687 = vmax.f32 %v1655, %v1671
    %v1688 = vmax.f32 %v1656, %v1672
    %v1689 = vmax.f32 %v1657, %v1673
    %v1690 = vmax.f32 %v1658, %v1674
    %v1691 = vmax.f32 %v1659, %v1675
    %v1692 = vmax.f32 %v1660, %v1676
    %v1693 = vmax.f32 %v1661, %v1677
    %v1694 = vmax.f32 %v1662, %v1678
    %v1695 = vmax.f32 %v1663, %v1679
    %v1696 = vmax.f32 %v1664, %v1680
    %v1697 = vmax.f32 %v1633, %v1681
    %v1698 = vmax.f32 %v1634, %v1682
    %v1699 = vmax.f32 %v1635, %v1683
    %v1700 = vmax.f32 %v1636, %v1684
    %v1701 = vmax.f32 %v1637, %v1685
    %v1702 = vmax.f32 %v1638, %v1686
    %v1703 = vmax.f32 %v1639, %v1687
    %v1704 = vmax.f32 %v1640, %v1688
    %v1705 = vmax.f32 %v1641, %v1689
    %v1706 = vmax.f32 %v1642, %v1690
    %v1707 = vmax.f32 %v1643, %v1691
    %v1708 = vmax.f32 %v1644, %v1692
    %v1709 = vmax.f32 %v1645, %v1693
    %v1710 = vmax.f32 %v1646, %v1694
    %v1711 = vmax.f32 %v1647, %v1695
    %v1712 = vmax.f32 %v1648, %v1696
    %1713 = vst [vmem:[#allocation3 + $0x40] sm:$0xff] %v1697
    %1714 = vst [vmem:[#allocation3 + $0x48] sm:$0xff] %v1698
    %1715 = vst [vmem:[#allocation3 + $0xb8] sm:$0xff] %v1699
    %1716 = vst [vmem:[#allocation3 + $0xc0] sm:$0xff] %v1700
    %1717 = vst [vmem:[#allocation3 + $0x130] sm:$0xff] %v1701
    %1718 = vst [vmem:[#allocation3 + $0x138] sm:$0xff] %v1702
    %1719 = vst [vmem:[#allocation3 + $0x1a8] sm:$0xff] %v1703
    %1720 = vst [vmem:[#allocation3 + $0x1b0] sm:$0xff] %v1704
    %1721 = vst [vmem:[#allocation3 + $0x220] sm:$0xff] %v1705
    %1722 = vst [vmem:[#allocation3 + $0x228] sm:$0xff] %v1706
    %1723 = vst [vmem:[#allocation3 + $0x298] sm:$0xff] %v1707
    %1724 = vst [vmem:[#allocation3 + $0x2a0] sm:$0xff] %v1708
    %1725 = vst [vmem:[#allocation3 + $0x310] sm:$0xff] %v1709
    %1726 = vst [vmem:[#allocation3 + $0x318] sm:$0xff] %v1710
    %1727 = vst [vmem:[#allocation3 + $0x388] sm:$0xff] %v1711
    %1728 = vst [vmem:[#allocation3 + $0x390] sm:$0xff] %v1712
    %v1729 = vld [vmem:[#allocation2 + $0xa0] sm:$0xff]
    %v1730 = vld [vmem:[#allocation2 + $0xa8] sm:$0xff]
    %v1731 = vld [vmem:[#allocation2 + $0x188] sm:$0xff]
    %v1732 = vld [vmem:[#allocation2 + $0x190] sm:$0xff]
    %v1733 = vld [vmem:[#allocation2 + $0x270] sm:$0xff]
    %v1734 = vld [vmem:[#allocation2 + $0x278] sm:$0xff]
    %v1735 = vld [vmem:[#allocation2 + $0x358] sm:$0xff]
    %v1736 = vld [vmem:[#allocation2 + $0x360] sm:$0xff]
    %v1737 = vld [vmem:[#allocation2 + $0x440] sm:$0xff]
    %v1738 = vld [vmem:[#allocation2 + $0x448] sm:$0xff]
    %v1739 = vld [vmem:[#allocation2 + $0x528] sm:$0xff]
    %v1740 = vld [vmem:[#allocation2 + $0x530] sm:$0xff]
    %v1741 = vld [vmem:[#allocation2 + $0x610] sm:$0xff]
    %v1742 = vld [vmem:[#allocation2 + $0x618] sm:$0xff]
    %v1743 = vld [vmem:[#allocation2 + $0x6f8] sm:$0xff]
    %v1744 = vld [vmem:[#allocation2 + $0x700] sm:$0xff]
    %v1745 = vld [vmem:[#allocation2 + $0xa1] sm:$0xff]
    %v1746 = vld [vmem:[#allocation2 + $0xa9] sm:$0xff]
    %v1747 = vld [vmem:[#allocation2 + $0x189] sm:$0xff]
    %v1748 = vld [vmem:[#allocation2 + $0x191] sm:$0xff]
    %v1749 = vld [vmem:[#allocation2 + $0x271] sm:$0xff]
    %v1750 = vld [vmem:[#allocation2 + $0x279] sm:$0xff]
    %v1751 = vld [vmem:[#allocation2 + $0x359] sm:$0xff]
    %v1752 = vld [vmem:[#allocation2 + $0x361] sm:$0xff]
    %v1753 = vld [vmem:[#allocation2 + $0x441] sm:$0xff]
    %v1754 = vld [vmem:[#allocation2 + $0x449] sm:$0xff]
    %v1755 = vld [vmem:[#allocation2 + $0x529] sm:$0xff]
    %v1756 = vld [vmem:[#allocation2 + $0x531] sm:$0xff]
    %v1757 = vld [vmem:[#allocation2 + $0x611] sm:$0xff]
    %v1758 = vld [vmem:[#allocation2 + $0x619] sm:$0xff]
    %v1759 = vld [vmem:[#allocation2 + $0x6f9] sm:$0xff]
    %v1760 = vld [vmem:[#allocation2 + $0x701] sm:$0xff]
    %v1761 = vmax.f32 %v1729, %v1745
    %v1762 = vmax.f32 %v1730, %v1746
    %v1763 = vmax.f32 %v1731, %v1747
    %v1764 = vmax.f32 %v1732, %v1748
    %v1765 = vmax.f32 %v1733, %v1749
    %v1766 = vmax.f32 %v1734, %v1750
    %v1767 = vmax.f32 %v1735, %v1751
    %v1768 = vmax.f32 %v1736, %v1752
    %v1769 = vmax.f32 %v1737, %v1753
    %v1770 = vmax.f32 %v1738, %v1754
    %v1771 = vmax.f32 %v1739, %v1755
    %v1772 = vmax.f32 %v1740, %v1756
    %v1773 = vmax.f32 %v1741, %v1757
    %v1774 = vmax.f32 %v1742, %v1758
    %v1775 = vmax.f32 %v1743, %v1759
    %v1776 = vmax.f32 %v1744, %v1760
    %v1777 = vld [vmem:[#allocation2 + $0xb0] sm:$0xff]
    %v1778 = vld [vmem:[#allocation2 + $0xb8] sm:$0xff]
    %v1779 = vld [vmem:[#allocation2 + $0x198] sm:$0xff]
    %v1780 = vld [vmem:[#allocation2 + $0x1a0] sm:$0xff]
    %v1781 = vld [vmem:[#allocation2 + $0x280] sm:$0xff]
    %v1782 = vld [vmem:[#allocation2 + $0x288] sm:$0xff]
    %v1783 = vld [vmem:[#allocation2 + $0x368] sm:$0xff]
    %v1784 = vld [vmem:[#allocation2 + $0x370] sm:$0xff]
    %v1785 = vld [vmem:[#allocation2 + $0x450] sm:$0xff]
    %v1786 = vld [vmem:[#allocation2 + $0x458] sm:$0xff]
    %v1787 = vld [vmem:[#allocation2 + $0x538] sm:$0xff]
    %v1788 = vld [vmem:[#allocation2 + $0x540] sm:$0xff]
    %v1789 = vld [vmem:[#allocation2 + $0x620] sm:$0xff]
    %v1790 = vld [vmem:[#allocation2 + $0x628] sm:$0xff]
    %v1791 = vld [vmem:[#allocation2 + $0x708] sm:$0xff]
    %v1792 = vld [vmem:[#allocation2 + $0x710] sm:$0xff]
    %v1793 = vld [vmem:[#allocation2 + $0xb1] sm:$0xff]
    %v1794 = vld [vmem:[#allocation2 + $0xb9] sm:$0xff]
    %v1795 = vld [vmem:[#allocation2 + $0x199] sm:$0xff]
    %v1796 = vld [vmem:[#allocation2 + $0x1a1] sm:$0xff]
    %v1797 = vld [vmem:[#allocation2 + $0x281] sm:$0xff]
    %v1798 = vld [vmem:[#allocation2 + $0x289] sm:$0xff]
    %v1799 = vld [vmem:[#allocation2 + $0x369] sm:$0xff]
    %v1800 = vld [vmem:[#allocation2 + $0x371] sm:$0xff]
    %v1801 = vld [vmem:[#allocation2 + $0x451] sm:$0xff]
    %v1802 = vld [vmem:[#allocation2 + $0x459] sm:$0xff]
    %v1803 = vld [vmem:[#allocation2 + $0x539] sm:$0xff]
    %v1804 = vld [vmem:[#allocation2 + $0x541] sm:$0xff]
    %v1805 = vld [vmem:[#allocation2 + $0x621] sm:$0xff]
    %v1806 = vld [vmem:[#allocation2 + $0x629] sm:$0xff]
    %v1807 = vld [vmem:[#allocation2 + $0x709] sm:$0xff]
    %v1808 = vld [vmem:[#allocation2 + $0x711] sm:$0xff]
    %v1809 = vmax.f32 %v1777, %v1793
    %v1810 = vmax.f32 %v1778, %v1794
    %v1811 = vmax.f32 %v1779, %v1795
    %v1812 = vmax.f32 %v1780, %v1796
    %v1813 = vmax.f32 %v1781, %v1797
    %v1814 = vmax.f32 %v1782, %v1798
    %v1815 = vmax.f32 %v1783, %v1799
    %v1816 = vmax.f32 %v1784, %v1800
    %v1817 = vmax.f32 %v1785, %v1801
    %v1818 = vmax.f32 %v1786, %v1802
    %v1819 = vmax.f32 %v1787, %v1803
    %v1820 = vmax.f32 %v1788, %v1804
    %v1821 = vmax.f32 %v1789, %v1805
    %v1822 = vmax.f32 %v1790, %v1806
    %v1823 = vmax.f32 %v1791, %v1807
    %v1824 = vmax.f32 %v1792, %v1808
    %v1825 = vmax.f32 %v1761, %v1809
    %v1826 = vmax.f32 %v1762, %v1810
    %v1827 = vmax.f32 %v1763, %v1811
    %v1828 = vmax.f32 %v1764, %v1812
    %v1829 = vmax.f32 %v1765, %v1813
    %v1830 = vmax.f32 %v1766, %v1814
    %v1831 = vmax.f32 %v1767, %v1815
    %v1832 = vmax.f32 %v1768, %v1816
    %v1833 = vmax.f32 %v1769, %v1817
    %v1834 = vmax.f32 %v1770, %v1818
    %v1835 = vmax.f32 %v1771, %v1819
    %v1836 = vmax.f32 %v1772, %v1820
    %v1837 = vmax.f32 %v1773, %v1821
    %v1838 = vmax.f32 %v1774, %v1822
    %v1839 = vmax.f32 %v1775, %v1823
    %v1840 = vmax.f32 %v1776, %v1824
    %1841 = vst [vmem:[#allocation3 + $0x50] sm:$0xff] %v1825
    %1842 = vst [vmem:[#allocation3 + $0x58] sm:$0xff] %v1826
    %1843 = vst [vmem:[#allocation3 + $0xc8] sm:$0xff] %v1827
    %1844 = vst [vmem:[#allocation3 + $0xd0] sm:$0xff] %v1828
    %1845 = vst [vmem:[#allocation3 + $0x140] sm:$0xff] %v1829
    %1846 = vst [vmem:[#allocation3 + $0x148] sm:$0xff] %v1830
    %1847 = vst [vmem:[#allocation3 + $0x1b8] sm:$0xff] %v1831
    %1848 = vst [vmem:[#allocation3 + $0x1c0] sm:$0xff] %v1832
    %1849 = vst [vmem:[#allocation3 + $0x230] sm:$0xff] %v1833
    %1850 = vst [vmem:[#allocation3 + $0x238] sm:$0xff] %v1834
    %1851 = vst [vmem:[#allocation3 + $0x2a8] sm:$0xff] %v1835
    %1852 = vst [vmem:[#allocation3 + $0x2b0] sm:$0xff] %v1836
    %1853 = vst [vmem:[#allocation3 + $0x320] sm:$0xff] %v1837
    %1854 = vst [vmem:[#allocation3 + $0x328] sm:$0xff] %v1838
    %1855 = vst [vmem:[#allocation3 + $0x398] sm:$0xff] %v1839
    %1856 = vst [vmem:[#allocation3 + $0x3a0] sm:$0xff] %v1840
    %v1857 = vld [vmem:[#allocation2 + $0xc0] sm:$0xff]
    %v1858 = vld [vmem:[#allocation2 + $0xc8] sm:$0xff]
    %v1859 = vld [vmem:[#allocation2 + $0x1a8] sm:$0xff]
    %v1860 = vld [vmem:[#allocation2 + $0x1b0] sm:$0xff]
    %v1861 = vld [vmem:[#allocation2 + $0x290] sm:$0xff]
    %v1862 = vld [vmem:[#allocation2 + $0x298] sm:$0xff]
    %v1863 = vld [vmem:[#allocation2 + $0x378] sm:$0xff]
    %v1864 = vld [vmem:[#allocation2 + $0x380] sm:$0xff]
    %v1865 = vld [vmem:[#allocation2 + $0x460] sm:$0xff]
    %v1866 = vld [vmem:[#allocation2 + $0x468] sm:$0xff]
    %v1867 = vld [vmem:[#allocation2 + $0x548] sm:$0xff]
    %v1868 = vld [vmem:[#allocation2 + $0x550] sm:$0xff]
    %v1869 = vld [vmem:[#allocation2 + $0x630] sm:$0xff]
    %v1870 = vld [vmem:[#allocation2 + $0x638] sm:$0xff]
    %v1871 = vld [vmem:[#allocation2 + $0x718] sm:$0xff]
    %v1872 = vld [vmem:[#allocation2 + $0x720] sm:$0xff]
    %v1873 = vld [vmem:[#allocation2 + $0xc1] sm:$0xff]
    %v1874 = vld [vmem:[#allocation2 + $0xc9] sm:$0xff]
    %v1875 = vld [vmem:[#allocation2 + $0x1a9] sm:$0xff]
    %v1876 = vld [vmem:[#allocation2 + $0x1b1] sm:$0xff]
    %v1877 = vld [vmem:[#allocation2 + $0x291] sm:$0xff]
    %v1878 = vld [vmem:[#allocation2 + $0x299] sm:$0xff]
    %v1879 = vld [vmem:[#allocation2 + $0x379] sm:$0xff]
    %v1880 = vld [vmem:[#allocation2 + $0x381] sm:$0xff]
    %v1881 = vld [vmem:[#allocation2 + $0x461] sm:$0xff]
    %v1882 = vld [vmem:[#allocation2 + $0x469] sm:$0xff]
    %v1883 = vld [vmem:[#allocation2 + $0x549] sm:$0xff]
    %v1884 = vld [vmem:[#allocation2 + $0x551] sm:$0xff]
    %v1885 = vld [vmem:[#allocation2 + $0x631] sm:$0xff]
    %v1886 = vld [vmem:[#allocation2 + $0x639] sm:$0xff]
    %v1887 = vld [vmem:[#allocation2 + $0x719] sm:$0xff]
    %v1888 = vld [vmem:[#allocation2 + $0x721] sm:$0xff]
    %v1889 = vmax.f32 %v1857, %v1873
    %v1890 = vmax.f32 %v1858, %v1874
    %v1891 = vmax.f32 %v1859, %v1875
    %v1892 = vmax.f32 %v1860, %v1876
    %v1893 = vmax.f32 %v1861, %v1877
    %v1894 = vmax.f32 %v1862, %v1878
    %v1895 = vmax.f32 %v1863, %v1879
    %v1896 = vmax.f32 %v1864, %v1880
    %v1897 = vmax.f32 %v1865, %v1881
    %v1898 = vmax.f32 %v1866, %v1882
    %v1899 = vmax.f32 %v1867, %v1883
    %v1900 = vmax.f32 %v1868, %v1884
    %v1901 = vmax.f32 %v1869, %v1885
    %v1902 = vmax.f32 %v1870, %v1886
    %v1903 = vmax.f32 %v1871, %v1887
    %v1904 = vmax.f32 %v1872, %v1888
    %v1905 = vld [vmem:[#allocation2 + $0xd0] sm:$0xff]
    %v1906 = vld [vmem:[#allocation2 + $0xd8] sm:$0xff]
    %v1907 = vld [vmem:[#allocation2 + $0x1b8] sm:$0xff]
    %v1908 = vld [vmem:[#allocation2 + $0x1c0] sm:$0xff]
    %v1909 = vld [vmem:[#allocation2 + $0x2a0] sm:$0xff]
    %v1910 = vld [vmem:[#allocation2 + $0x2a8] sm:$0xff]
    %v1911 = vld [vmem:[#allocation2 + $0x388] sm:$0xff]
    %v1912 = vld [vmem:[#allocation2 + $0x390] sm:$0xff]
    %v1913 = vld [vmem:[#allocation2 + $0x470] sm:$0xff]
    %v1914 = vld [vmem:[#allocation2 + $0x478] sm:$0xff]
    %v1915 = vld [vmem:[#allocation2 + $0x558] sm:$0xff]
    %v1916 = vld [vmem:[#allocation2 + $0x560] sm:$0xff]
    %v1917 = vld [vmem:[#allocation2 + $0x640] sm:$0xff]
    %v1918 = vld [vmem:[#allocation2 + $0x648] sm:$0xff]
    %v1919 = vld [vmem:[#allocation2 + $0x728] sm:$0xff]
    %v1920 = vld [vmem:[#allocation2 + $0x730] sm:$0xff]
    %v1921 = vld [vmem:[#allocation2 + $0xd1] sm:$0xff]
    %v1922 = vld [vmem:[#allocation2 + $0xd9] sm:$0xff]
    %v1923 = vld [vmem:[#allocation2 + $0x1b9] sm:$0xff]
    %v1924 = vld [vmem:[#allocation2 + $0x1c1] sm:$0xff]
    %v1925 = vld [vmem:[#allocation2 + $0x2a1] sm:$0xff]
    %v1926 = vld [vmem:[#allocation2 + $0x2a9] sm:$0xff]
    %v1927 = vld [vmem:[#allocation2 + $0x389] sm:$0xff]
    %v1928 = vld [vmem:[#allocation2 + $0x391] sm:$0xff]
    %v1929 = vld [vmem:[#allocation2 + $0x471] sm:$0xff]
    %v1930 = vld [vmem:[#allocation2 + $0x479] sm:$0xff]
    %v1931 = vld [vmem:[#allocation2 + $0x559] sm:$0xff]
    %v1932 = vld [vmem:[#allocation2 + $0x561] sm:$0xff]
    %v1933 = vld [vmem:[#allocation2 + $0x641] sm:$0xff]
    %v1934 = vld [vmem:[#allocation2 + $0x649] sm:$0xff]
    %v1935 = vld [vmem:[#allocation2 + $0x729] sm:$0xff]
    %v1936 = vld [vmem:[#allocation2 + $0x731] sm:$0xff]
    %v1937 = vmax.f32 %v1905, %v1921
    %v1938 = vmax.f32 %v1906, %v1922
    %v1939 = vmax.f32 %v1907, %v1923
    %v1940 = vmax.f32 %v1908, %v1924
    %v1941 = vmax.f32 %v1909, %v1925
    %v1942 = vmax.f32 %v1910, %v1926
    %v1943 = vmax.f32 %v1911, %v1927
    %v1944 = vmax.f32 %v1912, %v1928
    %v1945 = vmax.f32 %v1913, %v1929
    %v1946 = vmax.f32 %v1914, %v1930
    %v1947 = vmax.f32 %v1915, %v1931
    %v1948 = vmax.f32 %v1916, %v1932
    %v1949 = vmax.f32 %v1917, %v1933
    %v1950 = vmax.f32 %v1918, %v1934
    %v1951 = vmax.f32 %v1919, %v1935
    %v1952 = vmax.f32 %v1920, %v1936
    %v1953 = vmax.f32 %v1889, %v1937
    %v1954 = vmax.f32 %v1890, %v1938
    %v1955 = vmax.f32 %v1891, %v1939
    %v1956 = vmax.f32 %v1892, %v1940
    %v1957 = vmax.f32 %v1893, %v1941
    %v1958 = vmax.f32 %v1894, %v1942
    %v1959 = vmax.f32 %v1895, %v1943
    %v1960 = vmax.f32 %v1896, %v1944
    %v1961 = vmax.f32 %v1897, %v1945
    %v1962 = vmax.f32 %v1898, %v1946
    %v1963 = vmax.f32 %v1899, %v1947
    %v1964 = vmax.f32 %v1900, %v1948
    %v1965 = vmax.f32 %v1901, %v1949
    %v1966 = vmax.f32 %v1902, %v1950
    %v1967 = vmax.f32 %v1903, %v1951
    %v1968 = vmax.f32 %v1904, %v1952
    %1969 = vst [vmem:[#allocation3 + $0x60] sm:$0xff] %v1953
    %1970 = vst [vmem:[#allocation3 + $0x68] sm:$0xff] %v1954
    %1971 = vst [vmem:[#allocation3 + $0xd8] sm:$0xff] %v1955
    %1972 = vst [vmem:[#allocation3 + $0xe0] sm:$0xff] %v1956
    %1973 = vst [vmem:[#allocation3 + $0x150] sm:$0xff] %v1957
    %1974 = vst [vmem:[#allocation3 + $0x158] sm:$0xff] %v1958
    %1975 = vst [vmem:[#allocation3 + $0x1c8] sm:$0xff] %v1959
    %1976 = vst [vmem:[#allocation3 + $0x1d0] sm:$0xff] %v1960
    %1977 = vst [vmem:[#allocation3 + $0x240] sm:$0xff] %v1961
    %1978 = vst [vmem:[#allocation3 + $0x248] sm:$0xff] %v1962
    %1979 = vst [vmem:[#allocation3 + $0x2b8] sm:$0xff] %v1963
    %1980 = vst [vmem:[#allocation3 + $0x2c0] sm:$0xff] %v1964
    %1981 = vst [vmem:[#allocation3 + $0x330] sm:$0xff] %v1965
    %1982 = vst [vmem:[#allocation3 + $0x338] sm:$0xff] %v1966
    %1983 = vst [vmem:[#allocation3 + $0x3a8] sm:$0xff] %v1967
    %1984 = vst [vmem:[#allocation3 + $0x3b0] sm:$0xff] %v1968
    %1985 = vst [vmem:[#allocation3 + $0x70] sm:$0xff] 0.0
    %1986 = vst [vmem:[#allocation3 + $0xe8] sm:$0xff] 0.0
    %1987 = vst [vmem:[#allocation3 + $0x160] sm:$0xff] 0.0
    %1988 = vst [vmem:[#allocation3 + $0x1d8] sm:$0xff] 0.0
    %1989 = vst [vmem:[#allocation3 + $0x250] sm:$0xff] 0.0
    %1990 = vst [vmem:[#allocation3 + $0x2c8] sm:$0xff] 0.0
    %1991 = vst [vmem:[#allocation3 + $0x340] sm:$0xff] 0.0
    %1992 = vst [vmem:[#allocation3 + $0x3b8] sm:$0xff] 0.0
    loop: start=0, step=1, limit=16
    $region68: #{_net_forward_impl.1} parent=1 // loop_pre_header
      _
    $region69: #{_net_forward_impl.1} parent=1 // loop_header
      %s1994 = sphi 0, %s1998
      %p1995 = scmp.ge.s32.totalorder %s1994, 16
    $region70: #{_net_forward_impl.1} parent=1 // loop_header_branch
      %1997 = sbr.rel (%p1995) target = $region74
    $region71: #{_net_forward_impl.1} parent=1 // loop_body
      loop: start=0, step=1, limit=8
      $region75: #{_net_forward_impl.1} parent=71 // loop_pre_header
        _
      $region76: #{_net_forward_impl.1} parent=71 // loop_header
        %s2000 = sphi 0, %s2004
        %p2001 = scmp.ge.s32.totalorder %s2000, 8
        %v2005 = vphi 0.0, %v2367
        %v2006 = vphi 0.0, %v2368
        %v2007 = vphi 0.0, %v2369
        %v2008 = vphi 0.0, %v2370
        %v2009 = vphi 0.0, %v2371
        %v2010 = vphi 0.0, %v2372
        %v2011 = vphi 0.0, %v2373
        %v2012 = vphi 0.0, %v2374
        %v2013 = vphi 0.0, %v2375
        %v2014 = vphi 0.0, %v2376
      $region77: #{_net_forward_impl.1} parent=71 // loop_header_branch
        %2003 = sbr.rel (%p2001) target = $region81
      $region78: #{_net_forward_impl.1} parent=71 // loop_body
        %s2015 = smul.u32 %s2000, 9
        %s2016 = sshra.s32 %s2015, 7
        %s2017 = sand.u32 %s2015, 127
        %s2018 = sadd.s32 %s2016, %s1994
        %s2019 = smul.u32 %s2018, 128
        %s2020 = sshra.s32 %s2015, 7
        %s2021 = sand.u32 %s2015, 127
        %s2022 = sadd.s32 %s2019, %s2021
        %s2023 = sld [smem:[#allocation9 + %s2022]]
        %s2024 = smul.u32 %s2000, 120
        %s2025 = scalar_lea.vmem [#allocation3], %s2024
        %v2026 = vld [vmem:[%s2025] sm:$0xff]
        %v2027 = vld [vmem:[%s2025 + $0x8] sm:$0xff]
        %v2028 = vld [vmem:[%s2025 + $0x10] sm:$0xff]
        %v2029 = vld [vmem:[%s2025 + $0x18] sm:$0xff]
        %v2030 = vld [vmem:[%s2025 + $0x20] sm:$0xff]
        %v2031 = vld [vmem:[%s2025 + $0x28] sm:$0xff]
        %v2032 = vld [vmem:[%s2025 + $0x30] sm:$0xff]
        %v2033 = vld [vmem:[%s2025 + $0x38] sm:$0xff]
        %v2034 = vld [vmem:[%s2025 + $0x40] sm:$0xff]
        %v2035 = vld [vmem:[%s2025 + $0x48] sm:$0xff]
        %v2036 = vstv %s2023
        %v2037 = vmul.f32 %v2036, %v2026
        %v2038 = vmul.f32 %v2036, %v2027
        %v2039 = vmul.f32 %v2036, %v2028
        %v2040 = vmul.f32 %v2036, %v2029
        %v2041 = vmul.f32 %v2036, %v2030
        %v2042 = vmul.f32 %v2036, %v2031
        %v2043 = vmul.f32 %v2036, %v2032
        %v2044 = vmul.f32 %v2036, %v2033
        %v2045 = vmul.f32 %v2036, %v2034
        %v2046 = vmul.f32 %v2036, %v2035
        %v2047 = vadd.f32 %v2005, %v2037
        %v2048 = vadd.f32 %v2006, %v2038
        %v2049 = vadd.f32 %v2007, %v2039
        %v2050 = vadd.f32 %v2008, %v2040
        %v2051 = vadd.f32 %v2009, %v2041
        %v2052 = vadd.f32 %v2010, %v2042
        %v2053 = vadd.f32 %v2011, %v2043
        %v2054 = vadd.f32 %v2012, %v2044
        %v2055 = vadd.f32 %v2013, %v2045
        %v2056 = vadd.f32 %v2014, %v2046
        %s2057 = sadd.s32 %s2015, 1
        %s2058 = sshra.s32 %s2057, 7
        %s2059 = sand.u32 %s2057, 127
        %s2060 = sadd.s32 %s2058, %s1994
        %s2061 = smul.u32 %s2060, 128
        %s2062 = sshra.s32 %s2057, 7
        %s2063 = sand.u32 %s2057, 127
        %s2064 = sadd.s32 %s2061, %s2063
        %s2065 = sld [smem:[#allocation9 + %s2064]]
        %v2066 = vld [vmem:[%s2025 + $0x2] sm:$0xff]
        %v2067 = vld [vmem:[%s2025 + $0xa] sm:$0xff]
        %v2068 = vld [vmem:[%s2025 + $0x12] sm:$0xff]
        %v2069 = vld [vmem:[%s2025 + $0x1a] sm:$0xff]
        %v2070 = vld [vmem:[%s2025 + $0x22] sm:$0xff]
        %v2071 = vld [vmem:[%s2025 + $0x2a] sm:$0xff]
        %v2072 = vld [vmem:[%s2025 + $0x32] sm:$0xff]
        %v2073 = vld [vmem:[%s2025 + $0x3a] sm:$0xff]
        %v2074 = vld [vmem:[%s2025 + $0x42] sm:$0xff]
        %v2075 = vld [vmem:[%s2025 + $0x4a] sm:$0xff]
        %v2076 = vstv %s2065
        %v2077 = vmul.f32 %v2076, %v2066
        %v2078 = vmul.f32 %v2076, %v2067
        %v2079 = vmul.f32 %v2076, %v2068
        %v2080 = vmul.f32 %v2076, %v2069
        %v2081 = vmul.f32 %v2076, %v2070
        %v2082 = vmul.f32 %v2076, %v2071
        %v2083 = vmul.f32 %v2076, %v2072
        %v2084 = vmul.f32 %v2076, %v2073
        %v2085 = vmul.f32 %v2076, %v2074
        %v2086 = vmul.f32 %v2076, %v2075
        %v2087 = vadd.f32 %v2047, %v2077
        %v2088 = vadd.f32 %v2048, %v2078
        %v2089 = vadd.f32 %v2049, %v2079
        %v2090 = vadd.f32 %v2050, %v2080
        %v2091 = vadd.f32 %v2051, %v2081
        %v2092 = vadd.f32 %v2052, %v2082
        %v2093 = vadd.f32 %v2053, %v2083
        %v2094 = vadd.f32 %v2054, %v2084
        %v2095 = vadd.f32 %v2055, %v2085
        %v2096 = vadd.f32 %v2056, %v2086
        %s2097 = sadd.s32 %s2015, 2
        %s2098 = sshra.s32 %s2097, 7
        %s2099 = sand.u32 %s2097, 127
        %s2100 = sadd.s32 %s2098, %s1994
        %s2101 = smul.u32 %s2100, 128
        %s2102 = sshra.s32 %s2097, 7
        %s2103 = sand.u32 %s2097, 127
        %s2104 = sadd.s32 %s2101, %s2103
        %s2105 = sld [smem:[#allocation9 + %s2104]]
        %v2106 = vld [vmem:[%s2025 + $0x4] sm:$0xff]
        %v2107 = vld [vmem:[%s2025 + $0xc] sm:$0xff]
        %v2108 = vld [vmem:[%s2025 + $0x14] sm:$0xff]
        %v2109 = vld [vmem:[%s2025 + $0x1c] sm:$0xff]
        %v2110 = vld [vmem:[%s2025 + $0x24] sm:$0xff]
        %v2111 = vld [vmem:[%s2025 + $0x2c] sm:$0xff]
        %v2112 = vld [vmem:[%s2025 + $0x34] sm:$0xff]
        %v2113 = vld [vmem:[%s2025 + $0x3c] sm:$0xff]
        %v2114 = vld [vmem:[%s2025 + $0x44] sm:$0xff]
        %v2115 = vld [vmem:[%s2025 + $0x4c] sm:$0xff]
        %v2116 = vstv %s2105
        %v2117 = vmul.f32 %v2116, %v2106
        %v2118 = vmul.f32 %v2116, %v2107
        %v2119 = vmul.f32 %v2116, %v2108
        %v2120 = vmul.f32 %v2116, %v2109
        %v2121 = vmul.f32 %v2116, %v2110
        %v2122 = vmul.f32 %v2116, %v2111
        %v2123 = vmul.f32 %v2116, %v2112
        %v2124 = vmul.f32 %v2116, %v2113
        %v2125 = vmul.f32 %v2116, %v2114
        %v2126 = vmul.f32 %v2116, %v2115
        %v2127 = vadd.f32 %v2087, %v2117
        %v2128 = vadd.f32 %v2088, %v2118
        %v2129 = vadd.f32 %v2089, %v2119
        %v2130 = vadd.f32 %v2090, %v2120
        %v2131 = vadd.f32 %v2091, %v2121
        %v2132 = vadd.f32 %v2092, %v2122
        %v2133 = vadd.f32 %v2093, %v2123
        %v2134 = vadd.f32 %v2094, %v2124
        %v2135 = vadd.f32 %v2095, %v2125
        %v2136 = vadd.f32 %v2096, %v2126
        %s2137 = sadd.s32 %s2015, 3
        %s2138 = sshra.s32 %s2137, 7
        %s2139 = sand.u32 %s2137, 127
        %s2140 = sadd.s32 %s2138, %s1994
        %s2141 = smul.u32 %s2140, 128
        %s2142 = sshra.s32 %s2137, 7
        %s2143 = sand.u32 %s2137, 127
        %s2144 = sadd.s32 %s2141, %s2143
        %s2145 = sld [smem:[#allocation9 + %s2144]]
        %v2146 = vld [vmem:[%s2025 + $0x10] sm:$0xff]
        %v2147 = vld [vmem:[%s2025 + $0x18] sm:$0xff]
        %v2148 = vld [vmem:[%s2025 + $0x20] sm:$0xff]
        %v2149 = vld [vmem:[%s2025 + $0x28] sm:$0xff]
        %v2150 = vld [vmem:[%s2025 + $0x30] sm:$0xff]
        %v2151 = vld [vmem:[%s2025 + $0x38] sm:$0xff]
        %v2152 = vld [vmem:[%s2025 + $0x40] sm:$0xff]
        %v2153 = vld [vmem:[%s2025 + $0x48] sm:$0xff]
        %v2154 = vld [vmem:[%s2025 + $0x50] sm:$0xff]
        %v2155 = vld [vmem:[%s2025 + $0x58] sm:$0xff]
        %v2156 = vstv %s2145
        %v2157 = vmul.f32 %v2156, %v2146
        %v2158 = vmul.f32 %v2156, %v2147
        %v2159 = vmul.f32 %v2156, %v2148
        %v2160 = vmul.f32 %v2156, %v2149
        %v2161 = vmul.f32 %v2156, %v2150
        %v2162 = vmul.f32 %v2156, %v2151
        %v2163 = vmul.f32 %v2156, %v2152
        %v2164 = vmul.f32 %v2156, %v2153
        %v2165 = vmul.f32 %v2156, %v2154
        %v2166 = vmul.f32 %v2156, %v2155
        %v2167 = vadd.f32 %v2127, %v2157
        %v2168 = vadd.f32 %v2128, %v2158
        %v2169 = vadd.f32 %v2129, %v2159
        %v2170 = vadd.f32 %v2130, %v2160
        %v2171 = vadd.f32 %v2131, %v2161
        %v2172 = vadd.f32 %v2132, %v2162
        %v2173 = vadd.f32 %v2133, %v2163
        %v2174 = vadd.f32 %v2134, %v2164
        %v2175 = vadd.f32 %v2135, %v2165
        %v2176 = vadd.f32 %v2136, %v2166
        %s2177 = sadd.s32 %s2015, 4
        %s2178 = sshra.s32 %s2177, 7
        %s2179 = sand.u32 %s2177, 127
        %s2180 = sadd.s32 %s2178, %s1994
        %s2181 = smul.u32 %s2180, 128
        %s2182 = sshra.s32 %s2177, 7
        %s2183 = sand.u32 %s2177, 127
        %s2184 = sadd.s32 %s2181, %s2183
        %s2185 = sld [smem:[#allocation9 + %s2184]]
        %v2186 = vld [vmem:[%s2025 + $0x12] sm:$0xff]
        %v2187 = vld [vmem:[%s2025 + $0x1a] sm:$0xff]
        %v2188 = vld [vmem:[%s2025 + $0x22] sm:$0xff]
        %v2189 = vld [vmem:[%s2025 + $0x2a] sm:$0xff]
        %v2190 = vld [vmem:[%s2025 + $0x32] sm:$0xff]
        %v2191 = vld [vmem:[%s2025 + $0x3a] sm:$0xff]
        %v2192 = vld [vmem:[%s2025 + $0x42] sm:$0xff]
        %v2193 = vld [vmem:[%s2025 + $0x4a] sm:$0xff]
        %v2194 = vld [vmem:[%s2025 + $0x52] sm:$0xff]
        %v2195 = vld [vmem:[%s2025 + $0x5a] sm:$0xff]
        %v2196 = vstv %s2185
        %v2197 = vmul.f32 %v2196, %v2186
        %v2198 = vmul.f32 %v2196, %v2187
        %v2199 = vmul.f32 %v2196, %v2188
        %v2200 = vmul.f32 %v2196, %v2189
        %v2201 = vmul.f32 %v2196, %v2190
        %v2202 = vmul.f32 %v2196, %v2191
        %v2203 = vmul.f32 %v2196, %v2192
        %v2204 = vmul.f32 %v2196, %v2193
        %v2205 = vmul.f32 %v2196, %v2194
        %v2206 = vmul.f32 %v2196, %v2195
        %v2207 = vadd.f32 %v2167, %v2197
        %v2208 = vadd.f32 %v2168, %v2198
        %v2209 = vadd.f32 %v2169, %v2199
        %v2210 = vadd.f32 %v2170, %v2200
        %v2211 = vadd.f32 %v2171, %v2201
        %v2212 = vadd.f32 %v2172, %v2202
        %v2213 = vadd.f32 %v2173, %v2203
        %v2214 = vadd.f32 %v2174, %v2204
        %v2215 = vadd.f32 %v2175, %v2205
        %v2216 = vadd.f32 %v2176, %v2206
        %s2217 = sadd.s32 %s2015, 5
        %s2218 = sshra.s32 %s2217, 7
        %s2219 = sand.u32 %s2217, 127
        %s2220 = sadd.s32 %s2218, %s1994
        %s2221 = smul.u32 %s2220, 128
        %s2222 = sshra.s32 %s2217, 7
        %s2223 = sand.u32 %s2217, 127
        %s2224 = sadd.s32 %s2221, %s2223
        %s2225 = sld [smem:[#allocation9 + %s2224]]
        %v2226 = vld [vmem:[%s2025 + $0x14] sm:$0xff]
        %v2227 = vld [vmem:[%s2025 + $0x1c] sm:$0xff]
        %v2228 = vld [vmem:[%s2025 + $0x24] sm:$0xff]
        %v2229 = vld [vmem:[%s2025 + $0x2c] sm:$0xff]
        %v2230 = vld [vmem:[%s2025 + $0x34] sm:$0xff]
        %v2231 = vld [vmem:[%s2025 + $0x3c] sm:$0xff]
        %v2232 = vld [vmem:[%s2025 + $0x44] sm:$0xff]
        %v2233 = vld [vmem:[%s2025 + $0x4c] sm:$0xff]
        %v2234 = vld [vmem:[%s2025 + $0x54] sm:$0xff]
        %v2235 = vld [vmem:[%s2025 + $0x5c] sm:$0xff]
        %v2236 = vstv %s2225
        %v2237 = vmul.f32 %v2236, %v2226
        %v2238 = vmul.f32 %v2236, %v2227
        %v2239 = vmul.f32 %v2236, %v2228
        %v2240 = vmul.f32 %v2236, %v2229
        %v2241 = vmul.f32 %v2236, %v2230
        %v2242 = vmul.f32 %v2236, %v2231
        %v2243 = vmul.f32 %v2236, %v2232
        %v2244 = vmul.f32 %v2236, %v2233
        %v2245 = vmul.f32 %v2236, %v2234
        %v2246 = vmul.f32 %v2236, %v2235
        %v2247 = vadd.f32 %v2207, %v2237
        %v2248 = vadd.f32 %v2208, %v2238
        %v2249 = vadd.f32 %v2209, %v2239
        %v2250 = vadd.f32 %v2210, %v2240
        %v2251 = vadd.f32 %v2211, %v2241
        %v2252 = vadd.f32 %v2212, %v2242
        %v2253 = vadd.f32 %v2213, %v2243
        %v2254 = vadd.f32 %v2214, %v2244
        %v2255 = vadd.f32 %v2215, %v2245
        %v2256 = vadd.f32 %v2216, %v2246
        %s2257 = sadd.s32 %s2015, 6
        %s2258 = sshra.s32 %s2257, 7
        %s2259 = sand.u32 %s2257, 127
        %s2260 = sadd.s32 %s2258, %s1994
        %s2261 = smul.u32 %s2260, 128
        %s2262 = sshra.s32 %s2257, 7
        %s2263 = sand.u32 %s2257, 127
        %s2264 = sadd.s32 %s2261, %s2263
        %s2265 = sld [smem:[#allocation9 + %s2264]]
        %v2266 = vld [vmem:[%s2025 + $0x20] sm:$0xff]
        %v2267 = vld [vmem:[%s2025 + $0x28] sm:$0xff]
        %v2268 = vld [vmem:[%s2025 + $0x30] sm:$0xff]
        %v2269 = vld [vmem:[%s2025 + $0x38] sm:$0xff]
        %v2270 = vld [vmem:[%s2025 + $0x40] sm:$0xff]
        %v2271 = vld [vmem:[%s2025 + $0x48] sm:$0xff]
        %v2272 = vld [vmem:[%s2025 + $0x50] sm:$0xff]
        %v2273 = vld [vmem:[%s2025 + $0x58] sm:$0xff]
        %v2274 = vld [vmem:[%s2025 + $0x60] sm:$0xff]
        %v2275 = vld [vmem:[%s2025 + $0x68] sm:$0xff]
        %v2276 = vstv %s2265
        %v2277 = vmul.f32 %v2276, %v2266
        %v2278 = vmul.f32 %v2276, %v2267
        %v2279 = vmul.f32 %v2276, %v2268
        %v2280 = vmul.f32 %v2276, %v2269
        %v2281 = vmul.f32 %v2276, %v2270
        %v2282 = vmul.f32 %v2276, %v2271
        %v2283 = vmul.f32 %v2276, %v2272
        %v2284 = vmul.f32 %v2276, %v2273
        %v2285 = vmul.f32 %v2276, %v2274
        %v2286 = vmul.f32 %v2276, %v2275
        %v2287 = vadd.f32 %v2247, %v2277
        %v2288 = vadd.f32 %v2248, %v2278
        %v2289 = vadd.f32 %v2249, %v2279
        %v2290 = vadd.f32 %v2250, %v2280
        %v2291 = vadd.f32 %v2251, %v2281
        %v2292 = vadd.f32 %v2252, %v2282
        %v2293 = vadd.f32 %v2253, %v2283
        %v2294 = vadd.f32 %v2254, %v2284
        %v2295 = vadd.f32 %v2255, %v2285
        %v2296 = vadd.f32 %v2256, %v2286
        %s2297 = sadd.s32 %s2015, 7
        %s2298 = sshra.s32 %s2297, 7
        %s2299 = sand.u32 %s2297, 127
        %s2300 = sadd.s32 %s2298, %s1994
        %s2301 = smul.u32 %s2300, 128
        %s2302 = sshra.s32 %s2297, 7
        %s2303 = sand.u32 %s2297, 127
        %s2304 = sadd.s32 %s2301, %s2303
        %s2305 = sld [smem:[#allocation9 + %s2304]]
        %v2306 = vld [vmem:[%s2025 + $0x22] sm:$0xff]
        %v2307 = vld [vmem:[%s2025 + $0x2a] sm:$0xff]
        %v2308 = vld [vmem:[%s2025 + $0x32] sm:$0xff]
        %v2309 = vld [vmem:[%s2025 + $0x3a] sm:$0xff]
        %v2310 = vld [vmem:[%s2025 + $0x42] sm:$0xff]
        %v2311 = vld [vmem:[%s2025 + $0x4a] sm:$0xff]
        %v2312 = vld [vmem:[%s2025 + $0x52] sm:$0xff]
        %v2313 = vld [vmem:[%s2025 + $0x5a] sm:$0xff]
        %v2314 = vld [vmem:[%s2025 + $0x62] sm:$0xff]
        %v2315 = vld [vmem:[%s2025 + $0x6a] sm:$0xff]
        %v2316 = vstv %s2305
        %v2317 = vmul.f32 %v2316, %v2306
        %v2318 = vmul.f32 %v2316, %v2307
        %v2319 = vmul.f32 %v2316, %v2308
        %v2320 = vmul.f32 %v2316, %v2309
        %v2321 = vmul.f32 %v2316, %v2310
        %v2322 = vmul.f32 %v2316, %v2311
        %v2323 = vmul.f32 %v2316, %v2312
        %v2324 = vmul.f32 %v2316, %v2313
        %v2325 = vmul.f32 %v2316, %v2314
        %v2326 = vmul.f32 %v2316, %v2315
        %v2327 = vadd.f32 %v2287, %v2317
        %v2328 = vadd.f32 %v2288, %v2318
        %v2329 = vadd.f32 %v2289, %v2319
        %v2330 = vadd.f32 %v2290, %v2320
        %v2331 = vadd.f32 %v2291, %v2321
        %v2332 = vadd.f32 %v2292, %v2322
        %v2333 = vadd.f32 %v2293, %v2323
        %v2334 = vadd.f32 %v2294, %v2324
        %v2335 = vadd.f32 %v2295, %v2325
        %v2336 = vadd.f32 %v2296, %v2326
        %s2337 = sadd.s32 %s2015, 8
        %s2338 = sshra.s32 %s2337, 7
        %s2339 = sand.u32 %s2337, 127
        %s2340 = sadd.s32 %s2338, %s1994
        %s2341 = smul.u32 %s2340, 128
        %s2342 = sshra.s32 %s2337, 7
        %s2343 = sand.u32 %s2337, 127
        %s2344 = sadd.s32 %s2341, %s2343
        %s2345 = sld [smem:[#allocation9 + %s2344]]
        %v2346 = vld [vmem:[%s2025 + $0x24] sm:$0xff]
        %v2347 = vld [vmem:[%s2025 + $0x2c] sm:$0xff]
        %v2348 = vld [vmem:[%s2025 + $0x34] sm:$0xff]
        %v2349 = vld [vmem:[%s2025 + $0x3c] sm:$0xff]
        %v2350 = vld [vmem:[%s2025 + $0x44] sm:$0xff]
        %v2351 = vld [vmem:[%s2025 + $0x4c] sm:$0xff]
        %v2352 = vld [vmem:[%s2025 + $0x54] sm:$0xff]
        %v2353 = vld [vmem:[%s2025 + $0x5c] sm:$0xff]
        %v2354 = vld [vmem:[%s2025 + $0x64] sm:$0xff]
        %v2355 = vld [vmem:[%s2025 + $0x6c] sm:$0xff]
        %v2356 = vstv %s2345
        %v2357 = vmul.f32 %v2356, %v2346
        %v2358 = vmul.f32 %v2356, %v2347
        %v2359 = vmul.f32 %v2356, %v2348
        %v2360 = vmul.f32 %v2356, %v2349
        %v2361 = vmul.f32 %v2356, %v2350
        %v2362 = vmul.f32 %v2356, %v2351
        %v2363 = vmul.f32 %v2356, %v2352
        %v2364 = vmul.f32 %v2356, %v2353
        %v2365 = vmul.f32 %v2356, %v2354
        %v2366 = vmul.f32 %v2356, %v2355
        %v2367 = vadd.f32 %v2327, %v2357
        %v2368 = vadd.f32 %v2328, %v2358
        %v2369 = vadd.f32 %v2329, %v2359
        %v2370 = vadd.f32 %v2330, %v2360
        %v2371 = vadd.f32 %v2331, %v2361
        %v2372 = vadd.f32 %v2332, %v2362
        %v2373 = vadd.f32 %v2333, %v2363
        %v2374 = vadd.f32 %v2334, %v2364
        %v2375 = vadd.f32 %v2335, %v2365
        %v2376 = vadd.f32 %v2336, %v2366
      $region79: #{_net_forward_impl.1} parent=71 // loop_footer
        %s2004 = sadd.s32 1, %s2000
      $region80: #{_net_forward_impl.1} parent=71 // loop_footer_branch
        %1999 = sbr.rel target = $region76
      $region81: #{_net_forward_impl.1} parent=71 // loop_exit
        _
      %s2377 = smul.u32 %s1994, 80
      %s2378 = sld [smem:[#allocation10 + %s1994]]
      %v2379 = vstv %s2378
      %v2380 = vadd.f32 %v2005, %v2379
      %v2381 = vadd.f32 %v2006, %v2379
      %v2382 = vadd.f32 %v2007, %v2379
      %v2383 = vadd.f32 %v2008, %v2379
      %v2384 = vadd.f32 %v2009, %v2379
      %v2385 = vadd.f32 %v2010, %v2379
      %v2386 = vadd.f32 %v2011, %v2379
      %v2387 = vadd.f32 %v2012, %v2379
      %v2388 = vadd.f32 %v2013, %v2379
      %v2389 = vadd.f32 %v2014, %v2379
      %v2390 = vmax.f32 %v2380, 0.0
      %v2391 = vmax.f32 %v2381, 0.0
      %v2392 = vmax.f32 %v2382, 0.0
      %v2393 = vmax.f32 %v2383, 0.0
      %v2394 = vmax.f32 %v2384, 0.0
      %v2395 = vmax.f32 %v2385, 0.0
      %v2396 = vmax.f32 %v2386, 0.0
      %v2397 = vmax.f32 %v2387, 0.0
      %v2398 = vmax.f32 %v2388, 0.0
      %v2399 = vmax.f32 %v2389, 0.0
      %s2400 = scalar_lea.vmem [#allocation4], %s2377
      %2401 = vst [vmem:[%s2400] sm:$0xff] %v2390
      %2402 = vst [vmem:[%s2400 + $0x8] sm:$0xff] %v2391
      %2403 = vst [vmem:[%s2400 + $0x10] sm:$0xff] %v2392
      %2404 = vst [vmem:[%s2400 + $0x18] sm:$0xff] %v2393
      %2405 = vst [vmem:[%s2400 + $0x20] sm:$0xff] %v2394
      %2406 = vst [vmem:[%s2400 + $0x28] sm:$0xff] %v2395
      %2407 = vst [vmem:[%s2400 + $0x30] sm:$0xff] %v2396
      %2408 = vst [vmem:[%s2400 + $0x38] sm:$0xff] %v2397
      %2409 = vst [vmem:[%s2400 + $0x40] sm:$0xff] %v2398
      %2410 = vst [vmem:[%s2400 + $0x48] sm:$0xff] %v2399
    $region72: #{_net_forward_impl.1} parent=1 // loop_footer
      %s1998 = sadd.s32 1, %s1994
    $region73: #{_net_forward_impl.1} parent=1 // loop_footer_branch
      %1993 = sbr.rel target = $region69
    $region74: #{_net_forward_impl.1} parent=1 // loop_exit
      _
    %v2411 = vld [vmem:[%s5] sm:$0xff]
    %v2412 = vld [vmem:[%s5 + $0x8] sm:$0xff]
    %v2413 = vld [vmem:[%s5 + $0x10] sm:$0xff]
    %v2414 = vld [vmem:[%s5 + $0x18] sm:$0xff]
    %v2415 = vld [vmem:[%s5 + $0x20] sm:$0xff]
    %v2416 = vld [vmem:[%s5 + $0x28] sm:$0xff]
    %v2417 = vld [vmem:[%s5 + $0x30] sm:$0xff]
    %v2418 = vld [vmem:[%s5 + $0x38] sm:$0xff]
    %v2419 = vld [vmem:[%s5 + $0x40] sm:$0xff]
    %v2420 = vld [vmem:[%s5 + $0x48] sm:$0xff]
    %v2421 = vld [vmem:[%s5 + $0x50] sm:$0xff]
    %v2422 = vld [vmem:[%s5 + $0x58] sm:$0xff]
    %v2423 = vld [vmem:[%s5 + $0x60] sm:$0xff]
    %v2424 = vld [vmem:[%s5 + $0x68] sm:$0xff]
    %v2425 = vld [vmem:[%s5 + $0x70] sm:$0xff]
    %v2426 = vld [vmem:[%s5 + $0x78] sm:$0xff]
    %v2427 = vld [vmem:[%s5 + $0x80] sm:$0xff]
    %v2428 = vld [vmem:[%s5 + $0x88] sm:$0xff]
    %v2429 = vld [vmem:[%s5 + $0x90] sm:$0xff]
    %v2430 = vld [vmem:[%s5 + $0x98] sm:$0xff]
    %v2431 = vld [vmem:[%s5 + $0xa0] sm:$0xff]
    %v2432 = vld [vmem:[%s5 + $0xa8] sm:$0xff]
    %v2433 = vld [vmem:[%s5 + $0xb0] sm:$0xff]
    %v2434 = vld [vmem:[%s5 + $0xb8] sm:$0xff]
    %v2435 = vld [vmem:[%s5 + $0xc0] sm:$0xff]
    %v2436 = vld [vmem:[%s5 + $0xc8] sm:$0xff]
    %v2437 = vld [vmem:[%s5 + $0xd0] sm:$0xff]
    %v2438 = vld [vmem:[%s5 + $0xd8] sm:$0xff]
    %v2439 = vld [vmem:[%s5 + $0xe0] sm:$0xff]
    %v2440 = vld [vmem:[%s5 + $0xe8] sm:$0xff]
    %v2441 = vld [vmem:[%s5 + $0xf0] sm:$0xff]
    %v2442 = vld [vmem:[%s5 + $0xf8] sm:$0xff]
    %v2443 = vld [vmem:[%s5 + $0x100] sm:$0xff]
    %v2444 = vld [vmem:[%s5 + $0x108] sm:$0xff]
    %v2445 = vld [vmem:[%s5 + $0x110] sm:$0xff]
    %v2446 = vld [vmem:[%s5 + $0x118] sm:$0xff]
    %v2447 = vld [vmem:[%s5 + $0x120] sm:$0xff]
    %v2448 = vld [vmem:[%s5 + $0x128] sm:$0xff]
    %v2449 = vld [vmem:[%s5 + $0x130] sm:$0xff]
    %v2450 = vld [vmem:[%s5 + $0x138] sm:$0xff]
    %v2451 = vld [vmem:[#allocation4] sm:$0xff]
    %v2452 = vld [vmem:[#allocation4 + $0x8] sm:$0xff]
    %v2453 = vld [vmem:[#allocation4 + $0x10] sm:$0xff]
    %v2454 = vld [vmem:[#allocation4 + $0x18] sm:$0xff]
    %v2455 = vld [vmem:[#allocation4 + $0x20] sm:$0xff]
    %v2456 = vld [vmem:[#allocation4 + $0x28] sm:$0xff]
    %v2457 = vld [vmem:[#allocation4 + $0x30] sm:$0xff]
    %v2458 = vld [vmem:[#allocation4 + $0x38] sm:$0xff]
    %v2459 = vld [vmem:[#allocation4 + $0x40] sm:$0xff]
    %v2460 = vld [vmem:[#allocation4 + $0x48] sm:$0xff]
    %v2461 = vld [vmem:[#allocation4 + $0x50] sm:$0xff]
    %v2462 = vld [vmem:[#allocation4 + $0x58] sm:$0xff]
    %v2463 = vld [vmem:[#allocation4 + $0x60] sm:$0xff]
    %v2464 = vld [vmem:[#allocation4 + $0x68] sm:$0xff]
    %v2465 = vld [vmem:[#allocation4 + $0x70] sm:$0xff]
    %v2466 = vld [vmem:[#allocation4 + $0x78] sm:$0xff]
    %v2467 = vld [vmem:[#allocation4 + $0x80] sm:$0xff]
    %v2468 = vld [vmem:[#allocation4 + $0x88] sm:$0xff]
    %v2469 = vld [vmem:[#allocation4 + $0x90] sm:$0xff]
    %v2470 = vld [vmem:[#allocation4 + $0x98] sm:$0xff]
    %v2471 = vld [vmem:[#allocation4 + $0xa0] sm:$0xff]
    %v2472 = vld [vmem:[#allocation4 + $0xa8] sm:$0xff]
    %v2473 = vld [vmem:[#allocation4 + $0xb0] sm:$0xff]
    %v2474 = vld [vmem:[#allocation4 + $0xb8] sm:$0xff]
    %v2475 = vld [vmem:[#allocation4 + $0xc0] sm:$0xff]
    %v2476 = vld [vmem:[#allocation4 + $0xc8] sm:$0xff]
    %v2477 = vld [vmem:[#allocation4 + $0xd0] sm:$0xff]
    %v2478 = vld [vmem:[#allocation4 + $0xd8] sm:$0xff]
    %v2479 = vld [vmem:[#allocation4 + $0xe0] sm:$0xff]
    %v2480 = vld [vmem:[#allocation4 + $0xe8] sm:$0xff]
    %v2481 = vld [vmem:[#allocation4 + $0xf0] sm:$0xff]
    %v2482 = vld [vmem:[#allocation4 + $0xf8] sm:$0xff]
    %v2483 = vld [vmem:[#allocation4 + $0x100] sm:$0xff]
    %v2484 = vld [vmem:[#allocation4 + $0x108] sm:$0xff]
    %v2485 = vld [vmem:[#allocation4 + $0x110] sm:$0xff]
    %v2486 = vld [vmem:[#allocation4 + $0x118] sm:$0xff]
    %v2487 = vld [vmem:[#allocation4 + $0x120] sm:$0xff]
    %v2488 = vld [vmem:[#allocation4 + $0x128] sm:$0xff]
    %v2489 = vld [vmem:[#allocation4 + $0x130] sm:$0xff]
    %v2490 = vld [vmem:[#allocation4 + $0x138] sm:$0xff]
    %v2491 = vld [vmem:[#allocation4 + $0x140] sm:$0xff]
    %v2492 = vld [vmem:[#allocation4 + $0x148] sm:$0xff]
    %v2493 = vld [vmem:[#allocation4 + $0x150] sm:$0xff]
    %v2494 = vld [vmem:[#allocation4 + $0x158] sm:$0xff]
    %v2495 = vld [vmem:[#allocation4 + $0x160] sm:$0xff]
    %v2496 = vld [vmem:[#allocation4 + $0x168] sm:$0xff]
    %v2497 = vld [vmem:[#allocation4 + $0x170] sm:$0xff]
    %v2498 = vld [vmem:[#allocation4 + $0x178] sm:$0xff]
    %v2499 = vld [vmem:[#allocation4 + $0x180] sm:$0xff]
    %v2500 = vld [vmem:[#allocation4 + $0x188] sm:$0xff]
    %v2501 = vld [vmem:[#allocation4 + $0x190] sm:$0xff]
    %v2502 = vld [vmem:[#allocation4 + $0x198] sm:$0xff]
    %v2503 = vld [vmem:[#allocation4 + $0x1a0] sm:$0xff]
    %v2504 = vld [vmem:[#allocation4 + $0x1a8] sm:$0xff]
    %v2505 = vld [vmem:[#allocation4 + $0x1b0] sm:$0xff]
    %v2506 = vld [vmem:[#allocation4 + $0x1b8] sm:$0xff]
    %v2507 = vld [vmem:[#allocation4 + $0x1c0] sm:$0xff]
    %v2508 = vld [vmem:[#allocation4 + $0x1c8] sm:$0xff]
    %v2509 = vld [vmem:[#allocation4 + $0x1d0] sm:$0xff]
    %v2510 = vld [vmem:[#allocation4 + $0x1d8] sm:$0xff]
    %v2511 = vld [vmem:[#allocation4 + $0x1e0] sm:$0xff]
    %v2512 = vld [vmem:[#allocation4 + $0x1e8] sm:$0xff]
    %v2513 = vld [vmem:[#allocation4 + $0x1f0] sm:$0xff]
    %v2514 = vld [vmem:[#allocation4 + $0x1f8] sm:$0xff]
    %v2515 = vld [vmem:[#allocation4 + $0x200] sm:$0xff]
    %v2516 = vld [vmem:[#allocation4 + $0x208] sm:$0xff]
    %v2517 = vld [vmem:[#allocation4 + $0x210] sm:$0xff]
    %v2518 = vld [vmem:[#allocation4 + $0x218] sm:$0xff]
    %v2519 = vld [vmem:[#allocation4 + $0x220] sm:$0xff]
    %v2520 = vld [vmem:[#allocation4 + $0x228] sm:$0xff]
    %v2521 = vld [vmem:[#allocation4 + $0x230] sm:$0xff]
    %v2522 = vld [vmem:[#allocation4 + $0x238] sm:$0xff]
    %v2523 = vld [vmem:[#allocation4 + $0x240] sm:$0xff]
    %v2524 = vld [vmem:[#allocation4 + $0x248] sm:$0xff]
    %v2525 = vld [vmem:[#allocation4 + $0x250] sm:$0xff]
    %v2526 = vld [vmem:[#allocation4 + $0x258] sm:$0xff]
    %v2527 = vld [vmem:[#allocation4 + $0x260] sm:$0xff]
    %v2528 = vld [vmem:[#allocation4 + $0x268] sm:$0xff]
    %v2529 = vld [vmem:[#allocation4 + $0x270] sm:$0xff]
    %v2530 = vld [vmem:[#allocation4 + $0x278] sm:$0xff]
    %v2531 = vld [vmem:[#allocation4 + $0x280] sm:$0xff]
    %v2532 = vld [vmem:[#allocation4 + $0x288] sm:$0xff]
    %v2533 = vld [vmem:[#allocation4 + $0x290] sm:$0xff]
    %v2534 = vld [vmem:[#allocation4 + $0x298] sm:$0xff]
    %v2535 = vld [vmem:[#allocation4 + $0x2a0] sm:$0xff]
    %v2536 = vld [vmem:[#allocation4 + $0x2a8] sm:$0xff]
    %v2537 = vld [vmem:[#allocation4 + $0x2b0] sm:$0xff]
    %v2538 = vld [vmem:[#allocation4 + $0x2b8] sm:$0xff]
    %v2539 = vld [vmem:[#allocation4 + $0x2c0] sm:$0xff]
    %v2540 = vld [vmem:[#allocation4 + $0x2c8] sm:$0xff]
    %v2541 = vld [vmem:[#allocation4 + $0x2d0] sm:$0xff]
    %v2542 = vld [vmem:[#allocation4 + $0x2d8] sm:$0xff]
    %v2543 = vld [vmem:[#allocation4 + $0x2e0] sm:$0xff]
    %v2544 = vld [vmem:[#allocation4 + $0x2e8] sm:$0xff]
    %v2545 = vld [vmem:[#allocation4 + $0x2f0] sm:$0xff]
    %v2546 = vld [vmem:[#allocation4 + $0x2f8] sm:$0xff]
    %v2547 = vld [vmem:[#allocation4 + $0x300] sm:$0xff]
    %v2548 = vld [vmem:[#allocation4 + $0x308] sm:$0xff]
    %v2549 = vld [vmem:[#allocation4 + $0x310] sm:$0xff]
    %v2550 = vld [vmem:[#allocation4 + $0x318] sm:$0xff]
    %v2551 = vld [vmem:[#allocation4 + $0x320] sm:$0xff]
    %v2552 = vld [vmem:[#allocation4 + $0x328] sm:$0xff]
    %v2553 = vld [vmem:[#allocation4 + $0x330] sm:$0xff]
    %v2554 = vld [vmem:[#allocation4 + $0x338] sm:$0xff]
    %v2555 = vld [vmem:[#allocation4 + $0x340] sm:$0xff]
    %v2556 = vld [vmem:[#allocation4 + $0x348] sm:$0xff]
    %v2557 = vld [vmem:[#allocation4 + $0x350] sm:$0xff]
    %v2558 = vld [vmem:[#allocation4 + $0x358] sm:$0xff]
    %v2559 = vld [vmem:[#allocation4 + $0x360] sm:$0xff]
    %v2560 = vld [vmem:[#allocation4 + $0x368] sm:$0xff]
    %v2561 = vld [vmem:[#allocation4 + $0x370] sm:$0xff]
    %v2562 = vld [vmem:[#allocation4 + $0x378] sm:$0xff]
    %v2563 = vld [vmem:[#allocation4 + $0x380] sm:$0xff]
    %v2564 = vld [vmem:[#allocation4 + $0x388] sm:$0xff]
    %v2565 = vld [vmem:[#allocation4 + $0x390] sm:$0xff]
    %v2566 = vld [vmem:[#allocation4 + $0x398] sm:$0xff]
    %v2567 = vld [vmem:[#allocation4 + $0x3a0] sm:$0xff]
    %v2568 = vld [vmem:[#allocation4 + $0x3a8] sm:$0xff]
    %v2569 = vld [vmem:[#allocation4 + $0x3b0] sm:$0xff]
    %v2570 = vld [vmem:[#allocation4 + $0x3b8] sm:$0xff]
    %v2571 = vld [vmem:[#allocation4 + $0x3c0] sm:$0xff]
    %v2572 = vld [vmem:[#allocation4 + $0x3c8] sm:$0xff]
    %v2573 = vld [vmem:[#allocation4 + $0x3d0] sm:$0xff]
    %v2574 = vld [vmem:[#allocation4 + $0x3d8] sm:$0xff]
    %v2575 = vld [vmem:[#allocation4 + $0x3e0] sm:$0xff]
    %v2576 = vld [vmem:[#allocation4 + $0x3e8] sm:$0xff]
    %v2577 = vld [vmem:[#allocation4 + $0x3f0] sm:$0xff]
    %v2578 = vld [vmem:[#allocation4 + $0x3f8] sm:$0xff]
    %v2579 = vld [vmem:[#allocation4 + $0x400] sm:$0xff]
    %v2580 = vld [vmem:[#allocation4 + $0x408] sm:$0xff]
    %v2581 = vld [vmem:[#allocation4 + $0x410] sm:$0xff]
    %v2582 = vld [vmem:[#allocation4 + $0x418] sm:$0xff]
    %v2583 = vld [vmem:[#allocation4 + $0x420] sm:$0xff]
    %v2584 = vld [vmem:[#allocation4 + $0x428] sm:$0xff]
    %v2585 = vld [vmem:[#allocation4 + $0x430] sm:$0xff]
    %v2586 = vld [vmem:[#allocation4 + $0x438] sm:$0xff]
    %v2587 = vld [vmem:[#allocation4 + $0x440] sm:$0xff]
    %v2588 = vld [vmem:[#allocation4 + $0x448] sm:$0xff]
    %v2589 = vld [vmem:[#allocation4 + $0x450] sm:$0xff]
    %v2590 = vld [vmem:[#allocation4 + $0x458] sm:$0xff]
    %v2591 = vld [vmem:[#allocation4 + $0x460] sm:$0xff]
    %v2592 = vld [vmem:[#allocation4 + $0x468] sm:$0xff]
    %v2593 = vld [vmem:[#allocation4 + $0x470] sm:$0xff]
    %v2594 = vld [vmem:[#allocation4 + $0x478] sm:$0xff]
    %v2595 = vld [vmem:[#allocation4 + $0x480] sm:$0xff]
    %v2596 = vld [vmem:[#allocation4 + $0x488] sm:$0xff]
    %v2597 = vld [vmem:[#allocation4 + $0x490] sm:$0xff]
    %v2598 = vld [vmem:[#allocation4 + $0x498] sm:$0xff]
    %v2599 = vld [vmem:[#allocation4 + $0x4a0] sm:$0xff]
    %v2600 = vld [vmem:[#allocation4 + $0x4a8] sm:$0xff]
    %v2601 = vld [vmem:[#allocation4 + $0x4b0] sm:$0xff]
    %v2602 = vld [vmem:[#allocation4 + $0x4b8] sm:$0xff]
    %v2603 = vld [vmem:[#allocation4 + $0x4c0] sm:$0xff]
    %v2604 = vld [vmem:[#allocation4 + $0x4c8] sm:$0xff]
    %v2605 = vld [vmem:[#allocation4 + $0x4d0] sm:$0xff]
    %v2606 = vld [vmem:[#allocation4 + $0x4d8] sm:$0xff]
    %v2607 = vld [vmem:[#allocation4 + $0x4e0] sm:$0xff]
    %v2608 = vld [vmem:[#allocation4 + $0x4e8] sm:$0xff]
    %v2609 = vld [vmem:[#allocation4 + $0x4f0] sm:$0xff]
    %v2610 = vld [vmem:[#allocation4 + $0x4f8] sm:$0xff]
    %v2611 = vld [vmem:[%s6] sm:$0xff]
    %v2612 = vld [vmem:[%s6 + $0x8] sm:$0xff]
    %v2613 = vld [vmem:[%s6 + $0x10] sm:$0xff]
    %v2614 = vld [vmem:[%s6 + $0x18] sm:$0xff]
    %2616 = vset.pattern.permute.xlu0 0
    %2617 = vperm.xlu0 %2616, %v2611
    %v2618 = vpop.permute.xlu0 %2617
    %2621 = vset.pattern.permute.xlu0 0
    %2622 = vperm.xlu0 %2621, %v2612
    %v2623 = vpop.permute.xlu0 %2622
    %2626 = vset.pattern.permute.xlu0 0
    %2627 = vperm.xlu0 %2626, %v2613
    %v2628 = vpop.permute.xlu0 %2627
    %2631 = vset.pattern.permute.xlu0 0
    %2632 = vperm.xlu0 %2631, %v2614
    %v2633 = vpop.permute.xlu0 %2632
    %2635 = vmatprep.subr.mxu0 0.0
    %2636 = vmatpush1.msra.mxu0 %v2451
    %2637 = vmatprep.subr.mxu0 0.0
    %2638 = vmatpush1.msra.mxu0 %v2452
    %2639 = vmatprep.subr.mxu0 0.0
    %2640 = vmatpush1.msra.mxu0 %v2453
    %2641 = vmatprep.subr.mxu0 0.0
    %2642 = vmatpush1.msra.mxu0 %v2454
    %2643 = vmatprep.subr.mxu0 0.0
    %2644 = vmatpush1.msra.mxu0 %v2455
    %2645 = vmatprep.subr.mxu0 0.0
    %2646 = vmatpush1.msra.mxu0 %v2456
    %2647 = vmatprep.subr.mxu0 0.0
    %2648 = vmatpush1.msra.mxu0 %v2457
    %2649 = vmatprep.subr.mxu0 0.0
    %2650 = vmatpush1.msra.mxu0 %v2458
    %2651 = vmatprep.subr.mxu0 0.0
    %2652 = vmatpush1.msra.mxu0 %v2459
    %2653 = vmatprep.subr.mxu0 0.0
    %2654 = vmatpush1.msra.mxu0 %v2460
    %2655 = vmatprep.subr.mxu0 0.0
    %2656 = vmatpush1.msra.mxu0 %v2461
    %2657 = vmatprep.subr.mxu0 0.0
    %2658 = vmatpush1.msra.mxu0 %v2462
    %2659 = vmatprep.subr.mxu0 0.0
    %2660 = vmatpush1.msra.mxu0 %v2463
    %2661 = vmatprep.subr.mxu0 0.0
    %2662 = vmatpush1.msra.mxu0 %v2464
    %2663 = vmatprep.subr.mxu0 0.0
    %2664 = vmatpush1.msra.mxu0 %v2465
    %2665 = vmatprep.subr.mxu0 0.0
    %2666 = vmatpush1.msra.mxu0 %v2466
    %2667 = vmatprep.subr.mxu0 0.0
    %2668 = vmatpush1.msra.mxu0 %v2467
    %2669 = vmatprep.subr.mxu0 0.0
    %2670 = vmatpush1.msra.mxu0 %v2468
    %2671 = vmatprep.subr.mxu0 0.0
    %2672 = vmatpush1.msra.mxu0 %v2469
    %2673 = vmatprep.subr.mxu0 0.0
    %2674 = vmatpush1.msra.mxu0 %v2470
    %2675 = vmatprep.subr.mxu0 0.0
    %2676 = vmatpush1.msra.mxu0 %v2471
    %2677 = vmatprep.subr.mxu0 0.0
    %2678 = vmatpush1.msra.mxu0 %v2472
    %2679 = vmatprep.subr.mxu0 0.0
    %2680 = vmatpush1.msra.mxu0 %v2473
    %2681 = vmatprep.subr.mxu0 0.0
    %2682 = vmatpush1.msra.mxu0 %v2474
    %2683 = vmatprep.subr.mxu0 0.0
    %2684 = vmatpush1.msra.mxu0 %v2475
    %2685 = vmatprep.subr.mxu0 0.0
    %2686 = vmatpush1.msra.mxu0 %v2476
    %2687 = vmatprep.subr.mxu0 0.0
    %2688 = vmatpush1.msra.mxu0 %v2477
    %2689 = vmatprep.subr.mxu0 0.0
    %2690 = vmatpush1.msra.mxu0 %v2478
    %2691 = vmatprep.subr.mxu0 0.0
    %2692 = vmatpush1.msra.mxu0 %v2479
    %2693 = vmatprep.subr.mxu0 0.0
    %2694 = vmatpush1.msra.mxu0 %v2480
    %2695 = vmatprep.subr.mxu0 0.0
    %2696 = vmatpush1.msra.mxu0 %v2481
    %2697 = vmatprep.subr.mxu0 0.0
    %2698 = vmatpush1.msra.mxu0 %v2482
    %2699 = vmatprep.mubr.f32.mxu0 %v2412
    %2700 = vmatmul.mubr.f32.gmra.mrb[0].mxu0 %v2411
    %v2701 = vpop.f32.mrb[0].mxu0
    %v2702 = vadd.f32 %v2618, %v2701
    %v2703 = vpop.f32.mrb[0].mxu0
    %2704 = vmatprep.mubr.f32.mxu0 %v2422
    %2705 = vmatmul.mubr.f32.gmra.mrb[0].mxu0 %v2421
    %v2706 = vpop.f32.mrb[0].mxu0
    %v2707 = vadd.f32 %v2623, %v2706
    %v2708 = vpop.f32.mrb[0].mxu0
    %2709 = vmatprep.mubr.f32.mxu0 %v2432
    %2710 = vmatmul.mubr.f32.gmra.mrb[0].mxu0 %v2431
    %v2711 = vpop.f32.mrb[0].mxu0
    %v2712 = vadd.f32 %v2628, %v2711
    %v2713 = vpop.f32.mrb[0].mxu0
    %2714 = vmatprep.mubr.f32.mxu0 %v2442
    %2715 = vmatmul.mubr.f32.gmra.mrb[0].mxu0 %v2441
    %v2716 = vpop.f32.mrb[0].mxu0
    %v2717 = vadd.f32 %v2633, %v2716
    %v2718 = vpop.f32.mrb[0].mxu0
    %2719 = vdwg.mxu0
    %2720 = vmatprep.subr.mxu0 0.0
    %2721 = vmatpush1.msra.mxu0 %v2483
    %2722 = vmatprep.subr.mxu0 0.0
    %2723 = vmatpush1.msra.mxu0 %v2484
    %2724 = vmatprep.subr.mxu0 0.0
    %2725 = vmatpush1.msra.mxu0 %v2485
    %2726 = vmatprep.subr.mxu0 0.0
    %2727 = vmatpush1.msra.mxu0 %v2486
    %2728 = vmatprep.subr.mxu0 0.0
    %2729 = vmatpush1.msra.mxu0 %v2487
    %2730 = vmatprep.subr.mxu0 0.0
    %2731 = vmatpush1.msra.mxu0 %v2488
    %2732 = vmatprep.subr.mxu0 0.0
    %2733 = vmatpush1.msra.mxu0 %v2489
    %2734 = vmatprep.subr.mxu0 0.0
    %2735 = vmatpush1.msra.mxu0 %v2490
    %2736 = vmatprep.subr.mxu0 0.0
    %2737 = vmatpush1.msra.mxu0 %v2491
    %2738 = vmatprep.subr.mxu0 0.0
    %2739 = vmatpush1.msra.mxu0 %v2492
    %2740 = vmatprep.subr.mxu0 0.0
    %2741 = vmatpush1.msra.mxu0 %v2493
    %2742 = vmatprep.subr.mxu0 0.0
    %2743 = vmatpush1.msra.mxu0 %v2494
    %2744 = vmatprep.subr.mxu0 0.0
    %2745 = vmatpush1.msra.mxu0 %v2495
    %2746 = vmatprep.subr.mxu0 0.0
    %2747 = vmatpush1.msra.mxu0 %v2496
    %2748 = vmatprep.subr.mxu0 0.0
    %2749 = vmatpush1.msra.mxu0 %v2497
    %2750 = vmatprep.subr.mxu0 0.0
    %2751 = vmatpush1.msra.mxu0 %v2498
    %2752 = vmatprep.subr.mxu0 0.0
    %2753 = vmatpush1.msra.mxu0 %v2499
    %2754 = vmatprep.subr.mxu0 0.0
    %2755 = vmatpush1.msra.mxu0 %v2500
    %2756 = vmatprep.subr.mxu0 0.0
    %2757 = vmatpush1.msra.mxu0 %v2501
    %2758 = vmatprep.subr.mxu0 0.0
    %2759 = vmatpush1.msra.mxu0 %v2502
    %2760 = vmatprep.subr.mxu0 0.0
    %2761 = vmatpush1.msra.mxu0 %v2503
    %2762 = vmatprep.subr.mxu0 0.0
    %2763 = vmatpush1.msra.mxu0 %v2504
    %2764 = vmatprep.subr.mxu0 0.0
    %2765 = vmatpush1.msra.mxu0 %v2505
    %2766 = vmatprep.subr.mxu0 0.0
    %2767 = vmatpush1.msra.mxu0 %v2506
    %2768 = vmatprep.subr.mxu0 0.0
    %2769 = vmatpush1.msra.mxu0 %v2507
    %2770 = vmatprep.subr.mxu0 0.0
    %2771 = vmatpush1.msra.mxu0 %v2508
    %2772 = vmatprep.subr.mxu0 0.0
    %2773 = vmatpush1.msra.mxu0 %v2509
    %2774 = vmatprep.subr.mxu0 0.0
    %2775 = vmatpush1.msra.mxu0 %v2510
    %2776 = vmatprep.subr.mxu0 0.0
    %2777 = vmatpush1.msra.mxu0 %v2511
    %2778 = vmatprep.subr.mxu0 0.0
    %2779 = vmatpush1.msra.mxu0 %v2512
    %2780 = vmatprep.subr.mxu0 0.0
    %2781 = vmatpush1.msra.mxu0 %v2513
    %2782 = vmatprep.subr.mxu0 0.0
    %2783 = vmatpush1.msra.mxu0 %v2514
    %2784 = vmatprep.mubr.f32.mxu0 %v2414
    %2785 = vmatmul.mubr.f32.gmra.mrb[0].mxu0 %v2413
    %v2786 = vpop.f32.mrb[0].mxu0
    %v2787 = vadd.f32 %v2702, %v2786
    %v2788 = vpop.f32.mrb[0].mxu0
    %2789 = vmatprep.mubr.f32.mxu0 %v2424
    %2790 = vmatmul.mubr.f32.gmra.mrb[0].mxu0 %v2423
    %v2791 = vpop.f32.mrb[0].mxu0
    %v2792 = vadd.f32 %v2707, %v2791
    %v2793 = vpop.f32.mrb[0].mxu0
    %2794 = vmatprep.mubr.f32.mxu0 %v2434
    %2795 = vmatmul.mubr.f32.gmra.mrb[0].mxu0 %v2433
    %v2796 = vpop.f32.mrb[0].mxu0
    %v2797 = vadd.f32 %v2712, %v2796
    %v2798 = vpop.f32.mrb[0].mxu0
    %2799 = vmatprep.mubr.f32.mxu0 %v2444
    %2800 = vmatmul.mubr.f32.gmra.mrb[0].mxu0 %v2443
    %v2801 = vpop.f32.mrb[0].mxu0
    %v2802 = vadd.f32 %v2717, %v2801
    %v2803 = vpop.f32.mrb[0].mxu0
    %2804 = vdwg.mxu0
    %2805 = vmatprep.subr.mxu0 0.0
    %2806 = vmatpush1.msra.mxu0 %v2515
    %2807 = vmatprep.subr.mxu0 0.0
    %2808 = vmatpush1.msra.mxu0 %v2516
    %2809 = vmatprep.subr.mxu0 0.0
    %2810 = vmatpush1.msra.mxu0 %v2517
    %2811 = vmatprep.subr.mxu0 0.0
    %2812 = vmatpush1.msra.mxu0 %v2518
    %2813 = vmatprep.subr.mxu0 0.0
    %2814 = vmatpush1.msra.mxu0 %v2519
    %2815 = vmatprep.subr.mxu0 0.0
    %2816 = vmatpush1.msra.mxu0 %v2520
    %2817 = vmatprep.subr.mxu0 0.0
    %2818 = vmatpush1.msra.mxu0 %v2521
    %2819 = vmatprep.subr.mxu0 0.0
    %2820 = vmatpush1.msra.mxu0 %v2522
    %2821 = vmatprep.subr.mxu0 0.0
    %2822 = vmatpush1.msra.mxu0 %v2523
    %2823 = vmatprep.subr.mxu0 0.0
    %2824 = vmatpush1.msra.mxu0 %v2524
    %2825 = vmatprep.subr.mxu0 0.0
    %2826 = vmatpush1.msra.mxu0 %v2525
    %2827 = vmatprep.subr.mxu0 0.0
    %2828 = vmatpush1.msra.mxu0 %v2526
    %2829 = vmatprep.subr.mxu0 0.0
    %2830 = vmatpush1.msra.mxu0 %v2527
    %2831 = vmatprep.subr.mxu0 0.0
    %2832 = vmatpush1.msra.mxu0 %v2528
    %2833 = vmatprep.subr.mxu0 0.0
    %2834 = vmatpush1.msra.mxu0 %v2529
    %2835 = vmatprep.subr.mxu0 0.0
    %2836 = vmatpush1.msra.mxu0 %v2530
    %2837 = vmatprep.subr.mxu0 0.0
    %2838 = vmatpush1.msra.mxu0 %v2531
    %2839 = vmatprep.subr.mxu0 0.0
    %2840 = vmatpush1.msra.mxu0 %v2532
    %2841 = vmatprep.subr.mxu0 0.0
    %2842 = vmatpush1.msra.mxu0 %v2533
    %2843 = vmatprep.subr.mxu0 0.0
    %2844 = vmatpush1.msra.mxu0 %v2534
    %2845 = vmatprep.subr.mxu0 0.0
    %2846 = vmatpush1.msra.mxu0 %v2535
    %2847 = vmatprep.subr.mxu0 0.0
    %2848 = vmatpush1.msra.mxu0 %v2536
    %2849 = vmatprep.subr.mxu0 0.0
    %2850 = vmatpush1.msra.mxu0 %v2537
    %2851 = vmatprep.subr.mxu0 0.0
    %2852 = vmatpush1.msra.mxu0 %v2538
    %2853 = vmatprep.subr.mxu0 0.0
    %2854 = vmatpush1.msra.mxu0 %v2539
    %2855 = vmatprep.subr.mxu0 0.0
    %2856 = vmatpush1.msra.mxu0 %v2540
    %2857 = vmatprep.subr.mxu0 0.0
    %2858 = vmatpush1.msra.mxu0 %v2541
    %2859 = vmatprep.subr.mxu0 0.0
    %2860 = vmatpush1.msra.mxu0 %v2542
    %2861 = vmatprep.subr.mxu0 0.0
    %2862 = vmatpush1.msra.mxu0 %v2543
    %2863 = vmatprep.subr.mxu0 0.0
    %2864 = vmatpush1.msra.mxu0 %v2544
    %2865 = vmatprep.subr.mxu0 0.0
    %2866 = vmatpush1.msra.mxu0 %v2545
    %2867 = vmatprep.subr.mxu0 0.0
    %2868 = vmatpush1.msra.mxu0 %v2546
    %2869 = vmatprep.mubr.f32.mxu0 %v2416
    %2870 = vmatmul.mubr.f32.gmra.mrb[0].mxu0 %v2415
    %v2871 = vpop.f32.mrb[0].mxu0
    %v2872 = vadd.f32 %v2787, %v2871
    %v2873 = vpop.f32.mrb[0].mxu0
    %2874 = vmatprep.mubr.f32.mxu0 %v2426
    %2875 = vmatmul.mubr.f32.gmra.mrb[0].mxu0 %v2425
    %v2876 = vpop.f32.mrb[0].mxu0
    %v2877 = vadd.f32 %v2792, %v2876
    %v2878 = vpop.f32.mrb[0].mxu0
    %2879 = vmatprep.mubr.f32.mxu0 %v2436
    %2880 = vmatmul.mubr.f32.gmra.mrb[0].mxu0 %v2435
    %v2881 = vpop.f32.mrb[0].mxu0
    %v2882 = vadd.f32 %v2797, %v2881
    %v2883 = vpop.f32.mrb[0].mxu0
    %2884 = vmatprep.mubr.f32.mxu0 %v2446
    %2885 = vmatmul.mubr.f32.gmra.mrb[0].mxu0 %v2445
    %v2886 = vpop.f32.mrb[0].mxu0
    %v2887 = vadd.f32 %v2802, %v2886
    %v2888 = vpop.f32.mrb[0].mxu0
    %2889 = vdwg.mxu0
    %2890 = vmatprep.subr.mxu0 0.0
    %2891 = vmatpush1.msra.mxu0 %v2547
    %2892 = vmatprep.subr.mxu0 0.0
    %2893 = vmatpush1.msra.mxu0 %v2548
    %2894 = vmatprep.subr.mxu0 0.0
    %2895 = vmatpush1.msra.mxu0 %v2549
    %2896 = vmatprep.subr.mxu0 0.0
    %2897 = vmatpush1.msra.mxu0 %v2550
    %2898 = vmatprep.subr.mxu0 0.0
    %2899 = vmatpush1.msra.mxu0 %v2551
    %2900 = vmatprep.subr.mxu0 0.0
    %2901 = vmatpush1.msra.mxu0 %v2552
    %2902 = vmatprep.subr.mxu0 0.0
    %2903 = vmatpush1.msra.mxu0 %v2553
    %2904 = vmatprep.subr.mxu0 0.0
    %2905 = vmatpush1.msra.mxu0 %v2554
    %2906 = vmatprep.subr.mxu0 0.0
    %2907 = vmatpush1.msra.mxu0 %v2555
    %2908 = vmatprep.subr.mxu0 0.0
    %2909 = vmatpush1.msra.mxu0 %v2556
    %2910 = vmatprep.subr.mxu0 0.0
    %2911 = vmatpush1.msra.mxu0 %v2557
    %2912 = vmatprep.subr.mxu0 0.0
    %2913 = vmatpush1.msra.mxu0 %v2558
    %2914 = vmatprep.subr.mxu0 0.0
    %2915 = vmatpush1.msra.mxu0 %v2559
    %2916 = vmatprep.subr.mxu0 0.0
    %2917 = vmatpush1.msra.mxu0 %v2560
    %2918 = vmatprep.subr.mxu0 0.0
    %2919 = vmatpush1.msra.mxu0 %v2561
    %2920 = vmatprep.subr.mxu0 0.0
    %2921 = vmatpush1.msra.mxu0 %v2562
    %2922 = vmatprep.subr.mxu0 0.0
    %2923 = vmatpush1.msra.mxu0 %v2563
    %2924 = vmatprep.subr.mxu0 0.0
    %2925 = vmatpush1.msra.mxu0 %v2564
    %2926 = vmatprep.subr.mxu0 0.0
    %2927 = vmatpush1.msra.mxu0 %v2565
    %2928 = vmatprep.subr.mxu0 0.0
    %2929 = vmatpush1.msra.mxu0 %v2566
    %2930 = vmatprep.subr.mxu0 0.0
    %2931 = vmatpush1.msra.mxu0 %v2567
    %2932 = vmatprep.subr.mxu0 0.0
    %2933 = vmatpush1.msra.mxu0 %v2568
    %2934 = vmatprep.subr.mxu0 0.0
    %2935 = vmatpush1.msra.mxu0 %v2569
    %2936 = vmatprep.subr.mxu0 0.0
    %2937 = vmatpush1.msra.mxu0 %v2570
    %2938 = vmatprep.subr.mxu0 0.0
    %2939 = vmatpush1.msra.mxu0 %v2571
    %2940 = vmatprep.subr.mxu0 0.0
    %2941 = vmatpush1.msra.mxu0 %v2572
    %2942 = vmatprep.subr.mxu0 0.0
    %2943 = vmatpush1.msra.mxu0 %v2573
    %2944 = vmatprep.subr.mxu0 0.0
    %2945 = vmatpush1.msra.mxu0 %v2574
    %2946 = vmatprep.subr.mxu0 0.0
    %2947 = vmatpush1.msra.mxu0 %v2575
    %2948 = vmatprep.subr.mxu0 0.0
    %2949 = vmatpush1.msra.mxu0 %v2576
    %2950 = vmatprep.subr.mxu0 0.0
    %2951 = vmatpush1.msra.mxu0 %v2577
    %2952 = vmatprep.subr.mxu0 0.0
    %2953 = vmatpush1.msra.mxu0 %v2578
    %2954 = vmatprep.mubr.f32.mxu0 %v2418
    %2955 = vmatmul.mubr.f32.gmra.mrb[0].mxu0 %v2417
    %v2956 = vpop.f32.mrb[0].mxu0
    %v2957 = vadd.f32 %v2872, %v2956
    %v2958 = vpop.f32.mrb[0].mxu0
    %2959 = vmatprep.mubr.f32.mxu0 %v2428
    %2960 = vmatmul.mubr.f32.gmra.mrb[0].mxu0 %v2427
    %v2961 = vpop.f32.mrb[0].mxu0
    %v2962 = vadd.f32 %v2877, %v2961
    %v2963 = vpop.f32.mrb[0].mxu0
    %2964 = vmatprep.mubr.f32.mxu0 %v2438
    %2965 = vmatmul.mubr.f32.gmra.mrb[0].mxu0 %v2437
    %v2966 = vpop.f32.mrb[0].mxu0
    %v2967 = vadd.f32 %v2882, %v2966
    %v2968 = vpop.f32.mrb[0].mxu0
    %2969 = vmatprep.mubr.f32.mxu0 %v2448
    %2970 = vmatmul.mubr.f32.gmra.mrb[0].mxu0 %v2447
    %v2971 = vpop.f32.mrb[0].mxu0
    %v2972 = vadd.f32 %v2887, %v2971
    %v2973 = vpop.f32.mrb[0].mxu0
    %2974 = vdwg.mxu0
    %2975 = vmatprep.subr.mxu0 0.0
    %2976 = vmatpush1.msra.mxu0 %v2579
    %2977 = vmatprep.subr.mxu0 0.0
    %2978 = vmatpush1.msra.mxu0 %v2580
    %2979 = vmatprep.subr.mxu0 0.0
    %2980 = vmatpush1.msra.mxu0 %v2581
    %2981 = vmatprep.subr.mxu0 0.0
    %2982 = vmatpush1.msra.mxu0 %v2582
    %2983 = vmatprep.subr.mxu0 0.0
    %2984 = vmatpush1.msra.mxu0 %v2583
    %2985 = vmatprep.subr.mxu0 0.0
    %2986 = vmatpush1.msra.mxu0 %v2584
    %2987 = vmatprep.subr.mxu0 0.0
    %2988 = vmatpush1.msra.mxu0 %v2585
    %2989 = vmatprep.subr.mxu0 0.0
    %2990 = vmatpush1.msra.mxu0 %v2586
    %2991 = vmatprep.subr.mxu0 0.0
    %2992 = vmatpush1.msra.mxu0 %v2587
    %2993 = vmatprep.subr.mxu0 0.0
    %2994 = vmatpush1.msra.mxu0 %v2588
    %2995 = vmatprep.subr.mxu0 0.0
    %2996 = vmatpush1.msra.mxu0 %v2589
    %2997 = vmatprep.subr.mxu0 0.0
    %2998 = vmatpush1.msra.mxu0 %v2590
    %2999 = vmatprep.subr.mxu0 0.0
    %3000 = vmatpush1.msra.mxu0 %v2591
    %3001 = vmatprep.subr.mxu0 0.0
    %3002 = vmatpush1.msra.mxu0 %v2592
    %3003 = vmatprep.subr.mxu0 0.0
    %3004 = vmatpush1.msra.mxu0 %v2593
    %3005 = vmatprep.subr.mxu0 0.0
    %3006 = vmatpush1.msra.mxu0 %v2594
    %3007 = vmatprep.subr.mxu0 0.0
    %3008 = vmatpush1.msra.mxu0 %v2595
    %3009 = vmatprep.subr.mxu0 0.0
    %3010 = vmatpush1.msra.mxu0 %v2596
    %3011 = vmatprep.subr.mxu0 0.0
    %3012 = vmatpush1.msra.mxu0 %v2597
    %3013 = vmatprep.subr.mxu0 0.0
    %3014 = vmatpush1.msra.mxu0 %v2598
    %3015 = vmatprep.subr.mxu0 0.0
    %3016 = vmatpush1.msra.mxu0 %v2599
    %3017 = vmatprep.subr.mxu0 0.0
    %3018 = vmatpush1.msra.mxu0 %v2600
    %3019 = vmatprep.subr.mxu0 0.0
    %3020 = vmatpush1.msra.mxu0 %v2601
    %3021 = vmatprep.subr.mxu0 0.0
    %3022 = vmatpush1.msra.mxu0 %v2602
    %3023 = vmatprep.subr.mxu0 0.0
    %3024 = vmatpush1.msra.mxu0 %v2603
    %3025 = vmatprep.subr.mxu0 0.0
    %3026 = vmatpush1.msra.mxu0 %v2604
    %3027 = vmatprep.subr.mxu0 0.0
    %3028 = vmatpush1.msra.mxu0 %v2605
    %3029 = vmatprep.subr.mxu0 0.0
    %3030 = vmatpush1.msra.mxu0 %v2606
    %3031 = vmatprep.subr.mxu0 0.0
    %3032 = vmatpush1.msra.mxu0 %v2607
    %3033 = vmatprep.subr.mxu0 0.0
    %3034 = vmatpush1.msra.mxu0 %v2608
    %3035 = vmatprep.subr.mxu0 0.0
    %3036 = vmatpush1.msra.mxu0 %v2609
    %3037 = vmatprep.subr.mxu0 0.0
    %3038 = vmatpush1.msra.mxu0 %v2610
    %3039 = vmatprep.mubr.f32.mxu0 %v2420
    %3040 = vmatmul.mubr.f32.gmra.mrb[0].mxu0 %v2419
    %v3041 = vpop.f32.mrb[0].mxu0
    %v3042 = vadd.f32 %v2957, %v3041
    %v3043 = vpop.f32.mrb[0].mxu0
    %3044 = vmatprep.mubr.f32.mxu0 %v2430
    %3045 = vmatmul.mubr.f32.gmra.mrb[0].mxu0 %v2429
    %v3046 = vpop.f32.mrb[0].mxu0
    %v3047 = vadd.f32 %v2962, %v3046
    %v3048 = vpop.f32.mrb[0].mxu0
    %3049 = vmatprep.mubr.f32.mxu0 %v2440
    %3050 = vmatmul.mubr.f32.gmra.mrb[0].mxu0 %v2439
    %v3051 = vpop.f32.mrb[0].mxu0
    %v3052 = vadd.f32 %v2967, %v3051
    %v3053 = vpop.f32.mrb[0].mxu0
    %3054 = vmatprep.mubr.f32.mxu0 %v2450
    %3055 = vmatmul.mubr.f32.gmra.mrb[0].mxu0 %v2449
    %v3056 = vpop.f32.mrb[0].mxu0
    %v3057 = vadd.f32 %v2972, %v3056
    %v3058 = vpop.f32.mrb[0].mxu0
    %3059 = vdwg.mxu0
    %v3060 = vmax.f32 %v3042, 0.0
    %v3061 = vmax.f32 %v3047, 0.0
    %v3062 = vmax.f32 %v3052, 0.0
    %v3063 = vmax.f32 %v3057, 0.0
    %v3064 = vld [vmem:[%s7] sm:$0xff]
    %v3065 = vld [vmem:[%s8] sm:$0xff]
    %3067 = vset.pattern.permute.xlu0 0
    %3068 = vperm.xlu0 %3067, %v3065
    %v3069 = vpop.permute.xlu0 %3068
    %vm3071 = vcmask 261120
    %v3073 = vsel %vm3071, %v3064, 0
    %3075 = vmatprep.subr.mxu0 0.0
    %3076 = vmatpush1.msra.mxu0 %v3060
    %3077 = vmatprep.subr.mxu0 0.0
    %3078 = vmatpush1.msra.mxu0 %v3061
    %3079 = vmatprep.subr.mxu0 0.0
    %3080 = vmatpush1.msra.mxu0 %v3062
    %3081 = vmatprep.subr.mxu0 0.0
    %3082 = vmatpush1.msra.mxu0 %v3063
    %3083 = vmatprep.subr.mxu0 0.0
    %3084 = vmatpush1.msra.mxu0 0.0
    %3085 = vmatprep.subr.mxu0 0.0
    %3086 = vmatpush1.msra.mxu0 0.0
    %3087 = vmatprep.subr.mxu0 0.0
    %3088 = vmatpush1.msra.mxu0 0.0
    %3089 = vmatprep.subr.mxu0 0.0
    %3090 = vmatpush1.msra.mxu0 0.0
    %3091 = vmatprep.subr.mxu0 0.0
    %3092 = vmatpush1.msra.mxu0 0.0
    %3093 = vmatprep.subr.mxu0 0.0
    %3094 = vmatpush1.msra.mxu0 0.0
    %3095 = vmatprep.subr.mxu0 0.0
    %3096 = vmatpush1.msra.mxu0 0.0
    %3097 = vmatprep.subr.mxu0 0.0
    %3098 = vmatpush1.msra.mxu0 0.0
    %3099 = vmatprep.subr.mxu0 0.0
    %3100 = vmatpush1.msra.mxu0 0.0
    %3101 = vmatprep.subr.mxu0 0.0
    %3102 = vmatpush1.msra.mxu0 0.0
    %3103 = vmatprep.subr.mxu0 0.0
    %3104 = vmatpush1.msra.mxu0 0.0
    %3105 = vmatprep.subr.mxu0 0.0
    %3106 = vmatpush1.msra.mxu0 0.0
    %3107 = vmatprep.subr.mxu0 0.0
    %3108 = vmatpush1.msra.mxu0 0.0
    %3109 = vmatprep.subr.mxu0 0.0
    %3110 = vmatpush1.msra.mxu0 0.0
    %3111 = vmatprep.subr.mxu0 0.0
    %3112 = vmatpush1.msra.mxu0 0.0
    %3113 = vmatprep.subr.mxu0 0.0
    %3114 = vmatpush1.msra.mxu0 0.0
    %3115 = vmatprep.subr.mxu0 0.0
    %3116 = vmatpush1.msra.mxu0 0.0
    %3117 = vmatprep.subr.mxu0 0.0
    %3118 = vmatpush1.msra.mxu0 0.0
    %3119 = vmatprep.subr.mxu0 0.0
    %3120 = vmatpush1.msra.mxu0 0.0
    %3121 = vmatprep.subr.mxu0 0.0
    %3122 = vmatpush1.msra.mxu0 0.0
    %3123 = vmatprep.subr.mxu0 0.0
    %3124 = vmatpush1.msra.mxu0 0.0
    %3125 = vmatprep.subr.mxu0 0.0
    %3126 = vmatpush1.msra.mxu0 0.0
    %3127 = vmatprep.subr.mxu0 0.0
    %3128 = vmatpush1.msra.mxu0 0.0
    %3129 = vmatprep.subr.mxu0 0.0
    %3130 = vmatpush1.msra.mxu0 0.0
    %3131 = vmatprep.subr.mxu0 0.0
    %3132 = vmatpush1.msra.mxu0 0.0
    %3133 = vmatprep.subr.mxu0 0.0
    %3134 = vmatpush1.msra.mxu0 0.0
    %3135 = vmatprep.subr.mxu0 0.0
    %3136 = vmatpush1.msra.mxu0 0.0
    %3137 = vmatprep.subr.mxu0 0.0
    %3138 = vmatpush1.msra.mxu0 0.0
    %3139 = vmatprep.mubr.f32.mxu0 0.0
    %3140 = vmatmul.mubr.f32.gmra.mrb[0].mxu0 %v3073
    %v3141 = vpop.f32.mrb[0].mxu0
    %v3142 = vadd.f32 %v3069, %v3141
    %v3143 = vpop.f32.mrb[0].mxu0
    %3144 = vdwg.mxu0
    %v3145 = vsub.f32 0.0, %v3142
    %v3146 = vmul.f32 %v3145, 1.442695
    %v3147 = vpow.pop %v3146
    %v3148 = vadd.f32 %v3147, 1.0
    %v3149 = vrcp.pop %v3148
    %v3150 = vmul.f32 1.0, %v3149
    %3151 = vst [vmem:[%s9] sm:$0xff] %v3150
    // Predicated region
    $region82: #{_net_forward_impl.1} parent=1 // pred_check
      _
    $region83: #{_net_forward_impl.1} parent=1 // pred_check_branch
      %3153 = sbr.rel (0) target = $region85
    $region84: #{_net_forward_impl.1} parent=1 // pred_region
      _
    $region85: #{_net_forward_impl.1} parent=1 // pred_fallthru
      _
    // Predicated region
    $region86: #{_net_forward_impl.1} parent=1 // pred_check
      _
    $region87: #{_net_forward_impl.1} parent=1 // pred_check_branch
      %3155 = sbr.rel (0) target = $region89
    $region88: #{_net_forward_impl.1} parent=1 // pred_region
      _
    $region89: #{_net_forward_impl.1} parent=1 // pred_fallthru
      _
    %3156 = vsyncpa [#allocation6], 1
    %3157 = vsyncpa [#allocation8], 1
    %3158 = vsyncpa [#allocation11], 1

</llo_original>
